<compile_context>
chip_gen: v6e
topology: v6e:2x2x1
jax: 0.10.0
libtpu: 0.0.40
codegen_flags: <defaults>
</compile_context>

<pallas_src>
import functools

import jax
import jax.numpy as jnp
from jax import lax
from jax.experimental import pallas as pl
from jax.experimental.pallas import tpu as pltpu


def _convgru_kernel(k, H, W, Cin, Ch,
                    xp_ref, hp_ref, h_ref, wx_ref, whur_ref, who_ref, b_ref,
                    out_ref, pad_scratch):
    """One batch element of the ConvGRU cell.

    xp_ref     : (Hp, Wp, Cin) bf16   zero-padded input (batch squeezed)
    hp_ref     : (Hp, Wp, Ch)  bf16   zero-padded previous hidden state
    h_ref      : (H*W, Ch)     f32    previous hidden state, spatially flattened
    wx_ref     : (k*k*Cin, 3*Ch) bf16 x-parts of [update | reset | out] weights
    whur_ref   : (k*k*Ch, 2*Ch)  bf16 h-parts of [update | reset] weights
    who_ref    : (k*k*Ch, Ch)    bf16 h-part of the out-gate weights
    b_ref      : (1, 3*Ch)       f32  fused biases [update | reset | out]
    out_ref    : (H*W, Ch)       f32  new hidden state
    pad_scratch: (Hp, Wp, Ch)    f32  workspace for zero-padded (h*reset)
    """
    pad = k // 2
    HW = H * W
    Hp, Wp = H + 2 * pad, W + 2 * pad
    f32 = jnp.float32
    bf16 = jnp.bfloat16

    def im2col(a, c):
        # a: (Hp, Wp, c) zero-padded input.  Returns (H*W, k*k*c) patch matrix
        # whose column order (kh-major, kw, channel) matches the weight rows.
        taps = []
        for kh in range(k):
            for kw in range(k):
                taps.append(a[kh:kh + H, kw:kw + W, :].reshape(HW, c))
        return jnp.concatenate(taps, axis=-1)

    # --- fused x-contribution of all three gates (single MXU contraction) ---
    ax = im2col(xp_ref[...], Cin)                    # (HW, k*k*Cin) bf16
    gx = jnp.dot(ax, wx_ref[...], preferred_element_type=f32) + b_ref[...]

    # --- fused h-contribution of update + reset gates ------------------------
    # reads the wrapper-prepared zero-padded hidden state directly (bf16).
    ah = im2col(hp_ref[...], Ch)                     # (HW, k*k*Ch) bf16
    ghur = jnp.dot(ah, whur_ref[...], preferred_element_type=f32)

    update = jax.nn.sigmoid(gx[:, 0:Ch] + ghur[:, 0:Ch])
    reset = jax.nn.sigmoid(gx[:, Ch:2 * Ch] + ghur[:, Ch:2 * Ch])

    h = h_ref[...]                                   # (HW, Ch) f32

    # --- out gate: conv over zero-padded (h * reset) -------------------------
    # Zero only the pad-wide border of the padded workspace; the interior is
    # fully overwritten below, so no full-buffer zero fill is needed.
    pad_scratch[0:pad, :, :] = jnp.zeros((pad, Wp, Ch), f32)
    pad_scratch[pad + H:, :, :] = jnp.zeros((pad, Wp, Ch), f32)
    pad_scratch[pad:pad + H, 0:pad, :] = jnp.zeros((H, pad, Ch), f32)
    pad_scratch[pad:pad + H, pad + W:, :] = jnp.zeros((H, pad, Ch), f32)
    pad_scratch[pad:pad + H, pad:pad + W, :] = (h * reset).reshape(H, W, Ch)

    arh = im2col(pad_scratch[...], Ch).astype(bf16)  # (HW, k*k*Ch)
    gho = jnp.dot(arh, who_ref[...], preferred_element_type=f32)
    out_gate = jnp.tanh(gx[:, 2 * Ch:] + gho)

    # new_state = h * (1 - update) + out_inputs * update
    out_ref[...] = h * (1.0 - update) + out_gate * update


def convgru_forward(x, prev_state, params, kernel_size):
    """ConvGRUCell.forward.  x: (B, Cin, H, W) NCHW, prev_state: (B, Ch, H, W) or None."""
    B, Cin, H, W = x.shape
    Ch = params["w_update"].shape[0]
    k = kernel_size
    if k % 2 != 1:
        raise ValueError("kernel_size must be odd to reproduce 'same' padding")
    pad = k // 2
    Hp, Wp = H + 2 * pad, W + 2 * pad

    if prev_state is None:
        prev_state = jnp.zeros((B, Ch, H, W), x.dtype)

    # Activations: NCHW -> NHWC.  x and padded-h only feed the MXU, so ship them
    # as bf16 (halves HBM/VMEM); the flat h stays f32 because it enters the f32
    # state blend.
    x_nhwc = jnp.transpose(x, (0, 2, 3, 1)).astype(jnp.float32)
    xp = jnp.pad(x_nhwc, ((0, 0), (pad, pad), (pad, pad), (0, 0))).astype(jnp.bfloat16)
    h_nhwc = jnp.transpose(prev_state, (0, 2, 3, 1)).astype(jnp.float32)
    hp = jnp.pad(h_nhwc, ((0, 0), (pad, pad), (pad, pad), (0, 0))).astype(jnp.bfloat16)
    h_flat = h_nhwc.reshape(B, H * W, Ch)

    # Weights: OIHW -> HWIO rows per spatial tap, split x/h parts, fuse gates.
    def split_weight(w_oihw):
        w_hwio = jnp.transpose(w_oihw, (2, 3, 1, 0)).astype(jnp.float32)  # (k,k,Cin+Ch,Ch)
        wx = w_hwio[:, :, :Cin, :].reshape(k * k * Cin, Ch)
        wh = w_hwio[:, :, Cin:, :].reshape(k * k * Ch, Ch)
        return wx, wh

    wux, wuh = split_weight(params["w_update"])
    wrx, wrh = split_weight(params["w_reset"])
    wox, woh = split_weight(params["w_out"])
    wx_all = jnp.concatenate([wux, wrx, wox], axis=1).astype(jnp.bfloat16)   # (k*k*Cin, 3Ch)
    wh_ur = jnp.concatenate([wuh, wrh], axis=1).astype(jnp.bfloat16)         # (k*k*Ch, 2Ch)
    wh_o = woh.astype(jnp.bfloat16)                                          # (k*k*Ch, Ch)
    b_all = jnp.concatenate(
        [params["b_update"], params["b_reset"], params["b_out"]]
    ).reshape(1, 3 * Ch).astype(jnp.float32)

    def const_spec(shape):
        return pl.BlockSpec(shape, lambda b: (0,) * len(shape))

    out_flat = pl.pallas_call(
        functools.partial(_convgru_kernel, k, H, W, Cin, Ch),
        out_shape=jax.ShapeDtypeStruct((B, H * W, Ch), jnp.float32),
        grid_spec=pltpu.PrefetchScalarGridSpec(
            num_scalar_prefetch=0,
            grid=(B,),
            in_specs=[
                pl.BlockSpec((pl.Squeezed(), Hp, Wp, Cin), lambda b: (b, 0, 0, 0)),
                pl.BlockSpec((pl.Squeezed(), Hp, Wp, Ch), lambda b: (b, 0, 0, 0)),
                pl.BlockSpec((pl.Squeezed(), H * W, Ch), lambda b: (b, 0, 0)),
                const_spec((k * k * Cin, 3 * Ch)),   # fused x-part weights
                const_spec((k * k * Ch, 2 * Ch)),    # fused h-part (update|reset)
                const_spec((k * k * Ch, Ch)),        # h-part of out gate
                const_spec((1, 3 * Ch)),             # fused biases
            ],
            out_specs=pl.BlockSpec((pl.Squeezed(), H * W, Ch),
                                   lambda b: (b, 0, 0)),
            scratch_shapes=[pltpu.VMEM((Hp, Wp, Ch), jnp.float32)],
        ),
        compiler_params=pltpu.CompilerParams(
            dimension_semantics=("parallel",),       # batch is independent -> megacore on v7x
        ),
    )(xp, hp, h_flat, wx_all, wh_ur, wh_o, b_all)

    # (B, H*W, Ch) -> NCHW
    return jnp.transpose(out_flat.reshape(B, H, W, Ch), (0, 3, 1, 2))


def _reference_forward(x, prev_state, params):
    """Pure-JAX f32 reference matching the PyTorch module (NCHW / OIHW)."""
    Ch = params["w_update"].shape[0]
    if prev_state is None:
        prev_state = jnp.zeros((x.shape[0], Ch) + x.shape[2:], x.dtype)

    def conv(inp, w, b):
        out = lax.conv_general_dilated(
            inp, w, window_strides=(1, 1),
            padding=((w.shape[2] // 2,) * 2, (w.shape[3] // 2,) * 2),
            dimension_numbers=("NCHW", "OIHW", "NCHW"))
        return out + b[None, :, None, None]

    combined_1 = jnp.concatenate([x, prev_state], axis=1)
    update = jax.nn.sigmoid(conv(combined_1, params["w_update"], params["b_update"]))
    reset = jax.nn.sigmoid(conv(combined_1, params["w_reset"], params["b_reset"]))
    out_inputs = jnp.tanh(conv(jnp.concatenate([x, prev_state * reset], axis=1),
                               params["w_out"], params["b_out"]))
    return prev_state * (1 - update) + out_inputs * update


def init_params(key, input_size, hidden_size, kernel_size):
    """Deterministic init mirroring the module: orthogonal weights, zero biases."""
    c_tot = input_size + hidden_size
    k = kernel_size
    ortho = jax.nn.initializers.orthogonal()
    keys = jax.random.split(key, 3)

    def make_w(kk):
        # torch init.orthogonal_ treats the weight as (Ch, (Cin+Ch)*k*k)
        return ortho(kk, (hidden_size, c_tot * k * k),
                     jnp.float32).reshape(hidden_size, c_tot, k, k)

    zeros_b = jnp.zeros((hidden_size,), jnp.float32)
    return {
        "w_update": make_w(keys[0]), "b_update": zeros_b,
        "w_reset": make_w(keys[1]), "b_reset": zeros_b,
        "w_out": make_w(keys[2]), "b_out": zeros_b,
    }


if __name__ == "__main__":
    B, Cin, H, W = 2, 4, 16, 16
    hidden = 8
    ksize = 3

    root = jax.random.PRNGKey(0)
    k_param, k_x, k_h = jax.random.split(root, 3)

    params = init_params(k_param, Cin, hidden, ksize)
    x = jax.random.normal(k_x, (B, Cin, H, W), jnp.float32)
    prev_state = jax.random.normal(k_h, (B, hidden, H, W), jnp.float32)

    new_state = jax.block_until_ready(convgru_forward(x, prev_state, params, ksize))
    ref = jax.block_until_ready(_reference_forward(x, prev_state, params))

    # Matmul operands are bf16 (f32 accumulation), so compare with a bf16-level
    # tolerance against the f32 reference.
    if not jnp.allclose(new_state, ref, rtol=5e-2, atol=5e-2):
        raise AssertionError("Pallas ConvGRU output does not match JAX reference")

    # also exercise the prev_state=None (zero-state) path once
    _ = jax.block_until_ready(convgru_forward(x, None, params, ksize))

    print("KERNEL_OK")
</pallas_src>

<mosaic_0001>
module attributes {stable_mosaic.version = 11 : i64} {
  func.func @_convgru_kernel(%arg0: i32, %arg1: memref<1x18x18x4xbf16, #tpu.memory_space<vmem>>, %arg2: memref<1x18x18x8xbf16, #tpu.memory_space<vmem>>, %arg3: memref<1x256x8xf32, #tpu.memory_space<vmem>>, %arg4: memref<36x24xbf16, #tpu.memory_space<vmem>>, %arg5: memref<72x16xbf16, #tpu.memory_space<vmem>>, %arg6: memref<72x8xbf16, #tpu.memory_space<vmem>>, %arg7: memref<1x24xf32, #tpu.memory_space<vmem>>, %arg8: memref<1x256x8xf32, #tpu.memory_space<vmem>>, %arg9: memref<18x18x8xf32, #tpu.memory_space<vmem>>) attributes {dimension_semantics = [#tpu.dimension_semantics<parallel>], iteration_bounds = array<i64: 2>, scalar_prefetch = 0 : i64, scratch_operands = 1 : i64, tpu.core_type = #tpu.core_type<tc>, window_params = [{transform_indices = @transform_0, window_bounds = array<i64: 1, 18, 18, 4>}, {transform_indices = @transform_1, window_bounds = array<i64: 1, 18, 18, 8>}, {transform_indices = @transform_2, window_bounds = array<i64: 1, 256, 8>}, {pipeline_mode = #tpu.pipeline_mode<synchronous>, transform_indices = @transform_3, window_bounds = array<i64: 36, 24>}, {pipeline_mode = #tpu.pipeline_mode<synchronous>, transform_indices = @transform_4, window_bounds = array<i64: 72, 16>}, {pipeline_mode = #tpu.pipeline_mode<synchronous>, transform_indices = @transform_5, window_bounds = array<i64: 72, 8>}, {pipeline_mode = #tpu.pipeline_mode<synchronous>, transform_indices = @transform_6, window_bounds = array<i64: 1, 24>}, {transform_indices = @transform_7, window_bounds = array<i64: 1, 256, 8>}]} {
    %c0 = arith.constant 0 : index
    %c0_0 = arith.constant 0 : index
    %c0_1 = arith.constant 0 : index
    %c0_2 = arith.constant 0 : index
    %0 = vector.load %arg1[%c0, %c0_0, %c0_1, %c0_2] : memref<1x18x18x4xbf16, #tpu.memory_space<vmem>>, vector<1x18x18x4xbf16>
    %1 = vector.shape_cast %0 : vector<1x18x18x4xbf16> to vector<18x18x4xbf16>
    %2 = vector.extract_strided_slice %1 {offsets = [0, 0, 0], sizes = [16, 16, 4], strides = [1, 1, 1]} : vector<18x18x4xbf16> to vector<16x16x4xbf16>
    %3 = vector.shape_cast %2 : vector<16x16x4xbf16> to vector<256x4xbf16>
    %4 = vector.extract_strided_slice %1 {offsets = [0, 1, 0], sizes = [16, 16, 4], strides = [1, 1, 1]} : vector<18x18x4xbf16> to vector<16x16x4xbf16>
    %5 = vector.shape_cast %4 : vector<16x16x4xbf16> to vector<256x4xbf16>
    %6 = vector.extract_strided_slice %1 {offsets = [0, 2, 0], sizes = [16, 16, 4], strides = [1, 1, 1]} : vector<18x18x4xbf16> to vector<16x16x4xbf16>
    %7 = vector.shape_cast %6 : vector<16x16x4xbf16> to vector<256x4xbf16>
    %8 = vector.extract_strided_slice %1 {offsets = [1, 0, 0], sizes = [16, 16, 4], strides = [1, 1, 1]} : vector<18x18x4xbf16> to vector<16x16x4xbf16>
    %9 = vector.shape_cast %8 : vector<16x16x4xbf16> to vector<256x4xbf16>
    %10 = vector.extract_strided_slice %1 {offsets = [1, 1, 0], sizes = [16, 16, 4], strides = [1, 1, 1]} : vector<18x18x4xbf16> to vector<16x16x4xbf16>
    %11 = vector.shape_cast %10 : vector<16x16x4xbf16> to vector<256x4xbf16>
    %12 = vector.extract_strided_slice %1 {offsets = [1, 2, 0], sizes = [16, 16, 4], strides = [1, 1, 1]} : vector<18x18x4xbf16> to vector<16x16x4xbf16>
    %13 = vector.shape_cast %12 : vector<16x16x4xbf16> to vector<256x4xbf16>
    %14 = vector.extract_strided_slice %1 {offsets = [2, 0, 0], sizes = [16, 16, 4], strides = [1, 1, 1]} : vector<18x18x4xbf16> to vector<16x16x4xbf16>
    %15 = vector.shape_cast %14 : vector<16x16x4xbf16> to vector<256x4xbf16>
    %16 = vector.extract_strided_slice %1 {offsets = [2, 1, 0], sizes = [16, 16, 4], strides = [1, 1, 1]} : vector<18x18x4xbf16> to vector<16x16x4xbf16>
    %17 = vector.shape_cast %16 : vector<16x16x4xbf16> to vector<256x4xbf16>
    %18 = vector.extract_strided_slice %1 {offsets = [2, 2, 0], sizes = [16, 16, 4], strides = [1, 1, 1]} : vector<18x18x4xbf16> to vector<16x16x4xbf16>
    %19 = vector.shape_cast %18 : vector<16x16x4xbf16> to vector<256x4xbf16>
    %20 = tpu.concatenate %3, %5, %7, %9, %11, %13, %15, %17, %19 in 1 : vector<256x4xbf16>, vector<256x4xbf16>, vector<256x4xbf16>, vector<256x4xbf16>, vector<256x4xbf16>, vector<256x4xbf16>, vector<256x4xbf16>, vector<256x4xbf16>, vector<256x4xbf16> -> vector<256x36xbf16>
    %c0_3 = arith.constant 0 : index
    %c0_4 = arith.constant 0 : index
    %21 = vector.load %arg4[%c0_3, %c0_4] : memref<36x24xbf16, #tpu.memory_space<vmem>>, vector<36x24xbf16>
    %cst = arith.constant dense<0.000000e+00> : vector<256x24xf32>
    %22 = tpu.matmul %20, %21, %cst {dimension_numbers = #tpu.dot_dimension_numbers<[1], [0], [0], [1], [0, 0, 1, 1], [], []>} : vector<256x36xbf16>, vector<36x24xbf16>, vector<256x24xf32> -> vector<256x24xf32>
    %c0_5 = arith.constant 0 : index
    %c0_6 = arith.constant 0 : index
    %23 = vector.load %arg7[%c0_5, %c0_6] : memref<1x24xf32, #tpu.memory_space<vmem>>, vector<1x24xf32>
    %24 = vector.broadcast %23 : vector<1x24xf32> to vector<256x24xf32>
    %25 = arith.addf %22, %24 : vector<256x24xf32>
    %c0_7 = arith.constant 0 : index
    %c0_8 = arith.constant 0 : index
    %c0_9 = arith.constant 0 : index
    %c0_10 = arith.constant 0 : index
    %26 = vector.load %arg2[%c0_7, %c0_8, %c0_9, %c0_10] : memref<1x18x18x8xbf16, #tpu.memory_space<vmem>>, vector<1x18x18x8xbf16>
    %27 = vector.shape_cast %26 : vector<1x18x18x8xbf16> to vector<18x18x8xbf16>
    %28 = vector.extract_strided_slice %27 {offsets = [0, 0, 0], sizes = [16, 16, 8], strides = [1, 1, 1]} : vector<18x18x8xbf16> to vector<16x16x8xbf16>
    %29 = vector.shape_cast %28 : vector<16x16x8xbf16> to vector<256x8xbf16>
    %30 = vector.extract_strided_slice %27 {offsets = [0, 1, 0], sizes = [16, 16, 8], strides = [1, 1, 1]} : vector<18x18x8xbf16> to vector<16x16x8xbf16>
    %31 = vector.shape_cast %30 : vector<16x16x8xbf16> to vector<256x8xbf16>
    %32 = vector.extract_strided_slice %27 {offsets = [0, 2, 0], sizes = [16, 16, 8], strides = [1, 1, 1]} : vector<18x18x8xbf16> to vector<16x16x8xbf16>
    %33 = vector.shape_cast %32 : vector<16x16x8xbf16> to vector<256x8xbf16>
    %34 = vector.extract_strided_slice %27 {offsets = [1, 0, 0], sizes = [16, 16, 8], strides = [1, 1, 1]} : vector<18x18x8xbf16> to vector<16x16x8xbf16>
    %35 = vector.shape_cast %34 : vector<16x16x8xbf16> to vector<256x8xbf16>
    %36 = vector.extract_strided_slice %27 {offsets = [1, 1, 0], sizes = [16, 16, 8], strides = [1, 1, 1]} : vector<18x18x8xbf16> to vector<16x16x8xbf16>
    %37 = vector.shape_cast %36 : vector<16x16x8xbf16> to vector<256x8xbf16>
    %38 = vector.extract_strided_slice %27 {offsets = [1, 2, 0], sizes = [16, 16, 8], strides = [1, 1, 1]} : vector<18x18x8xbf16> to vector<16x16x8xbf16>
    %39 = vector.shape_cast %38 : vector<16x16x8xbf16> to vector<256x8xbf16>
    %40 = vector.extract_strided_slice %27 {offsets = [2, 0, 0], sizes = [16, 16, 8], strides = [1, 1, 1]} : vector<18x18x8xbf16> to vector<16x16x8xbf16>
    %41 = vector.shape_cast %40 : vector<16x16x8xbf16> to vector<256x8xbf16>
    %42 = vector.extract_strided_slice %27 {offsets = [2, 1, 0], sizes = [16, 16, 8], strides = [1, 1, 1]} : vector<18x18x8xbf16> to vector<16x16x8xbf16>
    %43 = vector.shape_cast %42 : vector<16x16x8xbf16> to vector<256x8xbf16>
    %44 = vector.extract_strided_slice %27 {offsets = [2, 2, 0], sizes = [16, 16, 8], strides = [1, 1, 1]} : vector<18x18x8xbf16> to vector<16x16x8xbf16>
    %45 = vector.shape_cast %44 : vector<16x16x8xbf16> to vector<256x8xbf16>
    %46 = tpu.concatenate %29, %31, %33, %35, %37, %39, %41, %43, %45 in 1 : vector<256x8xbf16>, vector<256x8xbf16>, vector<256x8xbf16>, vector<256x8xbf16>, vector<256x8xbf16>, vector<256x8xbf16>, vector<256x8xbf16>, vector<256x8xbf16>, vector<256x8xbf16> -> vector<256x72xbf16>
    %c0_11 = arith.constant 0 : index
    %c0_12 = arith.constant 0 : index
    %47 = vector.load %arg5[%c0_11, %c0_12] : memref<72x16xbf16, #tpu.memory_space<vmem>>, vector<72x16xbf16>
    %cst_13 = arith.constant dense<0.000000e+00> : vector<256x16xf32>
    %48 = tpu.matmul %46, %47, %cst_13 {dimension_numbers = #tpu.dot_dimension_numbers<[1], [0], [0], [1], [0, 0, 1, 1], [], []>} : vector<256x72xbf16>, vector<72x16xbf16>, vector<256x16xf32> -> vector<256x16xf32>
    %49 = vector.extract_strided_slice %25 {offsets = [0, 0], sizes = [256, 8], strides = [1, 1]} : vector<256x24xf32> to vector<256x8xf32>
    %50 = vector.extract_strided_slice %48 {offsets = [0, 0], sizes = [256, 8], strides = [1, 1]} : vector<256x16xf32> to vector<256x8xf32>
    %51 = arith.addf %49, %50 : vector<256x8xf32>
    %52 = arith.negf %51 : vector<256x8xf32>
    %53 = math.exp %52 : vector<256x8xf32>
    %cst_14 = arith.constant 1.000000e+00 : f32
    %54 = vector.broadcast %cst_14 : f32 to vector<256x8xf32>
    %55 = arith.addf %54, %53 : vector<256x8xf32>
    %56 = arith.divf %54, %55 : vector<256x8xf32>
    %57 = vector.extract_strided_slice %25 {offsets = [0, 8], sizes = [256, 8], strides = [1, 1]} : vector<256x24xf32> to vector<256x8xf32>
    %58 = vector.extract_strided_slice %48 {offsets = [0, 8], sizes = [256, 8], strides = [1, 1]} : vector<256x16xf32> to vector<256x8xf32>
    %59 = arith.addf %57, %58 : vector<256x8xf32>
    %60 = arith.negf %59 : vector<256x8xf32>
    %61 = math.exp %60 : vector<256x8xf32>
    %cst_15 = arith.constant 1.000000e+00 : f32
    %62 = vector.broadcast %cst_15 : f32 to vector<256x8xf32>
    %63 = arith.addf %62, %61 : vector<256x8xf32>
    %64 = arith.divf %62, %63 : vector<256x8xf32>
    %c0_16 = arith.constant 0 : index
    %c0_17 = arith.constant 0 : index
    %c0_18 = arith.constant 0 : index
    %65 = vector.load %arg3[%c0_16, %c0_17, %c0_18] : memref<1x256x8xf32, #tpu.memory_space<vmem>>, vector<1x256x8xf32>
    %66 = vector.shape_cast %65 : vector<1x256x8xf32> to vector<256x8xf32>
    %cst_19 = arith.constant 0.000000e+00 : f32
    %67 = vector.broadcast %cst_19 : f32 to vector<1x18x8xf32>
    %c0_20 = arith.constant 0 : index
    %c0_21 = arith.constant 0 : index
    %c0_22 = arith.constant 0 : index
    %68 = vector.load %arg9[%c0_20, %c0_21, %c0_22] : memref<18x18x8xf32, #tpu.memory_space<vmem>>, vector<1x18x8xf32>
    tpu.vector_store %arg9[%c0_20, %c0_21, %c0_22], %67 {strides = array<i32>} : memref<18x18x8xf32, #tpu.memory_space<vmem>>, vector<1x18x8xf32>,
    %cst_23 = arith.constant 0.000000e+00 : f32
    %69 = vector.broadcast %cst_23 : f32 to vector<1x18x8xf32>
    %c17 = arith.constant 17 : index
    %c0_24 = arith.constant 0 : index
    %c0_25 = arith.constant 0 : index
    %70 = vector.load %arg9[%c17, %c0_24, %c0_25] : memref<18x18x8xf32, #tpu.memory_space<vmem>>, vector<1x18x8xf32>
    tpu.vector_store %arg9[%c17, %c0_24, %c0_25], %69 {strides = array<i32>} : memref<18x18x8xf32, #tpu.memory_space<vmem>>, vector<1x18x8xf32>,
    %cst_26 = arith.constant 0.000000e+00 : f32
    %71 = vector.broadcast %cst_26 : f32 to vector<16x1x8xf32>
    %c1 = arith.constant 1 : index
    %c0_27 = arith.constant 0 : index
    %c0_28 = arith.constant 0 : index
    %72 = vector.load %arg9[%c1, %c0_27, %c0_28] : memref<18x18x8xf32, #tpu.memory_space<vmem>>, vector<16x1x8xf32>
    tpu.vector_store %arg9[%c1, %c0_27, %c0_28], %71 {strides = array<i32>} : memref<18x18x8xf32, #tpu.memory_space<vmem>>, vector<16x1x8xf32>,
    %cst_29 = arith.constant 0.000000e+00 : f32
    %73 = vector.broadcast %cst_29 : f32 to vector<16x1x8xf32>
    %c1_30 = arith.constant 1 : index
    %c17_31 = arith.constant 17 : index
    %c0_32 = arith.constant 0 : index
    %74 = vector.load %arg9[%c1_30, %c17_31, %c0_32] : memref<18x18x8xf32, #tpu.memory_space<vmem>>, vector<16x1x8xf32>
    tpu.vector_store %arg9[%c1_30, %c17_31, %c0_32], %73 {strides = array<i32>} : memref<18x18x8xf32, #tpu.memory_space<vmem>>, vector<16x1x8xf32>,
    %75 = arith.mulf %66, %64 : vector<256x8xf32>
    %76 = vector.shape_cast %75 : vector<256x8xf32> to vector<16x16x8xf32>
    %c1_33 = arith.constant 1 : index
    %c1_34 = arith.constant 1 : index
    %c0_35 = arith.constant 0 : index
    %77 = vector.load %arg9[%c1_33, %c1_34, %c0_35] : memref<18x18x8xf32, #tpu.memory_space<vmem>>, vector<16x16x8xf32>
    tpu.vector_store %arg9[%c1_33, %c1_34, %c0_35], %76 {strides = array<i32>} : memref<18x18x8xf32, #tpu.memory_space<vmem>>, vector<16x16x8xf32>,
    %c0_36 = arith.constant 0 : index
    %c0_37 = arith.constant 0 : index
    %c0_38 = arith.constant 0 : index
    %78 = vector.load %arg9[%c0_36, %c0_37, %c0_38] : memref<18x18x8xf32, #tpu.memory_space<vmem>>, vector<18x18x8xf32>
    %79 = vector.extract_strided_slice %78 {offsets = [0, 0, 0], sizes = [16, 16, 8], strides = [1, 1, 1]} : vector<18x18x8xf32> to vector<16x16x8xf32>
    %80 = vector.shape_cast %79 : vector<16x16x8xf32> to vector<256x8xf32>
    %81 = vector.extract_strided_slice %78 {offsets = [0, 1, 0], sizes = [16, 16, 8], strides = [1, 1, 1]} : vector<18x18x8xf32> to vector<16x16x8xf32>
    %82 = vector.shape_cast %81 : vector<16x16x8xf32> to vector<256x8xf32>
    %83 = vector.extract_strided_slice %78 {offsets = [0, 2, 0], sizes = [16, 16, 8], strides = [1, 1, 1]} : vector<18x18x8xf32> to vector<16x16x8xf32>
    %84 = vector.shape_cast %83 : vector<16x16x8xf32> to vector<256x8xf32>
    %85 = vector.extract_strided_slice %78 {offsets = [1, 0, 0], sizes = [16, 16, 8], strides = [1, 1, 1]} : vector<18x18x8xf32> to vector<16x16x8xf32>
    %86 = vector.shape_cast %85 : vector<16x16x8xf32> to vector<256x8xf32>
    %87 = vector.extract_strided_slice %78 {offsets = [1, 1, 0], sizes = [16, 16, 8], strides = [1, 1, 1]} : vector<18x18x8xf32> to vector<16x16x8xf32>
    %88 = vector.shape_cast %87 : vector<16x16x8xf32> to vector<256x8xf32>
    %89 = vector.extract_strided_slice %78 {offsets = [1, 2, 0], sizes = [16, 16, 8], strides = [1, 1, 1]} : vector<18x18x8xf32> to vector<16x16x8xf32>
    %90 = vector.shape_cast %89 : vector<16x16x8xf32> to vector<256x8xf32>
    %91 = vector.extract_strided_slice %78 {offsets = [2, 0, 0], sizes = [16, 16, 8], strides = [1, 1, 1]} : vector<18x18x8xf32> to vector<16x16x8xf32>
    %92 = vector.shape_cast %91 : vector<16x16x8xf32> to vector<256x8xf32>
    %93 = vector.extract_strided_slice %78 {offsets = [2, 1, 0], sizes = [16, 16, 8], strides = [1, 1, 1]} : vector<18x18x8xf32> to vector<16x16x8xf32>
    %94 = vector.shape_cast %93 : vector<16x16x8xf32> to vector<256x8xf32>
    %95 = vector.extract_strided_slice %78 {offsets = [2, 2, 0], sizes = [16, 16, 8], strides = [1, 1, 1]} : vector<18x18x8xf32> to vector<16x16x8xf32>
    %96 = vector.shape_cast %95 : vector<16x16x8xf32> to vector<256x8xf32>
    %97 = tpu.concatenate %80, %82, %84, %86, %88, %90, %92, %94, %96 in 1 : vector<256x8xf32>, vector<256x8xf32>, vector<256x8xf32>, vector<256x8xf32>, vector<256x8xf32>, vector<256x8xf32>, vector<256x8xf32>, vector<256x8xf32>, vector<256x8xf32> -> vector<256x72xf32>
    %98 = arith.truncf %97 : vector<256x72xf32> to vector<256x72xbf16>
    %c0_39 = arith.constant 0 : index
    %c0_40 = arith.constant 0 : index
    %99 = vector.load %arg6[%c0_39, %c0_40] : memref<72x8xbf16, #tpu.memory_space<vmem>>, vector<72x8xbf16>
    %cst_41 = arith.constant dense<0.000000e+00> : vector<256x8xf32>
    %100 = tpu.matmul %98, %99, %cst_41 {dimension_numbers = #tpu.dot_dimension_numbers<[1], [0], [0], [1], [0, 0, 1, 1], [], []>} : vector<256x72xbf16>, vector<72x8xbf16>, vector<256x8xf32> -> vector<256x8xf32>
    %101 = vector.extract_strided_slice %25 {offsets = [0, 16], sizes = [256, 8], strides = [1, 1]} : vector<256x24xf32> to vector<256x8xf32>
    %102 = arith.addf %101, %100 : vector<256x8xf32>
    %103 = math.tanh %102 : vector<256x8xf32>
    %cst_42 = arith.constant 1.000000e+00 : f32
    %104 = vector.broadcast %cst_42 : f32 to vector<256x8xf32>
    %105 = arith.subf %104, %56 : vector<256x8xf32>
    %106 = arith.mulf %66, %105 : vector<256x8xf32>
    %107 = arith.mulf %103, %56 : vector<256x8xf32>
    %108 = arith.addf %106, %107 : vector<256x8xf32>
    %c0_43 = arith.constant 0 : index
    %c0_44 = arith.constant 0 : index
    %c0_45 = arith.constant 0 : index
    %109 = vector.load %arg8[%c0_43, %c0_44, %c0_45] : memref<1x256x8xf32, #tpu.memory_space<vmem>>, vector<1x256x8xf32>
    %110 = vector.shape_cast %109 : vector<1x256x8xf32> to vector<256x8xf32>
    %111 = vector.shape_cast %108 : vector<256x8xf32> to vector<1x256x8xf32>
    tpu.vector_store %arg8[%c0_43, %c0_44, %c0_45], %111 {strides = array<i32>} : memref<1x256x8xf32, #tpu.memory_space<vmem>>, vector<1x256x8xf32>,
    return
  }
  func.func @transform_0(%arg0: i32) -> (i32, i32, i32, i32) {
    %c0_i32 = arith.constant 0 : i32
    %c0_i32_0 = arith.constant 0 : i32
    %c0_i32_1 = arith.constant 0 : i32
    %c0_i32_2 = arith.constant 0 : i32
    return %arg0, %c0_i32, %c0_i32_0, %c0_i32_1 : i32, i32, i32, i32
  }
  func.func @transform_1(%arg0: i32) -> (i32, i32, i32, i32) {
    %c0_i32 = arith.constant 0 : i32
    %c0_i32_0 = arith.constant 0 : i32
    %c0_i32_1 = arith.constant 0 : i32
    %c0_i32_2 = arith.constant 0 : i32
    return %arg0, %c0_i32, %c0_i32_0, %c0_i32_1 : i32, i32, i32, i32
  }
  func.func @transform_2(%arg0: i32) -> (i32, i32, i32) {
    %c0_i32 = arith.constant 0 : i32
    %c0_i32_0 = arith.constant 0 : i32
    %c0_i32_1 = arith.constant 0 : i32
    return %arg0, %c0_i32, %c0_i32_0 : i32, i32, i32
  }
  func.func @transform_3(%arg0: i32) -> (i32, i32) {
    %c0_i32 = arith.constant 0 : i32
    %c0_i32_0 = arith.constant 0 : i32
    %c0_i32_1 = arith.constant 0 : i32
    return %c0_i32, %c0_i32_0 : i32, i32
  }
  func.func @transform_4(%arg0: i32) -> (i32, i32) {
    %c0_i32 = arith.constant 0 : i32
    %c0_i32_0 = arith.constant 0 : i32
    %c0_i32_1 = arith.constant 0 : i32
    return %c0_i32, %c0_i32_0 : i32, i32
  }
  func.func @transform_5(%arg0: i32) -> (i32, i32) {
    %c0_i32 = arith.constant 0 : i32
    %c0_i32_0 = arith.constant 0 : i32
    %c0_i32_1 = arith.constant 0 : i32
    return %c0_i32, %c0_i32_0 : i32, i32
  }
  func.func @transform_6(%arg0: i32) -> (i32, i32) {
    %c0_i32 = arith.constant 0 : i32
    %c0_i32_0 = arith.constant 0 : i32
    %c0_i32_1 = arith.constant 0 : i32
    return %c0_i32, %c0_i32_0 : i32, i32
  }
  func.func @transform_7(%arg0: i32) -> (i32, i32, i32) {
    %c0_i32 = arith.constant 0 : i32
    %c0_i32_0 = arith.constant 0 : i32
    %c0_i32_1 = arith.constant 0 : i32
    return %arg0, %c0_i32, %c0_i32_0 : i32, i32, i32
  }
}

</mosaic_0001>

<llo_original>
// kernel: tpu_custom_call.1
$region0: #{tpu_custom_call.1}
  #allocation0 [shape = 'u32[]', space=smem, size = 0x4, offset = 0x4, fixed_abs, tag = 'smem constant byte address 0x4 - core index']
  #allocation1 [shape = 'u32[144,128]{1,0:T(1,128)}', space=vmem, size = 0x12000, scoped, tag = 'internal scratch']
  #allocation2 [shape = 'f32[18,18,8]{2,1,0:T(8,128)}', space=vmem, size = 0x36000, scoped, tag = 'scratch operand']
  %s0 = inlined_call_operand.vmem [shape: bf16[2,18,18,4], index: 0, kind: input, shape index: {}]
  %s1 = inlined_call_operand.vmem [shape: bf16[2,18,18,8], index: 1, kind: input, shape index: {}]
  %s2 = inlined_call_operand.vmem [shape: f32[2,256,8], index: 2, kind: input, shape index: {}]
  %s3 = inlined_call_operand.vmem [shape: bf16[36,24], index: 3, kind: input, shape index: {}]
  %s4 = inlined_call_operand.vmem [shape: bf16[72,16], index: 4, kind: input, shape index: {}]
  %s5 = inlined_call_operand.vmem [shape: bf16[72,8], index: 5, kind: input, shape index: {}]
  %s6 = inlined_call_operand.vmem [shape: f32[1,24], index: 6, kind: input, shape index: {}]
  %s7 = inlined_call_operand.vmem [shape: f32[2,256,8], index: 7, kind: output, shape index: {}]
  %s8 = sld [smem:[#allocation0]]
  $region61: #{tpu_custom_call.1} parent=0
    _
  %s10 = ssub.s32 1, %s8
  %s11 = scalar_select 0, %s10, %s8
  loop: start=0, step=1, limit=4
  $region2: #{tpu_custom_call.1} parent=0 // loop_pre_header
    _
  $region3: #{tpu_custom_call.1} parent=0 // loop_header
    %s13 = sphi 0, %s17
    %p14 = scmp.ge.s32.totalorder %s13, 4
    %s23 = sphi 0, %s25
    %s26 = sphi 0, %s23
    %s27 = sphi 0, %s26
    %s43 = sphi 0, %s27
    %s49 = sphi 0, %s51
    %s52 = sphi 0, %s49
    %s53 = sphi 0, %s52
    %s69 = sphi 0, %s53
    %s75 = sphi 0, %s77
    %s78 = sphi 0, %s75
    %s79 = sphi 0, %s78
    %s95 = sphi 0, %s79
    %s99 = sphi 0, %s99
    %s101 = sphi 0, %s99
    %s102 = sphi 0, %s101
    %s116 = sphi 0, %s102
    %s120 = sphi 0, %s120
    %s122 = sphi 0, %s120
    %s123 = sphi 0, %s122
    %s137 = sphi 0, %s123
    %s141 = sphi 0, %s141
    %s143 = sphi 0, %s141
    %s144 = sphi 0, %s143
    %s158 = sphi 0, %s144
    %s162 = sphi 0, %s162
    %s164 = sphi 0, %s162
    %s165 = sphi 0, %s164
    %s179 = sphi 0, %s165
    %s185 = sphi 0, %s187
    %s188 = sphi 0, %s185
    %s189 = sphi 0, %s188
    %s205 = sphi 0, %s189
  $region4: #{tpu_custom_call.1} parent=0 // loop_header_branch
    %16 = sbr.rel (%p14) target = $region8
  $region5: #{tpu_custom_call.1} parent=0 // loop_body
    %s18 = ssub.s32 %s13, 1
    %s19 = ssub.s32 %s13, 2
    %s20 = sadd.s32 %s13, 1
    %s21 = ssub.s32 %s13, %s20
    %p22 = scmp.eq.s32.totalorder %s21, 0
    %s24 = sadd.s32 %s23, 1
    %s25 = scalar_select %p22, %s23, %s24
    %p28 = pneg %p22
    %p29 = scmp.eq.s32.totalorder %s13, 1
    %p30 = por %p28, %p29
    %p31 = scmp.ne.s32.totalorder %s23, %s26
    %p32 = scmp.eq.s32.totalorder %s13, 0
    %p33 = por %p31, %p32
    %p34 = scmp.ne.s32.totalorder %s23, %s26
    %p35 = scmp.eq.s32.totalorder %s18, 1
    %p36 = por %p34, %p35
    %p37 = scmp.ne.s32.totalorder %s26, %s27
    %p38 = scmp.eq.s32.totalorder %s18, 0
    %p39 = por %p37, %p38
    %p40 = scmp.ne.s32.totalorder %s26, %s27
    %p41 = scmp.eq.s32.totalorder %s19, 1
    %p42 = por %p40, %p41
    %p44 = scmp.ne.s32.totalorder %s27, %s43
    %p45 = scmp.eq.s32.totalorder %s19, 0
    %p46 = por %p44, %p45
    %s47 = ssub.s32 %s13, %s20
    %p48 = scmp.eq.s32.totalorder %s47, 0
    %s50 = sadd.s32 %s49, 1
    %s51 = scalar_select %p48, %s49, %s50
    %p54 = pneg %p48
    %p55 = scmp.eq.s32.totalorder %s13, 1
    %p56 = por %p54, %p55
    %p57 = scmp.ne.s32.totalorder %s49, %s52
    %p58 = scmp.eq.s32.totalorder %s13, 0
    %p59 = por %p57, %p58
    %p60 = scmp.ne.s32.totalorder %s49, %s52
    %p61 = scmp.eq.s32.totalorder %s18, 1
    %p62 = por %p60, %p61
    %p63 = scmp.ne.s32.totalorder %s52, %s53
    %p64 = scmp.eq.s32.totalorder %s18, 0
    %p65 = por %p63, %p64
    %p66 = scmp.ne.s32.totalorder %s52, %s53
    %p67 = scmp.eq.s32.totalorder %s19, 1
    %p68 = por %p66, %p67
    %p70 = scmp.ne.s32.totalorder %s53, %s69
    %p71 = scmp.eq.s32.totalorder %s19, 0
    %p72 = por %p70, %p71
    %s73 = ssub.s32 %s13, %s20
    %p74 = scmp.eq.s32.totalorder %s73, 0
    %s76 = sadd.s32 %s75, 1
    %s77 = scalar_select %p74, %s75, %s76
    %p80 = pneg %p74
    %p81 = scmp.eq.s32.totalorder %s13, 1
    %p82 = por %p80, %p81
    %p83 = scmp.ne.s32.totalorder %s75, %s78
    %p84 = scmp.eq.s32.totalorder %s13, 0
    %p85 = por %p83, %p84
    %p86 = scmp.ne.s32.totalorder %s75, %s78
    %p87 = scmp.eq.s32.totalorder %s18, 1
    %p88 = por %p86, %p87
    %p89 = scmp.ne.s32.totalorder %s78, %s79
    %p90 = scmp.eq.s32.totalorder %s18, 0
    %p91 = por %p89, %p90
    %p92 = scmp.ne.s32.totalorder %s78, %s79
    %p93 = scmp.eq.s32.totalorder %s19, 1
    %p94 = por %p92, %p93
    %p96 = scmp.ne.s32.totalorder %s79, %s95
    %p97 = scmp.eq.s32.totalorder %s19, 0
    %p98 = por %p96, %p97
    %s100 = sadd.s32 %s99, 1
    %p103 = scmp.eq.s32.totalorder %s13, 1
    %p104 = scmp.ne.s32.totalorder %s99, %s101
    %p105 = scmp.eq.s32.totalorder %s13, 0
    %p106 = por %p104, %p105
    %p107 = scmp.ne.s32.totalorder %s99, %s101
    %p108 = scmp.eq.s32.totalorder %s18, 1
    %p109 = por %p107, %p108
    %p110 = scmp.ne.s32.totalorder %s101, %s102
    %p111 = scmp.eq.s32.totalorder %s18, 0
    %p112 = por %p110, %p111
    %p113 = scmp.ne.s32.totalorder %s101, %s102
    %p114 = scmp.eq.s32.totalorder %s19, 1
    %p115 = por %p113, %p114
    %p117 = scmp.ne.s32.totalorder %s102, %s116
    %p118 = scmp.eq.s32.totalorder %s19, 0
    %p119 = por %p117, %p118
    %s121 = sadd.s32 %s120, 1
    %p124 = scmp.eq.s32.totalorder %s13, 1
    %p125 = scmp.ne.s32.totalorder %s120, %s122
    %p126 = scmp.eq.s32.totalorder %s13, 0
    %p127 = por %p125, %p126
    %p128 = scmp.ne.s32.totalorder %s120, %s122
    %p129 = scmp.eq.s32.totalorder %s18, 1
    %p130 = por %p128, %p129
    %p131 = scmp.ne.s32.totalorder %s122, %s123
    %p132 = scmp.eq.s32.totalorder %s18, 0
    %p133 = por %p131, %p132
    %p134 = scmp.ne.s32.totalorder %s122, %s123
    %p135 = scmp.eq.s32.totalorder %s19, 1
    %p136 = por %p134, %p135
    %p138 = scmp.ne.s32.totalorder %s123, %s137
    %p139 = scmp.eq.s32.totalorder %s19, 0
    %p140 = por %p138, %p139
    %s142 = sadd.s32 %s141, 1
    %p145 = scmp.eq.s32.totalorder %s13, 1
    %p146 = scmp.ne.s32.totalorder %s141, %s143
    %p147 = scmp.eq.s32.totalorder %s13, 0
    %p148 = por %p146, %p147
    %p149 = scmp.ne.s32.totalorder %s141, %s143
    %p150 = scmp.eq.s32.totalorder %s18, 1
    %p151 = por %p149, %p150
    %p152 = scmp.ne.s32.totalorder %s143, %s144
    %p153 = scmp.eq.s32.totalorder %s18, 0
    %p154 = por %p152, %p153
    %p155 = scmp.ne.s32.totalorder %s143, %s144
    %p156 = scmp.eq.s32.totalorder %s19, 1
    %p157 = por %p155, %p156
    %p159 = scmp.ne.s32.totalorder %s144, %s158
    %p160 = scmp.eq.s32.totalorder %s19, 0
    %p161 = por %p159, %p160
    %s163 = sadd.s32 %s162, 1
    %p166 = scmp.eq.s32.totalorder %s13, 1
    %p167 = scmp.ne.s32.totalorder %s162, %s164
    %p168 = scmp.eq.s32.totalorder %s13, 0
    %p169 = por %p167, %p168
    %p170 = scmp.ne.s32.totalorder %s162, %s164
    %p171 = scmp.eq.s32.totalorder %s18, 1
    %p172 = por %p170, %p171
    %p173 = scmp.ne.s32.totalorder %s164, %s165
    %p174 = scmp.eq.s32.totalorder %s18, 0
    %p175 = por %p173, %p174
    %p176 = scmp.ne.s32.totalorder %s164, %s165
    %p177 = scmp.eq.s32.totalorder %s19, 1
    %p178 = por %p176, %p177
    %p180 = scmp.ne.s32.totalorder %s165, %s179
    %p181 = scmp.eq.s32.totalorder %s19, 0
    %p182 = por %p180, %p181
    %s183 = ssub.s32 %s13, %s20
    %p184 = scmp.eq.s32.totalorder %s183, 0
    %s186 = sadd.s32 %s185, 1
    %s187 = scalar_select %p184, %s185, %s186
    %p190 = pneg %p184
    %p191 = scmp.eq.s32.totalorder %s13, 1
    %p192 = por %p190, %p191
    %p193 = scmp.ne.s32.totalorder %s185, %s188
    %p194 = scmp.eq.s32.totalorder %s13, 0
    %p195 = por %p193, %p194
    %p196 = scmp.ne.s32.totalorder %s185, %s188
    %p197 = scmp.eq.s32.totalorder %s18, 1
    %p198 = por %p196, %p197
    %p199 = scmp.ne.s32.totalorder %s188, %s189
    %p200 = scmp.eq.s32.totalorder %s18, 0
    %p201 = por %p199, %p200
    %p202 = scmp.ne.s32.totalorder %s188, %s189
    %p203 = scmp.eq.s32.totalorder %s19, 1
    %p204 = por %p202, %p203
    %p206 = scmp.ne.s32.totalorder %s189, %s205
    %p207 = scmp.eq.s32.totalorder %s19, 0
    %p208 = por %p206, %p207
    %p209 = scmp.le.s32.totalorder 1, %s13
    %p210 = scmp.lt.s32.totalorder %s13, 3
    %p211 = pnand %p209, %p210
    %p212 = pneg %p211
    // Predicated region
    $region9: #{tpu_custom_call.1} parent=5 // pred_check
      _
    $region10: #{tpu_custom_call.1} parent=5 // pred_check_branch
      %214 = sbr.rel (%p211) target = $region12
    $region11: #{tpu_custom_call.1} parent=5 // pred_region
      %s215 = ssub.s32 %s13, 1
      // Predicated region
      $region13: #{tpu_custom_call.1} parent=11 // pred_check
        %p216 = pneg %p112
      $region14: #{tpu_custom_call.1} parent=11 // pred_check_branch
        %218 = sbr.rel (%p216) target = $region16
      $region15: #{tpu_custom_call.1} parent=11 // pred_region
        _
      $region16: #{tpu_custom_call.1} parent=11 // pred_fallthru
        _
      // Predicated region
      $region17: #{tpu_custom_call.1} parent=11 // pred_check
        %p219 = pneg %p133
      $region18: #{tpu_custom_call.1} parent=11 // pred_check_branch
        %221 = sbr.rel (%p219) target = $region20
      $region19: #{tpu_custom_call.1} parent=11 // pred_region
        _
      $region20: #{tpu_custom_call.1} parent=11 // pred_fallthru
        _
      // Predicated region
      $region21: #{tpu_custom_call.1} parent=11 // pred_check
        %p222 = pneg %p154
      $region22: #{tpu_custom_call.1} parent=11 // pred_check_branch
        %224 = sbr.rel (%p222) target = $region24
      $region23: #{tpu_custom_call.1} parent=11 // pred_region
        _
      $region24: #{tpu_custom_call.1} parent=11 // pred_fallthru
        _
      // Predicated region
      $region25: #{tpu_custom_call.1} parent=11 // pred_check
        %p225 = pneg %p175
      $region26: #{tpu_custom_call.1} parent=11 // pred_check_branch
        %227 = sbr.rel (%p225) target = $region28
      $region27: #{tpu_custom_call.1} parent=11 // pred_region
        _
      $region28: #{tpu_custom_call.1} parent=11 // pred_fallthru
        _
    $region12: #{tpu_custom_call.1} parent=5 // pred_fallthru
      _
    %p228 = scmp.lt.s32.totalorder %s13, 2
    // Predicated region
    $region29: #{tpu_custom_call.1} parent=5 // pred_check
      %p229 = pneg %p228
    $region30: #{tpu_custom_call.1} parent=5 // pred_check_branch
      %231 = sbr.rel (%p229) target = $region32
    $region31: #{tpu_custom_call.1} parent=5 // pred_region
      // Predicated region
      $region33: #{tpu_custom_call.1} parent=31 // pred_check
        %p232 = pneg %p33
      $region34: #{tpu_custom_call.1} parent=31 // pred_check_branch
        %234 = sbr.rel (%p232) target = $region36
      $region35: #{tpu_custom_call.1} parent=31 // pred_region
        %p235 = scmp.lt.s32.totalorder %s13, 1
        %s236 = scalar_select %p235, %s13, 1
        %s237 = smul.addr %s236, 54
        %s238 = smul.addr %s237, 4
        %s239 = scalar_lea.vmem %s0, %s238
      $region36: #{tpu_custom_call.1} parent=31 // pred_fallthru
        _
      // Predicated region
      $region37: #{tpu_custom_call.1} parent=31 // pred_check
        %p240 = pneg %p59
      $region38: #{tpu_custom_call.1} parent=31 // pred_check_branch
        %242 = sbr.rel (%p240) target = $region40
      $region39: #{tpu_custom_call.1} parent=31 // pred_region
        %p243 = scmp.lt.s32.totalorder %s13, 1
        %s244 = scalar_select %p243, %s13, 1
        %s245 = smul.addr %s244, 54
        %s246 = smul.addr %s245, 4
        %s247 = scalar_lea.vmem %s1, %s246
      $region40: #{tpu_custom_call.1} parent=31 // pred_fallthru
        _
      // Predicated region
      $region41: #{tpu_custom_call.1} parent=31 // pred_check
        %p248 = pneg %p85
      $region42: #{tpu_custom_call.1} parent=31 // pred_check_branch
        %250 = sbr.rel (%p248) target = $region44
      $region43: #{tpu_custom_call.1} parent=31 // pred_region
        %p251 = scmp.lt.s32.totalorder %s13, 1
        %s252 = scalar_select %p251, %s13, 1
        %s253 = smul.addr %s252, 32
        %s254 = smul.addr %s253, 8
        %s255 = scalar_lea.vmem %s2, %s254
      $region44: #{tpu_custom_call.1} parent=31 // pred_fallthru
        _
    $region32: #{tpu_custom_call.1} parent=5 // pred_fallthru
      _
    %p256 = scmp.le.s32.totalorder 1, %s13
    %p257 = scmp.lt.s32.totalorder %s13, 3
    %p258 = pnand %p256, %p257
    %p259 = pneg %p258
    // Predicated region
    $region45: #{tpu_custom_call.1} parent=5 // pred_check
      _
    $region46: #{tpu_custom_call.1} parent=5 // pred_check_branch
      %261 = sbr.rel (%p258) target = $region48
    $region47: #{tpu_custom_call.1} parent=5 // pred_region
      %s262 = ssub.s32 %s13, 1
      %p263 = scmp.lt.s32.totalorder %s18, 1
      %s264 = scalar_select %p263, %s18, 1
      %s265 = smul.addr %s264, 54
      %s266 = smul.addr %s265, 4
      %s267 = scalar_lea.vmem %s0, %s266
      %p268 = pneg %p39
      %p269 = pneg %p36
      %p270 = scmp.lt.s32.totalorder %s18, 1
      %s271 = scalar_select %p270, %s18, 1
      %s272 = smul.addr %s271, 54
      %s273 = smul.addr %s272, 4
      %s274 = scalar_lea.vmem %s1, %s273
      %p275 = pneg %p65
      %p276 = pneg %p62
      %p277 = scmp.lt.s32.totalorder %s18, 1
      %s278 = scalar_select %p277, %s18, 1
      %s279 = smul.addr %s278, 32
      %s280 = smul.addr %s279, 8
      %s281 = scalar_lea.vmem %s2, %s280
      %p282 = pneg %p91
      %p283 = pneg %p88
      %p284 = pneg %p112
      %p285 = pneg %p109
      %p286 = pneg %p133
      %p287 = pneg %p130
      %p288 = pneg %p154
      %p289 = pneg %p151
      %p290 = pneg %p175
      %p291 = pneg %p172
      %p292 = pneg %p201
      %p293 = pneg %p198
      %p294 = scmp.lt.s32.totalorder %s18, 1
      %s295 = scalar_select %p294, %s18, 1
      %s296 = smul.addr %s295, 32
      %s297 = smul.addr %s296, 8
      %s298 = scalar_lea.vmem %s7, %s297
      %p299 = scmp.lt.s32.totalorder %s18, 1
      %s300 = scalar_select %p299, %s18, 1
      %s301 = smul.addr %s300, 54
      %s302 = smul.addr %s301, 4
      %s303 = scalar_lea.vmem %s0, %s302
      %p304 = scmp.lt.s32.totalorder %s18, 1
      %s305 = scalar_select %p304, %s18, 1
      %s306 = smul.addr %s305, 54
      %s307 = smul.addr %s306, 4
      %s308 = scalar_lea.vmem %s1, %s307
      %p309 = scmp.lt.s32.totalorder %s18, 1
      %s310 = scalar_select %p309, %s18, 1
      %s311 = smul.addr %s310, 32
      %s312 = smul.addr %s311, 8
      %s313 = scalar_lea.vmem %s2, %s312
      %p314 = scmp.lt.s32.totalorder %s18, 1
      %s315 = scalar_select %p314, %s18, 1
      %s316 = smul.addr %s315, 32
      %s317 = smul.addr %s316, 8
      %s318 = scalar_lea.vmem %s7, %s317
      %v320 = vld [vmem:[%s303] sm:$0xf]
      %v321 = vld [vmem:[%s303 + $0x4] sm:$0xf]
      %v322 = vld [vmem:[%s303 + $0x8] sm:$0x1]
      %v323 = vld [vmem:[%s303 + $0xc] sm:$0xf]
      %v324 = vld [vmem:[%s303 + $0x10] sm:$0xf]
      %v325 = vld [vmem:[%s303 + $0x14] sm:$0x1]
      %v326 = vld [vmem:[%s303 + $0x18] sm:$0xf]
      %v327 = vld [vmem:[%s303 + $0x1c] sm:$0xf]
      %v328 = vld [vmem:[%s303 + $0x20] sm:$0x1]
      %v329 = vld [vmem:[%s303 + $0x24] sm:$0xf]
      %v330 = vld [vmem:[%s303 + $0x28] sm:$0xf]
      %v331 = vld [vmem:[%s303 + $0x2c] sm:$0x1]
      %v332 = vld [vmem:[%s303 + $0x30] sm:$0xf]
      %v333 = vld [vmem:[%s303 + $0x34] sm:$0xf]
      %v334 = vld [vmem:[%s303 + $0x38] sm:$0x1]
      %v335 = vld [vmem:[%s303 + $0x3c] sm:$0xf]
      %v336 = vld [vmem:[%s303 + $0x40] sm:$0xf]
      %v337 = vld [vmem:[%s303 + $0x44] sm:$0x1]
      %v338 = vld [vmem:[%s303 + $0x48] sm:$0xf]
      %v339 = vld [vmem:[%s303 + $0x4c] sm:$0xf]
      %v340 = vld [vmem:[%s303 + $0x50] sm:$0x1]
      %v341 = vld [vmem:[%s303 + $0x54] sm:$0xf]
      %v342 = vld [vmem:[%s303 + $0x58] sm:$0xf]
      %v343 = vld [vmem:[%s303 + $0x5c] sm:$0x1]
      %v344 = vld [vmem:[%s303 + $0x60] sm:$0xf]
      %v345 = vld [vmem:[%s303 + $0x64] sm:$0xf]
      %v346 = vld [vmem:[%s303 + $0x68] sm:$0x1]
      %v347 = vld [vmem:[%s303 + $0x6c] sm:$0xf]
      %v348 = vld [vmem:[%s303 + $0x70] sm:$0xf]
      %v349 = vld [vmem:[%s303 + $0x74] sm:$0x1]
      %v350 = vld [vmem:[%s303 + $0x78] sm:$0xf]
      %v351 = vld [vmem:[%s303 + $0x7c] sm:$0xf]
      %v352 = vld [vmem:[%s303 + $0x80] sm:$0x1]
      %v353 = vld [vmem:[%s303 + $0x84] sm:$0xf]
      %v354 = vld [vmem:[%s303 + $0x88] sm:$0xf]
      %v355 = vld [vmem:[%s303 + $0x8c] sm:$0x1]
      %v356 = vld [vmem:[%s303 + $0x90] sm:$0xf]
      %v357 = vld [vmem:[%s303 + $0x94] sm:$0xf]
      %v358 = vld [vmem:[%s303 + $0x98] sm:$0x1]
      %v359 = vld [vmem:[%s303 + $0x9c] sm:$0xf]
      %v360 = vld [vmem:[%s303 + $0xa0] sm:$0xf]
      %v361 = vld [vmem:[%s303 + $0xa4] sm:$0x1]
      %v362 = vld [vmem:[%s303 + $0xa8] sm:$0xf]
      %v363 = vld [vmem:[%s303 + $0xac] sm:$0xf]
      %v364 = vld [vmem:[%s303 + $0xb0] sm:$0x1]
      %v365 = vld [vmem:[%s303 + $0xb4] sm:$0xf]
      %v366 = vld [vmem:[%s303 + $0xb8] sm:$0xf]
      %v367 = vld [vmem:[%s303 + $0xbc] sm:$0x1]
      %v368 = vld [vmem:[%s303 + $0xc0] sm:$0xf]
      %v369 = vld [vmem:[%s303 + $0xc4] sm:$0xf]
      %v370 = vld [vmem:[%s303 + $0xc8] sm:$0x1]
      %v371 = vld [vmem:[%s303 + $0xcc] sm:$0xf]
      %v372 = vld [vmem:[%s303 + $0xd0] sm:$0xf]
      %v373 = vld [vmem:[%s303 + $0xd4] sm:$0x1]
      %vm374 = vsmask.f32 3328
      %vm375 = vsmask.f32 7440
      %vm376 = vmor %vm374, %vm375
      %v378 = vshrl.u32 %v320, 16
      %v380 = vrot.slane %v378, 4
      %v381 = vshll.u32 %v320, 16
      %v383 = vrot.slane %v381, 5
      %v384 = vor.u32 %v380, %v383
      %v385 = vrot.slane %v384, 4
      %v387 = vshll.u32 %v321, 16
      %v389 = vrot.slane %v387, 5
      %v390 = vsel %vm376, %v385, %v389
      %v391 = vshrl.u32 %v321, 16
      %v393 = vrot.slane %v391, 4
      %v394 = vor.u32 %v393, %v389
      %v395 = vrot.slane %v394, 4
      %v397 = vshll.u32 %v322, 16
      %v399 = vrot.slane %v397, 5
      %v400 = vsel %vm376, %v395, %v399
      %v402 = vshrl.u32 %v323, 16
      %v404 = vrot.slane %v402, 4
      %v405 = vshll.u32 %v323, 16
      %v407 = vrot.slane %v405, 5
      %v408 = vor.u32 %v404, %v407
      %v409 = vrot.slane %v408, 4
      %v411 = vshll.u32 %v324, 16
      %v413 = vrot.slane %v411, 5
      %v414 = vsel %vm376, %v409, %v413
      %v415 = vshrl.u32 %v324, 16
      %v417 = vrot.slane %v415, 4
      %v418 = vor.u32 %v417, %v413
      %v419 = vrot.slane %v418, 4
      %v421 = vshll.u32 %v325, 16
      %v423 = vrot.slane %v421, 5
      %v424 = vsel %vm376, %v419, %v423
      %v426 = vshrl.u32 %v326, 16
      %v428 = vrot.slane %v426, 4
      %v429 = vshll.u32 %v326, 16
      %v431 = vrot.slane %v429, 5
      %v432 = vor.u32 %v428, %v431
      %v433 = vrot.slane %v432, 4
      %v435 = vshll.u32 %v327, 16
      %v437 = vrot.slane %v435, 5
      %v438 = vsel %vm376, %v433, %v437
      %v439 = vshrl.u32 %v327, 16
      %v441 = vrot.slane %v439, 4
      %v442 = vor.u32 %v441, %v437
      %v443 = vrot.slane %v442, 4
      %v445 = vshll.u32 %v328, 16
      %v447 = vrot.slane %v445, 5
      %v448 = vsel %vm376, %v443, %v447
      %v450 = vshrl.u32 %v329, 16
      %v452 = vrot.slane %v450, 4
      %v453 = vshll.u32 %v329, 16
      %v455 = vrot.slane %v453, 5
      %v456 = vor.u32 %v452, %v455
      %v457 = vrot.slane %v456, 4
      %v459 = vshll.u32 %v330, 16
      %v461 = vrot.slane %v459, 5
      %v462 = vsel %vm376, %v457, %v461
      %v463 = vshrl.u32 %v330, 16
      %v465 = vrot.slane %v463, 4
      %v466 = vor.u32 %v465, %v461
      %v467 = vrot.slane %v466, 4
      %v469 = vshll.u32 %v331, 16
      %v471 = vrot.slane %v469, 5
      %v472 = vsel %vm376, %v467, %v471
      %v474 = vshrl.u32 %v332, 16
      %v476 = vrot.slane %v474, 4
      %v477 = vshll.u32 %v332, 16
      %v479 = vrot.slane %v477, 5
      %v480 = vor.u32 %v476, %v479
      %v481 = vrot.slane %v480, 4
      %v483 = vshll.u32 %v333, 16
      %v485 = vrot.slane %v483, 5
      %v486 = vsel %vm376, %v481, %v485
      %v487 = vshrl.u32 %v333, 16
      %v489 = vrot.slane %v487, 4
      %v490 = vor.u32 %v489, %v485
      %v491 = vrot.slane %v490, 4
      %v493 = vshll.u32 %v334, 16
      %v495 = vrot.slane %v493, 5
      %v496 = vsel %vm376, %v491, %v495
      %v498 = vshrl.u32 %v335, 16
      %v500 = vrot.slane %v498, 4
      %v501 = vshll.u32 %v335, 16
      %v503 = vrot.slane %v501, 5
      %v504 = vor.u32 %v500, %v503
      %v505 = vrot.slane %v504, 4
      %v507 = vshll.u32 %v336, 16
      %v509 = vrot.slane %v507, 5
      %v510 = vsel %vm376, %v505, %v509
      %v511 = vshrl.u32 %v336, 16
      %v513 = vrot.slane %v511, 4
      %v514 = vor.u32 %v513, %v509
      %v515 = vrot.slane %v514, 4
      %v517 = vshll.u32 %v337, 16
      %v519 = vrot.slane %v517, 5
      %v520 = vsel %vm376, %v515, %v519
      %v522 = vshrl.u32 %v338, 16
      %v524 = vrot.slane %v522, 4
      %v525 = vshll.u32 %v338, 16
      %v527 = vrot.slane %v525, 5
      %v528 = vor.u32 %v524, %v527
      %v529 = vrot.slane %v528, 4
      %v531 = vshll.u32 %v339, 16
      %v533 = vrot.slane %v531, 5
      %v534 = vsel %vm376, %v529, %v533
      %v535 = vshrl.u32 %v339, 16
      %v537 = vrot.slane %v535, 4
      %v538 = vor.u32 %v537, %v533
      %v539 = vrot.slane %v538, 4
      %v541 = vshll.u32 %v340, 16
      %v543 = vrot.slane %v541, 5
      %v544 = vsel %vm376, %v539, %v543
      %v546 = vshrl.u32 %v341, 16
      %v548 = vrot.slane %v546, 4
      %v549 = vshll.u32 %v341, 16
      %v551 = vrot.slane %v549, 5
      %v552 = vor.u32 %v548, %v551
      %v553 = vrot.slane %v552, 4
      %v555 = vshll.u32 %v342, 16
      %v557 = vrot.slane %v555, 5
      %v558 = vsel %vm376, %v553, %v557
      %v559 = vshrl.u32 %v342, 16
      %v561 = vrot.slane %v559, 4
      %v562 = vor.u32 %v561, %v557
      %v563 = vrot.slane %v562, 4
      %v565 = vshll.u32 %v343, 16
      %v567 = vrot.slane %v565, 5
      %v568 = vsel %vm376, %v563, %v567
      %v570 = vshrl.u32 %v344, 16
      %v572 = vrot.slane %v570, 4
      %v573 = vshll.u32 %v344, 16
      %v575 = vrot.slane %v573, 5
      %v576 = vor.u32 %v572, %v575
      %v577 = vrot.slane %v576, 4
      %v579 = vshll.u32 %v345, 16
      %v581 = vrot.slane %v579, 5
      %v582 = vsel %vm376, %v577, %v581
      %v583 = vshrl.u32 %v345, 16
      %v585 = vrot.slane %v583, 4
      %v586 = vor.u32 %v585, %v581
      %v587 = vrot.slane %v586, 4
      %v589 = vshll.u32 %v346, 16
      %v591 = vrot.slane %v589, 5
      %v592 = vsel %vm376, %v587, %v591
      %v594 = vshrl.u32 %v347, 16
      %v596 = vrot.slane %v594, 4
      %v597 = vshll.u32 %v347, 16
      %v599 = vrot.slane %v597, 5
      %v600 = vor.u32 %v596, %v599
      %v601 = vrot.slane %v600, 4
      %v603 = vshll.u32 %v348, 16
      %v605 = vrot.slane %v603, 5
      %v606 = vsel %vm376, %v601, %v605
      %v607 = vshrl.u32 %v348, 16
      %v609 = vrot.slane %v607, 4
      %v610 = vor.u32 %v609, %v605
      %v611 = vrot.slane %v610, 4
      %v613 = vshll.u32 %v349, 16
      %v615 = vrot.slane %v613, 5
      %v616 = vsel %vm376, %v611, %v615
      %v618 = vshrl.u32 %v350, 16
      %v620 = vrot.slane %v618, 4
      %v621 = vshll.u32 %v350, 16
      %v623 = vrot.slane %v621, 5
      %v624 = vor.u32 %v620, %v623
      %v625 = vrot.slane %v624, 4
      %v627 = vshll.u32 %v351, 16
      %v629 = vrot.slane %v627, 5
      %v630 = vsel %vm376, %v625, %v629
      %v631 = vshrl.u32 %v351, 16
      %v633 = vrot.slane %v631, 4
      %v634 = vor.u32 %v633, %v629
      %v635 = vrot.slane %v634, 4
      %v637 = vshll.u32 %v352, 16
      %v639 = vrot.slane %v637, 5
      %v640 = vsel %vm376, %v635, %v639
      %v642 = vshrl.u32 %v353, 16
      %v644 = vrot.slane %v642, 4
      %v645 = vshll.u32 %v353, 16
      %v647 = vrot.slane %v645, 5
      %v648 = vor.u32 %v644, %v647
      %v649 = vrot.slane %v648, 4
      %v651 = vshll.u32 %v354, 16
      %v653 = vrot.slane %v651, 5
      %v654 = vsel %vm376, %v649, %v653
      %v655 = vshrl.u32 %v354, 16
      %v657 = vrot.slane %v655, 4
      %v658 = vor.u32 %v657, %v653
      %v659 = vrot.slane %v658, 4
      %v661 = vshll.u32 %v355, 16
      %v663 = vrot.slane %v661, 5
      %v664 = vsel %vm376, %v659, %v663
      %v666 = vshrl.u32 %v356, 16
      %v668 = vrot.slane %v666, 4
      %v669 = vshll.u32 %v356, 16
      %v671 = vrot.slane %v669, 5
      %v672 = vor.u32 %v668, %v671
      %v673 = vrot.slane %v672, 4
      %v675 = vshll.u32 %v357, 16
      %v677 = vrot.slane %v675, 5
      %v678 = vsel %vm376, %v673, %v677
      %v679 = vshrl.u32 %v357, 16
      %v681 = vrot.slane %v679, 4
      %v682 = vor.u32 %v681, %v677
      %v683 = vrot.slane %v682, 4
      %v685 = vshll.u32 %v358, 16
      %v687 = vrot.slane %v685, 5
      %v688 = vsel %vm376, %v683, %v687
      %v690 = vshrl.u32 %v359, 16
      %v692 = vrot.slane %v690, 4
      %v693 = vshll.u32 %v359, 16
      %v695 = vrot.slane %v693, 5
      %v696 = vor.u32 %v692, %v695
      %v697 = vrot.slane %v696, 4
      %v699 = vshll.u32 %v360, 16
      %v701 = vrot.slane %v699, 5
      %v702 = vsel %vm376, %v697, %v701
      %v703 = vshrl.u32 %v360, 16
      %v705 = vrot.slane %v703, 4
      %v706 = vor.u32 %v705, %v701
      %v707 = vrot.slane %v706, 4
      %v709 = vshll.u32 %v361, 16
      %v711 = vrot.slane %v709, 5
      %v712 = vsel %vm376, %v707, %v711
      %v714 = vshrl.u32 %v362, 16
      %v716 = vrot.slane %v714, 4
      %v717 = vshll.u32 %v362, 16
      %v719 = vrot.slane %v717, 5
      %v720 = vor.u32 %v716, %v719
      %v721 = vrot.slane %v720, 4
      %v723 = vshll.u32 %v363, 16
      %v725 = vrot.slane %v723, 5
      %v726 = vsel %vm376, %v721, %v725
      %v727 = vshrl.u32 %v363, 16
      %v729 = vrot.slane %v727, 4
      %v730 = vor.u32 %v729, %v725
      %v731 = vrot.slane %v730, 4
      %v733 = vshll.u32 %v364, 16
      %v735 = vrot.slane %v733, 5
      %v736 = vsel %vm376, %v731, %v735
      %v738 = vshrl.u32 %v365, 16
      %v740 = vrot.slane %v738, 4
      %v741 = vshll.u32 %v365, 16
      %v743 = vrot.slane %v741, 5
      %v744 = vor.u32 %v740, %v743
      %v745 = vrot.slane %v744, 4
      %v747 = vshll.u32 %v366, 16
      %v749 = vrot.slane %v747, 5
      %v750 = vsel %vm376, %v745, %v749
      %v751 = vshrl.u32 %v366, 16
      %v753 = vrot.slane %v751, 4
      %v754 = vor.u32 %v753, %v749
      %v755 = vrot.slane %v754, 4
      %v757 = vshll.u32 %v367, 16
      %v759 = vrot.slane %v757, 5
      %v760 = vsel %vm376, %v755, %v759
      %vm809 = vcmask 1042432
      %vm810 = vcmask 1046532
      %vm811 = vmor %vm809, %vm810
      %v812 = vrot.slane %v320, 5
      %v813 = vrot.slane %v812, 4
      %v814 = vrot.slane %v321, 5
      %v815 = vsel %vm811, %v813, %v814
      %v816 = vrot.slane %v814, 4
      %v817 = vrot.slane %v322, 5
      %v818 = vsel %vm811, %v816, %v817
      %v819 = vrot.slane %v323, 5
      %v820 = vrot.slane %v819, 4
      %v821 = vrot.slane %v324, 5
      %v822 = vsel %vm811, %v820, %v821
      %v823 = vrot.slane %v821, 4
      %v824 = vrot.slane %v325, 5
      %v825 = vsel %vm811, %v823, %v824
      %v826 = vrot.slane %v326, 5
      %v827 = vrot.slane %v826, 4
      %v828 = vrot.slane %v327, 5
      %v829 = vsel %vm811, %v827, %v828
      %v830 = vrot.slane %v828, 4
      %v831 = vrot.slane %v328, 5
      %v832 = vsel %vm811, %v830, %v831
      %v833 = vrot.slane %v329, 5
      %v834 = vrot.slane %v833, 4
      %v835 = vrot.slane %v330, 5
      %v836 = vsel %vm811, %v834, %v835
      %v837 = vrot.slane %v835, 4
      %v838 = vrot.slane %v331, 5
      %v839 = vsel %vm811, %v837, %v838
      %v840 = vrot.slane %v332, 5
      %v841 = vrot.slane %v840, 4
      %v842 = vrot.slane %v333, 5
      %v843 = vsel %vm811, %v841, %v842
      %v844 = vrot.slane %v842, 4
      %v845 = vrot.slane %v334, 5
      %v846 = vsel %vm811, %v844, %v845
      %v847 = vrot.slane %v335, 5
      %v848 = vrot.slane %v847, 4
      %v849 = vrot.slane %v336, 5
      %v850 = vsel %vm811, %v848, %v849
      %v851 = vrot.slane %v849, 4
      %v852 = vrot.slane %v337, 5
      %v853 = vsel %vm811, %v851, %v852
      %v854 = vrot.slane %v338, 5
      %v855 = vrot.slane %v854, 4
      %v856 = vrot.slane %v339, 5
      %v857 = vsel %vm811, %v855, %v856
      %v858 = vrot.slane %v856, 4
      %v859 = vrot.slane %v340, 5
      %v860 = vsel %vm811, %v858, %v859
      %v861 = vrot.slane %v341, 5
      %v862 = vrot.slane %v861, 4
      %v863 = vrot.slane %v342, 5
      %v864 = vsel %vm811, %v862, %v863
      %v865 = vrot.slane %v863, 4
      %v866 = vrot.slane %v343, 5
      %v867 = vsel %vm811, %v865, %v866
      %v868 = vrot.slane %v344, 5
      %v869 = vrot.slane %v868, 4
      %v870 = vrot.slane %v345, 5
      %v871 = vsel %vm811, %v869, %v870
      %v872 = vrot.slane %v870, 4
      %v873 = vrot.slane %v346, 5
      %v874 = vsel %vm811, %v872, %v873
      %v875 = vrot.slane %v347, 5
      %v876 = vrot.slane %v875, 4
      %v877 = vrot.slane %v348, 5
      %v878 = vsel %vm811, %v876, %v877
      %v879 = vrot.slane %v877, 4
      %v880 = vrot.slane %v349, 5
      %v881 = vsel %vm811, %v879, %v880
      %v882 = vrot.slane %v350, 5
      %v883 = vrot.slane %v882, 4
      %v884 = vrot.slane %v351, 5
      %v885 = vsel %vm811, %v883, %v884
      %v886 = vrot.slane %v884, 4
      %v887 = vrot.slane %v352, 5
      %v888 = vsel %vm811, %v886, %v887
      %v889 = vrot.slane %v353, 5
      %v890 = vrot.slane %v889, 4
      %v891 = vrot.slane %v354, 5
      %v892 = vsel %vm811, %v890, %v891
      %v893 = vrot.slane %v891, 4
      %v894 = vrot.slane %v355, 5
      %v895 = vsel %vm811, %v893, %v894
      %v896 = vrot.slane %v356, 5
      %v897 = vrot.slane %v896, 4
      %v898 = vrot.slane %v357, 5
      %v899 = vsel %vm811, %v897, %v898
      %v900 = vrot.slane %v898, 4
      %v901 = vrot.slane %v358, 5
      %v902 = vsel %vm811, %v900, %v901
      %v903 = vrot.slane %v359, 5
      %v904 = vrot.slane %v903, 4
      %v905 = vrot.slane %v360, 5
      %v906 = vsel %vm811, %v904, %v905
      %v907 = vrot.slane %v905, 4
      %v908 = vrot.slane %v361, 5
      %v909 = vsel %vm811, %v907, %v908
      %v910 = vrot.slane %v362, 5
      %v911 = vrot.slane %v910, 4
      %v912 = vrot.slane %v363, 5
      %v913 = vsel %vm811, %v911, %v912
      %v914 = vrot.slane %v912, 4
      %v915 = vrot.slane %v364, 5
      %v916 = vsel %vm811, %v914, %v915
      %v917 = vrot.slane %v365, 5
      %v918 = vrot.slane %v917, 4
      %v919 = vrot.slane %v366, 5
      %v920 = vsel %vm811, %v918, %v919
      %v921 = vrot.slane %v919, 4
      %v922 = vrot.slane %v367, 5
      %v923 = vsel %vm811, %v921, %v922
      %v925 = vshrl.u32 %v368, 16
      %v927 = vrot.slane %v925, 4
      %v928 = vshll.u32 %v368, 16
      %v930 = vrot.slane %v928, 5
      %v931 = vor.u32 %v927, %v930
      %v932 = vrot.slane %v931, 4
      %v934 = vshll.u32 %v369, 16
      %v936 = vrot.slane %v934, 5
      %v937 = vsel %vm376, %v932, %v936
      %v938 = vshrl.u32 %v369, 16
      %v940 = vrot.slane %v938, 4
      %v941 = vor.u32 %v940, %v936
      %v942 = vrot.slane %v941, 4
      %v944 = vshll.u32 %v370, 16
      %v946 = vrot.slane %v944, 5
      %v947 = vsel %vm376, %v942, %v946
      %v951 = vrot.slane %v368, 5
      %v952 = vrot.slane %v951, 4
      %v953 = vrot.slane %v369, 5
      %v954 = vsel %vm811, %v952, %v953
      %v955 = vrot.slane %v953, 4
      %v956 = vrot.slane %v370, 5
      %v957 = vsel %vm811, %v955, %v956
      %v959 = vshrl.u32 %v371, 16
      %v961 = vrot.slane %v959, 4
      %v962 = vshll.u32 %v371, 16
      %v964 = vrot.slane %v962, 5
      %v965 = vor.u32 %v961, %v964
      %v966 = vrot.slane %v965, 4
      %v968 = vshll.u32 %v372, 16
      %v970 = vrot.slane %v968, 5
      %v971 = vsel %vm376, %v966, %v970
      %v972 = vshrl.u32 %v372, 16
      %v974 = vrot.slane %v972, 4
      %v975 = vor.u32 %v974, %v970
      %v976 = vrot.slane %v975, 4
      %v978 = vshll.u32 %v373, 16
      %v980 = vrot.slane %v978, 5
      %v981 = vsel %vm376, %v976, %v980
      %v985 = vrot.slane %v371, 5
      %v986 = vrot.slane %v985, 4
      %v987 = vrot.slane %v372, 5
      %v988 = vsel %vm811, %v986, %v987
      %v989 = vrot.slane %v987, 4
      %v990 = vrot.slane %v373, 5
      %v991 = vsel %vm811, %v989, %v990
      %v992 = vunpack.c.l.b16 %v320
      %v993 = vunpack.c.l.b16 %v321
      %v994 = vunpack.c.l.b16 %v323
      %v995 = vunpack.c.l.b16 %v324
      %v996 = vunpack.c.l.b16 %v326
      %v997 = vunpack.c.l.b16 %v327
      %v998 = vunpack.c.l.b16 %v329
      %v999 = vunpack.c.l.b16 %v330
      %v1000 = vunpack.c.l.b16 %v332
      %v1001 = vunpack.c.l.b16 %v333
      %v1002 = vunpack.c.l.b16 %v335
      %v1003 = vunpack.c.l.b16 %v336
      %v1004 = vunpack.c.l.b16 %v338
      %v1005 = vunpack.c.l.b16 %v339
      %v1006 = vunpack.c.l.b16 %v341
      %v1007 = vunpack.c.l.b16 %v342
      %v1008 = vunpack.c.l.b16 %v344
      %v1009 = vunpack.c.l.b16 %v345
      %v1010 = vunpack.c.l.b16 %v347
      %v1011 = vunpack.c.l.b16 %v348
      %v1012 = vunpack.c.l.b16 %v350
      %v1013 = vunpack.c.l.b16 %v351
      %v1014 = vunpack.c.l.b16 %v353
      %v1015 = vunpack.c.l.b16 %v354
      %v1016 = vunpack.c.l.b16 %v356
      %v1017 = vunpack.c.l.b16 %v357
      %v1018 = vunpack.c.l.b16 %v359
      %v1019 = vunpack.c.l.b16 %v360
      %v1020 = vunpack.c.l.b16 %v362
      %v1021 = vunpack.c.l.b16 %v363
      %v1022 = vunpack.c.l.b16 %v365
      %v1023 = vunpack.c.l.b16 %v366
      %v1024 = vpack.c.b16 %v993, %v992
      %v1025 = vpack.c.b16 %v995, %v994
      %v1026 = vpack.c.b16 %v997, %v996
      %v1027 = vpack.c.b16 %v999, %v998
      %v1028 = vpack.c.b16 %v1001, %v1000
      %v1029 = vpack.c.b16 %v1003, %v1002
      %v1030 = vpack.c.b16 %v1005, %v1004
      %v1031 = vpack.c.b16 %v1007, %v1006
      %v1032 = vpack.c.b16 %v1009, %v1008
      %v1033 = vpack.c.b16 %v1011, %v1010
      %v1034 = vpack.c.b16 %v1013, %v1012
      %v1035 = vpack.c.b16 %v1015, %v1014
      %v1036 = vpack.c.b16 %v1017, %v1016
      %v1037 = vpack.c.b16 %v1019, %v1018
      %v1038 = vpack.c.b16 %v1021, %v1020
      %v1039 = vpack.c.b16 %v1023, %v1022
      %v1040 = vunpack.c.l.b16 %v390
      %v1041 = vunpack.c.l.b16 %v400
      %v1042 = vunpack.c.l.b16 %v414
      %v1043 = vunpack.c.l.b16 %v424
      %v1044 = vunpack.c.l.b16 %v438
      %v1045 = vunpack.c.l.b16 %v448
      %v1046 = vunpack.c.l.b16 %v462
      %v1047 = vunpack.c.l.b16 %v472
      %v1048 = vunpack.c.l.b16 %v486
      %v1049 = vunpack.c.l.b16 %v496
      %v1050 = vunpack.c.l.b16 %v510
      %v1051 = vunpack.c.l.b16 %v520
      %v1052 = vunpack.c.l.b16 %v534
      %v1053 = vunpack.c.l.b16 %v544
      %v1054 = vunpack.c.l.b16 %v558
      %v1055 = vunpack.c.l.b16 %v568
      %v1056 = vunpack.c.l.b16 %v582
      %v1057 = vunpack.c.l.b16 %v592
      %v1058 = vunpack.c.l.b16 %v606
      %v1059 = vunpack.c.l.b16 %v616
      %v1060 = vunpack.c.l.b16 %v630
      %v1061 = vunpack.c.l.b16 %v640
      %v1062 = vunpack.c.l.b16 %v654
      %v1063 = vunpack.c.l.b16 %v664
      %v1064 = vunpack.c.l.b16 %v678
      %v1065 = vunpack.c.l.b16 %v688
      %v1066 = vunpack.c.l.b16 %v702
      %v1067 = vunpack.c.l.b16 %v712
      %v1068 = vunpack.c.l.b16 %v726
      %v1069 = vunpack.c.l.b16 %v736
      %v1070 = vunpack.c.l.b16 %v750
      %v1071 = vunpack.c.l.b16 %v760
      %v1072 = vpack.c.b16 %v1041, %v1040
      %v1073 = vpack.c.b16 %v1043, %v1042
      %v1074 = vpack.c.b16 %v1045, %v1044
      %v1075 = vpack.c.b16 %v1047, %v1046
      %v1076 = vpack.c.b16 %v1049, %v1048
      %v1077 = vpack.c.b16 %v1051, %v1050
      %v1078 = vpack.c.b16 %v1053, %v1052
      %v1079 = vpack.c.b16 %v1055, %v1054
      %v1080 = vpack.c.b16 %v1057, %v1056
      %v1081 = vpack.c.b16 %v1059, %v1058
      %v1082 = vpack.c.b16 %v1061, %v1060
      %v1083 = vpack.c.b16 %v1063, %v1062
      %v1084 = vpack.c.b16 %v1065, %v1064
      %v1085 = vpack.c.b16 %v1067, %v1066
      %v1086 = vpack.c.b16 %v1069, %v1068
      %v1087 = vpack.c.b16 %v1071, %v1070
      %1088 = vrot.lane.b32.xlu0 %v1072, 4
      %v1089 = vpop.permute.xlu0 %1088
      %1090 = vrot.lane.b32.xlu0 %v1073, 4
      %v1091 = vpop.permute.xlu0 %1090
      %1092 = vrot.lane.b32.xlu0 %v1074, 4
      %v1093 = vpop.permute.xlu0 %1092
      %1094 = vrot.lane.b32.xlu0 %v1075, 4
      %v1095 = vpop.permute.xlu0 %1094
      %1096 = vrot.lane.b32.xlu0 %v1076, 4
      %v1097 = vpop.permute.xlu0 %1096
      %1098 = vrot.lane.b32.xlu0 %v1077, 4
      %v1099 = vpop.permute.xlu0 %1098
      %1100 = vrot.lane.b32.xlu0 %v1078, 4
      %v1101 = vpop.permute.xlu0 %1100
      %1102 = vrot.lane.b32.xlu0 %v1079, 4
      %v1103 = vpop.permute.xlu0 %1102
      %1104 = vrot.lane.b32.xlu0 %v1080, 4
      %v1105 = vpop.permute.xlu0 %1104
      %1106 = vrot.lane.b32.xlu0 %v1081, 4
      %v1107 = vpop.permute.xlu0 %1106
      %1108 = vrot.lane.b32.xlu0 %v1082, 4
      %v1109 = vpop.permute.xlu0 %1108
      %1110 = vrot.lane.b32.xlu0 %v1083, 4
      %v1111 = vpop.permute.xlu0 %1110
      %1112 = vrot.lane.b32.xlu0 %v1084, 4
      %v1113 = vpop.permute.xlu0 %1112
      %1114 = vrot.lane.b32.xlu0 %v1085, 4
      %v1115 = vpop.permute.xlu0 %1114
      %1116 = vrot.lane.b32.xlu0 %v1086, 4
      %v1117 = vpop.permute.xlu0 %1116
      %1118 = vrot.lane.b32.xlu0 %v1087, 4
      %v1119 = vpop.permute.xlu0 %1118
      %v1120 = vunpack.c.l.b16 %v815
      %v1121 = vunpack.c.l.b16 %v818
      %v1122 = vunpack.c.l.b16 %v822
      %v1123 = vunpack.c.l.b16 %v825
      %v1124 = vunpack.c.l.b16 %v829
      %v1125 = vunpack.c.l.b16 %v832
      %v1126 = vunpack.c.l.b16 %v836
      %v1127 = vunpack.c.l.b16 %v839
      %v1128 = vunpack.c.l.b16 %v843
      %v1129 = vunpack.c.l.b16 %v846
      %v1130 = vunpack.c.l.b16 %v850
      %v1131 = vunpack.c.l.b16 %v853
      %v1132 = vunpack.c.l.b16 %v857
      %v1133 = vunpack.c.l.b16 %v860
      %v1134 = vunpack.c.l.b16 %v864
      %v1135 = vunpack.c.l.b16 %v867
      %v1136 = vunpack.c.l.b16 %v871
      %v1137 = vunpack.c.l.b16 %v874
      %v1138 = vunpack.c.l.b16 %v878
      %v1139 = vunpack.c.l.b16 %v881
      %v1140 = vunpack.c.l.b16 %v885
      %v1141 = vunpack.c.l.b16 %v888
      %v1142 = vunpack.c.l.b16 %v892
      %v1143 = vunpack.c.l.b16 %v895
      %v1144 = vunpack.c.l.b16 %v899
      %v1145 = vunpack.c.l.b16 %v902
      %v1146 = vunpack.c.l.b16 %v906
      %v1147 = vunpack.c.l.b16 %v909
      %v1148 = vunpack.c.l.b16 %v913
      %v1149 = vunpack.c.l.b16 %v916
      %v1150 = vunpack.c.l.b16 %v920
      %v1151 = vunpack.c.l.b16 %v923
      %v1152 = vpack.c.b16 %v1121, %v1120
      %v1153 = vpack.c.b16 %v1123, %v1122
      %v1154 = vpack.c.b16 %v1125, %v1124
      %v1155 = vpack.c.b16 %v1127, %v1126
      %v1156 = vpack.c.b16 %v1129, %v1128
      %v1157 = vpack.c.b16 %v1131, %v1130
      %v1158 = vpack.c.b16 %v1133, %v1132
      %v1159 = vpack.c.b16 %v1135, %v1134
      %v1160 = vpack.c.b16 %v1137, %v1136
      %v1161 = vpack.c.b16 %v1139, %v1138
      %v1162 = vpack.c.b16 %v1141, %v1140
      %v1163 = vpack.c.b16 %v1143, %v1142
      %v1164 = vpack.c.b16 %v1145, %v1144
      %v1165 = vpack.c.b16 %v1147, %v1146
      %v1166 = vpack.c.b16 %v1149, %v1148
      %v1167 = vpack.c.b16 %v1151, %v1150
      %1168 = vrot.lane.b32.xlu0 %v1152, 8
      %v1169 = vpop.permute.xlu0 %1168
      %1170 = vrot.lane.b32.xlu0 %v1153, 8
      %v1171 = vpop.permute.xlu0 %1170
      %1172 = vrot.lane.b32.xlu0 %v1154, 8
      %v1173 = vpop.permute.xlu0 %1172
      %1174 = vrot.lane.b32.xlu0 %v1155, 8
      %v1175 = vpop.permute.xlu0 %1174
      %1176 = vrot.lane.b32.xlu0 %v1156, 8
      %v1177 = vpop.permute.xlu0 %1176
      %1178 = vrot.lane.b32.xlu0 %v1157, 8
      %v1179 = vpop.permute.xlu0 %1178
      %1180 = vrot.lane.b32.xlu0 %v1158, 8
      %v1181 = vpop.permute.xlu0 %1180
      %1182 = vrot.lane.b32.xlu0 %v1159, 8
      %v1183 = vpop.permute.xlu0 %1182
      %1184 = vrot.lane.b32.xlu0 %v1160, 8
      %v1185 = vpop.permute.xlu0 %1184
      %1186 = vrot.lane.b32.xlu0 %v1161, 8
      %v1187 = vpop.permute.xlu0 %1186
      %1188 = vrot.lane.b32.xlu0 %v1162, 8
      %v1189 = vpop.permute.xlu0 %1188
      %1190 = vrot.lane.b32.xlu0 %v1163, 8
      %v1191 = vpop.permute.xlu0 %1190
      %1192 = vrot.lane.b32.xlu0 %v1164, 8
      %v1193 = vpop.permute.xlu0 %1192
      %1194 = vrot.lane.b32.xlu0 %v1165, 8
      %v1195 = vpop.permute.xlu0 %1194
      %1196 = vrot.lane.b32.xlu0 %v1166, 8
      %v1197 = vpop.permute.xlu0 %1196
      %1198 = vrot.lane.b32.xlu0 %v1167, 8
      %v1199 = vpop.permute.xlu0 %1198
      %v1200 = vunpack.c.l.b16 %v368
      %v1201 = vunpack.c.l.b16 %v369
      %v1202 = vpack.c.b16 %v1201, %v1200
      %1203 = vrot.lane.b32.xlu0 %v1025, 12
      %v1204 = vpop.permute.xlu0 %1203
      %1205 = vrot.lane.b32.xlu0 %v1026, 12
      %v1206 = vpop.permute.xlu0 %1205
      %1207 = vrot.lane.b32.xlu0 %v1027, 12
      %v1208 = vpop.permute.xlu0 %1207
      %1209 = vrot.lane.b32.xlu0 %v1028, 12
      %v1210 = vpop.permute.xlu0 %1209
      %1211 = vrot.lane.b32.xlu0 %v1029, 12
      %v1212 = vpop.permute.xlu0 %1211
      %1213 = vrot.lane.b32.xlu0 %v1030, 12
      %v1214 = vpop.permute.xlu0 %1213
      %1215 = vrot.lane.b32.xlu0 %v1031, 12
      %v1216 = vpop.permute.xlu0 %1215
      %1217 = vrot.lane.b32.xlu0 %v1032, 12
      %v1218 = vpop.permute.xlu0 %1217
      %1219 = vrot.lane.b32.xlu0 %v1033, 12
      %v1220 = vpop.permute.xlu0 %1219
      %1221 = vrot.lane.b32.xlu0 %v1034, 12
      %v1222 = vpop.permute.xlu0 %1221
      %1223 = vrot.lane.b32.xlu0 %v1035, 12
      %v1224 = vpop.permute.xlu0 %1223
      %1225 = vrot.lane.b32.xlu0 %v1036, 12
      %v1226 = vpop.permute.xlu0 %1225
      %1227 = vrot.lane.b32.xlu0 %v1037, 12
      %v1228 = vpop.permute.xlu0 %1227
      %1229 = vrot.lane.b32.xlu0 %v1038, 12
      %v1230 = vpop.permute.xlu0 %1229
      %1231 = vrot.lane.b32.xlu0 %v1039, 12
      %v1232 = vpop.permute.xlu0 %1231
      %1233 = vrot.lane.b32.xlu0 %v1202, 12
      %v1234 = vpop.permute.xlu0 %1233
      %v1235 = vunpack.c.l.b16 %v937
      %v1236 = vunpack.c.l.b16 %v947
      %v1237 = vpack.c.b16 %v1236, %v1235
      %1238 = vrot.lane.b32.xlu0 %v1073, 16
      %v1239 = vpop.permute.xlu0 %1238
      %1240 = vrot.lane.b32.xlu0 %v1074, 16
      %v1241 = vpop.permute.xlu0 %1240
      %1242 = vrot.lane.b32.xlu0 %v1075, 16
      %v1243 = vpop.permute.xlu0 %1242
      %1244 = vrot.lane.b32.xlu0 %v1076, 16
      %v1245 = vpop.permute.xlu0 %1244
      %1246 = vrot.lane.b32.xlu0 %v1077, 16
      %v1247 = vpop.permute.xlu0 %1246
      %1248 = vrot.lane.b32.xlu0 %v1078, 16
      %v1249 = vpop.permute.xlu0 %1248
      %1250 = vrot.lane.b32.xlu0 %v1079, 16
      %v1251 = vpop.permute.xlu0 %1250
      %1252 = vrot.lane.b32.xlu0 %v1080, 16
      %v1253 = vpop.permute.xlu0 %1252
      %1254 = vrot.lane.b32.xlu0 %v1081, 16
      %v1255 = vpop.permute.xlu0 %1254
      %1256 = vrot.lane.b32.xlu0 %v1082, 16
      %v1257 = vpop.permute.xlu0 %1256
      %1258 = vrot.lane.b32.xlu0 %v1083, 16
      %v1259 = vpop.permute.xlu0 %1258
      %1260 = vrot.lane.b32.xlu0 %v1084, 16
      %v1261 = vpop.permute.xlu0 %1260
      %1262 = vrot.lane.b32.xlu0 %v1085, 16
      %v1263 = vpop.permute.xlu0 %1262
      %1264 = vrot.lane.b32.xlu0 %v1086, 16
      %v1265 = vpop.permute.xlu0 %1264
      %1266 = vrot.lane.b32.xlu0 %v1087, 16
      %v1267 = vpop.permute.xlu0 %1266
      %1268 = vrot.lane.b32.xlu0 %v1237, 16
      %v1269 = vpop.permute.xlu0 %1268
      %v1270 = vunpack.c.l.b16 %v954
      %v1271 = vunpack.c.l.b16 %v957
      %v1272 = vpack.c.b16 %v1271, %v1270
      %1273 = vrot.lane.b32.xlu0 %v1153, 20
      %v1274 = vpop.permute.xlu0 %1273
      %1275 = vrot.lane.b32.xlu0 %v1154, 20
      %v1276 = vpop.permute.xlu0 %1275
      %1277 = vrot.lane.b32.xlu0 %v1155, 20
      %v1278 = vpop.permute.xlu0 %1277
      %1279 = vrot.lane.b32.xlu0 %v1156, 20
      %v1280 = vpop.permute.xlu0 %1279
      %1281 = vrot.lane.b32.xlu0 %v1157, 20
      %v1282 = vpop.permute.xlu0 %1281
      %1283 = vrot.lane.b32.xlu0 %v1158, 20
      %v1284 = vpop.permute.xlu0 %1283
      %1285 = vrot.lane.b32.xlu0 %v1159, 20
      %v1286 = vpop.permute.xlu0 %1285
      %1287 = vrot.lane.b32.xlu0 %v1160, 20
      %v1288 = vpop.permute.xlu0 %1287
      %1289 = vrot.lane.b32.xlu0 %v1161, 20
      %v1290 = vpop.permute.xlu0 %1289
      %1291 = vrot.lane.b32.xlu0 %v1162, 20
      %v1292 = vpop.permute.xlu0 %1291
      %1293 = vrot.lane.b32.xlu0 %v1163, 20
      %v1294 = vpop.permute.xlu0 %1293
      %1295 = vrot.lane.b32.xlu0 %v1164, 20
      %v1296 = vpop.permute.xlu0 %1295
      %1297 = vrot.lane.b32.xlu0 %v1165, 20
      %v1298 = vpop.permute.xlu0 %1297
      %1299 = vrot.lane.b32.xlu0 %v1166, 20
      %v1300 = vpop.permute.xlu0 %1299
      %1301 = vrot.lane.b32.xlu0 %v1167, 20
      %v1302 = vpop.permute.xlu0 %1301
      %1303 = vrot.lane.b32.xlu0 %v1272, 20
      %v1304 = vpop.permute.xlu0 %1303
      %v1305 = vunpack.c.l.b16 %v371
      %v1306 = vunpack.c.l.b16 %v372
      %v1307 = vpack.c.b16 %v1306, %v1305
      %1308 = vrot.lane.b32.xlu0 %v1026, 24
      %v1309 = vpop.permute.xlu0 %1308
      %1310 = vrot.lane.b32.xlu0 %v1027, 24
      %v1311 = vpop.permute.xlu0 %1310
      %1312 = vrot.lane.b32.xlu0 %v1028, 24
      %v1313 = vpop.permute.xlu0 %1312
      %1314 = vrot.lane.b32.xlu0 %v1029, 24
      %v1315 = vpop.permute.xlu0 %1314
      %1316 = vrot.lane.b32.xlu0 %v1030, 24
      %v1317 = vpop.permute.xlu0 %1316
      %1318 = vrot.lane.b32.xlu0 %v1031, 24
      %v1319 = vpop.permute.xlu0 %1318
      %1320 = vrot.lane.b32.xlu0 %v1032, 24
      %v1321 = vpop.permute.xlu0 %1320
      %1322 = vrot.lane.b32.xlu0 %v1033, 24
      %v1323 = vpop.permute.xlu0 %1322
      %1324 = vrot.lane.b32.xlu0 %v1034, 24
      %v1325 = vpop.permute.xlu0 %1324
      %1326 = vrot.lane.b32.xlu0 %v1035, 24
      %v1327 = vpop.permute.xlu0 %1326
      %1328 = vrot.lane.b32.xlu0 %v1036, 24
      %v1329 = vpop.permute.xlu0 %1328
      %1330 = vrot.lane.b32.xlu0 %v1037, 24
      %v1331 = vpop.permute.xlu0 %1330
      %1332 = vrot.lane.b32.xlu0 %v1038, 24
      %v1333 = vpop.permute.xlu0 %1332
      %1334 = vrot.lane.b32.xlu0 %v1039, 24
      %v1335 = vpop.permute.xlu0 %1334
      %1336 = vrot.lane.b32.xlu0 %v1202, 24
      %v1337 = vpop.permute.xlu0 %1336
      %1338 = vrot.lane.b32.xlu0 %v1307, 24
      %v1339 = vpop.permute.xlu0 %1338
      %v1340 = vunpack.c.l.b16 %v971
      %v1341 = vunpack.c.l.b16 %v981
      %v1342 = vpack.c.b16 %v1341, %v1340
      %1343 = vrot.lane.b32.xlu0 %v1074, 28
      %v1344 = vpop.permute.xlu0 %1343
      %1345 = vrot.lane.b32.xlu0 %v1075, 28
      %v1346 = vpop.permute.xlu0 %1345
      %1347 = vrot.lane.b32.xlu0 %v1076, 28
      %v1348 = vpop.permute.xlu0 %1347
      %1349 = vrot.lane.b32.xlu0 %v1077, 28
      %v1350 = vpop.permute.xlu0 %1349
      %1351 = vrot.lane.b32.xlu0 %v1078, 28
      %v1352 = vpop.permute.xlu0 %1351
      %1353 = vrot.lane.b32.xlu0 %v1079, 28
      %v1354 = vpop.permute.xlu0 %1353
      %1355 = vrot.lane.b32.xlu0 %v1080, 28
      %v1356 = vpop.permute.xlu0 %1355
      %1357 = vrot.lane.b32.xlu0 %v1081, 28
      %v1358 = vpop.permute.xlu0 %1357
      %1359 = vrot.lane.b32.xlu0 %v1082, 28
      %v1360 = vpop.permute.xlu0 %1359
      %1361 = vrot.lane.b32.xlu0 %v1083, 28
      %v1362 = vpop.permute.xlu0 %1361
      %1363 = vrot.lane.b32.xlu0 %v1084, 28
      %v1364 = vpop.permute.xlu0 %1363
      %1365 = vrot.lane.b32.xlu0 %v1085, 28
      %v1366 = vpop.permute.xlu0 %1365
      %1367 = vrot.lane.b32.xlu0 %v1086, 28
      %v1368 = vpop.permute.xlu0 %1367
      %1369 = vrot.lane.b32.xlu0 %v1087, 28
      %v1370 = vpop.permute.xlu0 %1369
      %1371 = vrot.lane.b32.xlu0 %v1237, 28
      %v1372 = vpop.permute.xlu0 %1371
      %1373 = vrot.lane.b32.xlu0 %v1342, 28
      %v1374 = vpop.permute.xlu0 %1373
      %v1375 = vunpack.c.l.b16 %v988
      %v1376 = vunpack.c.l.b16 %v991
      %v1377 = vpack.c.b16 %v1376, %v1375
      %1378 = vrot.lane.b32.xlu0 %v1154, 32
      %v1379 = vpop.permute.xlu0 %1378
      %1380 = vrot.lane.b32.xlu0 %v1155, 32
      %v1381 = vpop.permute.xlu0 %1380
      %1382 = vrot.lane.b32.xlu0 %v1156, 32
      %v1383 = vpop.permute.xlu0 %1382
      %1384 = vrot.lane.b32.xlu0 %v1157, 32
      %v1385 = vpop.permute.xlu0 %1384
      %1386 = vrot.lane.b32.xlu0 %v1158, 32
      %v1387 = vpop.permute.xlu0 %1386
      %1388 = vrot.lane.b32.xlu0 %v1159, 32
      %v1389 = vpop.permute.xlu0 %1388
      %1390 = vrot.lane.b32.xlu0 %v1160, 32
      %v1391 = vpop.permute.xlu0 %1390
      %1392 = vrot.lane.b32.xlu0 %v1161, 32
      %v1393 = vpop.permute.xlu0 %1392
      %1394 = vrot.lane.b32.xlu0 %v1162, 32
      %v1395 = vpop.permute.xlu0 %1394
      %1396 = vrot.lane.b32.xlu0 %v1163, 32
      %v1397 = vpop.permute.xlu0 %1396
      %1398 = vrot.lane.b32.xlu0 %v1164, 32
      %v1399 = vpop.permute.xlu0 %1398
      %1400 = vrot.lane.b32.xlu0 %v1165, 32
      %v1401 = vpop.permute.xlu0 %1400
      %1402 = vrot.lane.b32.xlu0 %v1166, 32
      %v1403 = vpop.permute.xlu0 %1402
      %1404 = vrot.lane.b32.xlu0 %v1167, 32
      %v1405 = vpop.permute.xlu0 %1404
      %1406 = vrot.lane.b32.xlu0 %v1272, 32
      %v1407 = vpop.permute.xlu0 %1406
      %1408 = vrot.lane.b32.xlu0 %v1377, 32
      %v1409 = vpop.permute.xlu0 %1408
      %vm1410 = vcmask 31744
      %v1413 = vsel %vm1410, %v1024, %v1089
      %v1416 = vsel %vm1410, %v1025, %v1091
      %v1419 = vsel %vm1410, %v1026, %v1093
      %v1422 = vsel %vm1410, %v1027, %v1095
      %v1425 = vsel %vm1410, %v1028, %v1097
      %v1428 = vsel %vm1410, %v1029, %v1099
      %v1431 = vsel %vm1410, %v1030, %v1101
      %v1434 = vsel %vm1410, %v1031, %v1103
      %v1437 = vsel %vm1410, %v1032, %v1105
      %v1440 = vsel %vm1410, %v1033, %v1107
      %v1443 = vsel %vm1410, %v1034, %v1109
      %v1446 = vsel %vm1410, %v1035, %v1111
      %v1449 = vsel %vm1410, %v1036, %v1113
      %v1452 = vsel %vm1410, %v1037, %v1115
      %v1455 = vsel %vm1410, %v1038, %v1117
      %v1458 = vsel %vm1410, %v1039, %v1119
      %vm1459 = vcmask 64512
      %v1461 = vsel %vm1459, %v1413, %v1169
      %v1463 = vsel %vm1459, %v1416, %v1171
      %v1465 = vsel %vm1459, %v1419, %v1173
      %v1467 = vsel %vm1459, %v1422, %v1175
      %v1469 = vsel %vm1459, %v1425, %v1177
      %v1471 = vsel %vm1459, %v1428, %v1179
      %v1473 = vsel %vm1459, %v1431, %v1181
      %v1475 = vsel %vm1459, %v1434, %v1183
      %v1477 = vsel %vm1459, %v1437, %v1185
      %v1479 = vsel %vm1459, %v1440, %v1187
      %v1481 = vsel %vm1459, %v1443, %v1189
      %v1483 = vsel %vm1459, %v1446, %v1191
      %v1485 = vsel %vm1459, %v1449, %v1193
      %v1487 = vsel %vm1459, %v1452, %v1195
      %v1489 = vsel %vm1459, %v1455, %v1197
      %v1491 = vsel %vm1459, %v1458, %v1199
      %vm1492 = vcmask 97280
      %v1494 = vsel %vm1492, %v1461, %v1204
      %v1496 = vsel %vm1492, %v1463, %v1206
      %v1498 = vsel %vm1492, %v1465, %v1208
      %v1500 = vsel %vm1492, %v1467, %v1210
      %v1502 = vsel %vm1492, %v1469, %v1212
      %v1504 = vsel %vm1492, %v1471, %v1214
      %v1506 = vsel %vm1492, %v1473, %v1216
      %v1508 = vsel %vm1492, %v1475, %v1218
      %v1510 = vsel %vm1492, %v1477, %v1220
      %v1512 = vsel %vm1492, %v1479, %v1222
      %v1514 = vsel %vm1492, %v1481, %v1224
      %v1516 = vsel %vm1492, %v1483, %v1226
      %v1518 = vsel %vm1492, %v1485, %v1228
      %v1520 = vsel %vm1492, %v1487, %v1230
      %v1522 = vsel %vm1492, %v1489, %v1232
      %v1524 = vsel %vm1492, %v1491, %v1234
      %vm1525 = vcmask 130048
      %v1527 = vsel %vm1525, %v1494, %v1239
      %v1529 = vsel %vm1525, %v1496, %v1241
      %v1531 = vsel %vm1525, %v1498, %v1243
      %v1533 = vsel %vm1525, %v1500, %v1245
      %v1535 = vsel %vm1525, %v1502, %v1247
      %v1537 = vsel %vm1525, %v1504, %v1249
      %v1539 = vsel %vm1525, %v1506, %v1251
      %v1541 = vsel %vm1525, %v1508, %v1253
      %v1543 = vsel %vm1525, %v1510, %v1255
      %v1545 = vsel %vm1525, %v1512, %v1257
      %v1547 = vsel %vm1525, %v1514, %v1259
      %v1549 = vsel %vm1525, %v1516, %v1261
      %v1551 = vsel %vm1525, %v1518, %v1263
      %v1553 = vsel %vm1525, %v1520, %v1265
      %v1555 = vsel %vm1525, %v1522, %v1267
      %v1557 = vsel %vm1525, %v1524, %v1269
      %vm1558 = vcmask 162816
      %v1560 = vsel %vm1558, %v1527, %v1274
      %v1562 = vsel %vm1558, %v1529, %v1276
      %v1564 = vsel %vm1558, %v1531, %v1278
      %v1566 = vsel %vm1558, %v1533, %v1280
      %v1568 = vsel %vm1558, %v1535, %v1282
      %v1570 = vsel %vm1558, %v1537, %v1284
      %v1572 = vsel %vm1558, %v1539, %v1286
      %v1574 = vsel %vm1558, %v1541, %v1288
      %v1576 = vsel %vm1558, %v1543, %v1290
      %v1578 = vsel %vm1558, %v1545, %v1292
      %v1580 = vsel %vm1558, %v1547, %v1294
      %v1582 = vsel %vm1558, %v1549, %v1296
      %v1584 = vsel %vm1558, %v1551, %v1298
      %v1586 = vsel %vm1558, %v1553, %v1300
      %v1588 = vsel %vm1558, %v1555, %v1302
      %v1590 = vsel %vm1558, %v1557, %v1304
      %vm1591 = vcmask 195584
      %v1593 = vsel %vm1591, %v1560, %v1309
      %v1595 = vsel %vm1591, %v1562, %v1311
      %v1597 = vsel %vm1591, %v1564, %v1313
      %v1599 = vsel %vm1591, %v1566, %v1315
      %v1601 = vsel %vm1591, %v1568, %v1317
      %v1603 = vsel %vm1591, %v1570, %v1319
      %v1605 = vsel %vm1591, %v1572, %v1321
      %v1607 = vsel %vm1591, %v1574, %v1323
      %v1609 = vsel %vm1591, %v1576, %v1325
      %v1611 = vsel %vm1591, %v1578, %v1327
      %v1613 = vsel %vm1591, %v1580, %v1329
      %v1615 = vsel %vm1591, %v1582, %v1331
      %v1617 = vsel %vm1591, %v1584, %v1333
      %v1619 = vsel %vm1591, %v1586, %v1335
      %v1621 = vsel %vm1591, %v1588, %v1337
      %v1623 = vsel %vm1591, %v1590, %v1339
      %vm1624 = vcmask 228352
      %v1626 = vsel %vm1624, %v1593, %v1344
      %v1628 = vsel %vm1624, %v1595, %v1346
      %v1630 = vsel %vm1624, %v1597, %v1348
      %v1632 = vsel %vm1624, %v1599, %v1350
      %v1634 = vsel %vm1624, %v1601, %v1352
      %v1636 = vsel %vm1624, %v1603, %v1354
      %v1638 = vsel %vm1624, %v1605, %v1356
      %v1640 = vsel %vm1624, %v1607, %v1358
      %v1642 = vsel %vm1624, %v1609, %v1360
      %v1644 = vsel %vm1624, %v1611, %v1362
      %v1646 = vsel %vm1624, %v1613, %v1364
      %v1648 = vsel %vm1624, %v1615, %v1366
      %v1650 = vsel %vm1624, %v1617, %v1368
      %v1652 = vsel %vm1624, %v1619, %v1370
      %v1654 = vsel %vm1624, %v1621, %v1372
      %v1656 = vsel %vm1624, %v1623, %v1374
      %vm1657 = vcmask 261120
      %v1659 = vsel %vm1657, %v1626, %v1379
      %v1661 = vsel %vm1657, %v1628, %v1381
      %v1663 = vsel %vm1657, %v1630, %v1383
      %v1665 = vsel %vm1657, %v1632, %v1385
      %v1667 = vsel %vm1657, %v1634, %v1387
      %v1669 = vsel %vm1657, %v1636, %v1389
      %v1671 = vsel %vm1657, %v1638, %v1391
      %v1673 = vsel %vm1657, %v1640, %v1393
      %v1675 = vsel %vm1657, %v1642, %v1395
      %v1677 = vsel %vm1657, %v1644, %v1397
      %v1679 = vsel %vm1657, %v1646, %v1399
      %v1681 = vsel %vm1657, %v1648, %v1401
      %v1683 = vsel %vm1657, %v1650, %v1403
      %v1685 = vsel %vm1657, %v1652, %v1405
      %v1687 = vsel %vm1657, %v1654, %v1407
      %v1689 = vsel %vm1657, %v1656, %v1409
      %v1690 = vld [vmem:[%s3] sm:$0xf]
      %v1691 = vld [vmem:[%s3 + $0x4] sm:$0xf]
      %v1692 = vld [vmem:[%s3 + $0x8] sm:$0xf]
      %v1693 = vld [vmem:[%s3 + $0xc] sm:$0xf]
      %v1694 = vld [vmem:[%s3 + $0x10] sm:$0x3]
      %v1695 = vld [vmem:[%s6] sm:$0x1]
      %v1697 = vlaneseq
      %v1698 = vshrl.u32 %v1697, 7
      %v1699 = vsub.s32 0, %v1698
      %v1700 = vrot.slane %v1695, %v1699
      %v1707 = vunpack.c.l.b16 %v1690
      %v1708 = vunpack.c.l.b16 %v1691
      %v1709 = vunpack.c.l.b16 %v1692
      %v1710 = vunpack.c.l.b16 %v1693
      %v1711 = vunpack.c.l.b16 %v1694
      %v1712 = vpack.c.b16 %v1708, %v1707
      %v1713 = vpack.c.b16 %v1710, %v1709
      %v1714 = vpack.c.b16 %v1711, %v1711
      %vm1717 = vcmask 293888
      %v1718 = vsel %vm1717, %v1659, 0
      %v1720 = vsel %vm1717, %v1661, 0
      %v1722 = vsel %vm1717, %v1663, 0
      %v1724 = vsel %vm1717, %v1665, 0
      %v1726 = vsel %vm1717, %v1667, 0
      %v1728 = vsel %vm1717, %v1669, 0
      %v1730 = vsel %vm1717, %v1671, 0
      %v1732 = vsel %vm1717, %v1673, 0
      %v1734 = vsel %vm1717, %v1675, 0
      %v1736 = vsel %vm1717, %v1677, 0
      %v1738 = vsel %vm1717, %v1679, 0
      %v1740 = vsel %vm1717, %v1681, 0
      %v1742 = vsel %vm1717, %v1683, 0
      %v1744 = vsel %vm1717, %v1685, 0
      %v1746 = vsel %vm1717, %v1687, 0
      %v1748 = vsel %vm1717, %v1689, 0
      %vm1750 = vcmask 1041408
      %v1752 = vsel %vm1750, %v1714, 0
      %1754 = vmatprep.subr.bf16.mxu0 0
      %1755 = vmatpush1.bf16.msra.mxu0 0
      %1756 = vmatprep.subr.bf16.mxu0 0
      %1757 = vmatpush1.bf16.msra.mxu0 0
      %1758 = vmatprep.subr.bf16.mxu0 0
      %1759 = vmatpush1.bf16.msra.mxu0 0
      %1760 = vmatprep.subr.bf16.mxu0 0
      %1761 = vmatpush1.bf16.msra.mxu0 0
      %1762 = vmatprep.subr.bf16.mxu0 0
      %1763 = vmatpush1.bf16.msra.mxu0 0
      %1764 = vmatprep.subr.bf16.mxu0 0
      %1765 = vmatpush1.bf16.msra.mxu0 %v1752
      %1766 = vmatprep.subr.bf16.mxu0 0
      %1767 = vmatpush1.bf16.msra.mxu0 %v1713
      %1768 = vmatprep.subr.bf16.mxu0 0
      %1769 = vmatpush1.bf16.msra.mxu0 %v1712
      %1770 = vmatprep.subr.bf16.mxu0 0
      %1771 = vmatpush2.bf16.msra.mxu0 0
      %1772 = vmatprep.subr.bf16.mxu0 0
      %1773 = vmatpush2.bf16.msra.mxu0 0
      %1774 = vmatprep.subr.bf16.mxu0 0
      %1775 = vmatpush2.bf16.msra.mxu0 0
      %1776 = vmatprep.subr.bf16.mxu0 0
      %1777 = vmatpush2.bf16.msra.mxu0 0
      %1778 = vmatprep.subr.bf16.mxu0 0
      %1779 = vmatpush2.bf16.msra.mxu0 0
      %1780 = vmatprep.subr.bf16.mxu0 0
      %1781 = vmatpush2.bf16.msra.mxu0 0
      %1782 = vmatprep.subr.bf16.mxu0 0
      %1783 = vmatpush2.bf16.msra.mxu0 0
      %1784 = vmatprep.subr.bf16.mxu0 0
      %1785 = vmatpush2.bf16.msra.mxu0 0
      %1786 = vmatprep.mubr.bf16.mxu0 0
      %1787 = vmatmul.mubr.bf16.gmra.mxu0 %v1718
      %v1788 = vpop.f32.mrf.mxu0
      %v1789 = vadd.f32 %v1700, %v1788
      %v1790 = vpop.f32.mrf.mxu0
      %v1791 = vpop.f32.mrf.mxu0
      %v1792 = vadd.f32 %v1700, %v1791
      %v1793 = vpop.f32.mrf.mxu0
      %1794 = vmatprep.mubr.bf16.mxu0 0
      %1795 = vmatmul.mubr.bf16.gmra.mxu0 %v1720
      %v1796 = vpop.f32.mrf.mxu0
      %v1797 = vadd.f32 %v1700, %v1796
      %v1798 = vpop.f32.mrf.mxu0
      %v1799 = vpop.f32.mrf.mxu0
      %v1800 = vadd.f32 %v1700, %v1799
      %v1801 = vpop.f32.mrf.mxu0
      %1802 = vmatprep.mubr.bf16.mxu0 0
      %1803 = vmatmul.mubr.bf16.gmra.mxu0 %v1722
      %v1804 = vpop.f32.mrf.mxu0
      %v1805 = vadd.f32 %v1700, %v1804
      %v1806 = vpop.f32.mrf.mxu0
      %v1807 = vpop.f32.mrf.mxu0
      %v1808 = vadd.f32 %v1700, %v1807
      %v1809 = vpop.f32.mrf.mxu0
      %1810 = vmatprep.mubr.bf16.mxu0 0
      %1811 = vmatmul.mubr.bf16.gmra.mxu0 %v1724
      %v1812 = vpop.f32.mrf.mxu0
      %v1813 = vadd.f32 %v1700, %v1812
      %v1814 = vpop.f32.mrf.mxu0
      %v1815 = vpop.f32.mrf.mxu0
      %v1816 = vadd.f32 %v1700, %v1815
      %v1817 = vpop.f32.mrf.mxu0
      %1818 = vmatprep.mubr.bf16.mxu0 0
      %1819 = vmatmul.mubr.bf16.gmra.mxu0 %v1726
      %v1820 = vpop.f32.mrf.mxu0
      %v1821 = vadd.f32 %v1700, %v1820
      %v1822 = vpop.f32.mrf.mxu0
      %v1823 = vpop.f32.mrf.mxu0
      %v1824 = vadd.f32 %v1700, %v1823
      %v1825 = vpop.f32.mrf.mxu0
      %1826 = vmatprep.mubr.bf16.mxu0 0
      %1827 = vmatmul.mubr.bf16.gmra.mxu0 %v1728
      %v1828 = vpop.f32.mrf.mxu0
      %v1829 = vadd.f32 %v1700, %v1828
      %v1830 = vpop.f32.mrf.mxu0
      %v1831 = vpop.f32.mrf.mxu0
      %v1832 = vadd.f32 %v1700, %v1831
      %v1833 = vpop.f32.mrf.mxu0
      %1834 = vmatprep.mubr.bf16.mxu0 0
      %1835 = vmatmul.mubr.bf16.gmra.mxu0 %v1730
      %v1836 = vpop.f32.mrf.mxu0
      %v1837 = vadd.f32 %v1700, %v1836
      %v1838 = vpop.f32.mrf.mxu0
      %v1839 = vpop.f32.mrf.mxu0
      %v1840 = vadd.f32 %v1700, %v1839
      %v1841 = vpop.f32.mrf.mxu0
      %1842 = vmatprep.mubr.bf16.mxu0 0
      %1843 = vmatmul.mubr.bf16.gmra.mxu0 %v1732
      %v1844 = vpop.f32.mrf.mxu0
      %v1845 = vadd.f32 %v1700, %v1844
      %v1846 = vpop.f32.mrf.mxu0
      %v1847 = vpop.f32.mrf.mxu0
      %v1848 = vadd.f32 %v1700, %v1847
      %v1849 = vpop.f32.mrf.mxu0
      %1850 = vmatprep.mubr.bf16.mxu0 0
      %1851 = vmatmul.mubr.bf16.gmra.mxu0 %v1734
      %v1852 = vpop.f32.mrf.mxu0
      %v1853 = vadd.f32 %v1700, %v1852
      %v1854 = vpop.f32.mrf.mxu0
      %v1855 = vpop.f32.mrf.mxu0
      %v1856 = vadd.f32 %v1700, %v1855
      %v1857 = vpop.f32.mrf.mxu0
      %1858 = vmatprep.mubr.bf16.mxu0 0
      %1859 = vmatmul.mubr.bf16.gmra.mxu0 %v1736
      %v1860 = vpop.f32.mrf.mxu0
      %v1861 = vadd.f32 %v1700, %v1860
      %v1862 = vpop.f32.mrf.mxu0
      %v1863 = vpop.f32.mrf.mxu0
      %v1864 = vadd.f32 %v1700, %v1863
      %v1865 = vpop.f32.mrf.mxu0
      %1866 = vmatprep.mubr.bf16.mxu0 0
      %1867 = vmatmul.mubr.bf16.gmra.mxu0 %v1738
      %v1868 = vpop.f32.mrf.mxu0
      %v1869 = vadd.f32 %v1700, %v1868
      %v1870 = vpop.f32.mrf.mxu0
      %v1871 = vpop.f32.mrf.mxu0
      %v1872 = vadd.f32 %v1700, %v1871
      %v1873 = vpop.f32.mrf.mxu0
      %1874 = vmatprep.mubr.bf16.mxu0 0
      %1875 = vmatmul.mubr.bf16.gmra.mxu0 %v1740
      %v1876 = vpop.f32.mrf.mxu0
      %v1877 = vadd.f32 %v1700, %v1876
      %v1878 = vpop.f32.mrf.mxu0
      %v1879 = vpop.f32.mrf.mxu0
      %v1880 = vadd.f32 %v1700, %v1879
      %v1881 = vpop.f32.mrf.mxu0
      %1882 = vmatprep.mubr.bf16.mxu0 0
      %1883 = vmatmul.mubr.bf16.gmra.mxu0 %v1742
      %v1884 = vpop.f32.mrf.mxu0
      %v1885 = vadd.f32 %v1700, %v1884
      %v1886 = vpop.f32.mrf.mxu0
      %v1887 = vpop.f32.mrf.mxu0
      %v1888 = vadd.f32 %v1700, %v1887
      %v1889 = vpop.f32.mrf.mxu0
      %1890 = vmatprep.mubr.bf16.mxu0 0
      %1891 = vmatmul.mubr.bf16.gmra.mxu0 %v1744
      %v1892 = vpop.f32.mrf.mxu0
      %v1893 = vadd.f32 %v1700, %v1892
      %v1894 = vpop.f32.mrf.mxu0
      %v1895 = vpop.f32.mrf.mxu0
      %v1896 = vadd.f32 %v1700, %v1895
      %v1897 = vpop.f32.mrf.mxu0
      %1898 = vmatprep.mubr.bf16.mxu0 0
      %1899 = vmatmul.mubr.bf16.gmra.mxu0 %v1746
      %v1900 = vpop.f32.mrf.mxu0
      %v1901 = vadd.f32 %v1700, %v1900
      %v1902 = vpop.f32.mrf.mxu0
      %v1903 = vpop.f32.mrf.mxu0
      %v1904 = vadd.f32 %v1700, %v1903
      %v1905 = vpop.f32.mrf.mxu0
      %1906 = vmatprep.mubr.bf16.mxu0 0
      %1907 = vmatmul.mubr.bf16.gmra.mxu0 %v1748
      %v1908 = vpop.f32.mrf.mxu0
      %v1909 = vadd.f32 %v1700, %v1908
      %v1910 = vpop.f32.mrf.mxu0
      %v1911 = vpop.f32.mrf.mxu0
      %v1912 = vadd.f32 %v1700, %v1911
      %v1913 = vpop.f32.mrf.mxu0
      %1914 = vdwg.mxu0
      %v1915 = vld [vmem:[%s308] sm:$0xf]
      %v1916 = vld [vmem:[%s308 + $0x4] sm:$0xf]
      %v1917 = vld [vmem:[%s308 + $0x8] sm:$0x1]
      %v1918 = vld [vmem:[%s308 + $0xc] sm:$0xf]
      %v1919 = vld [vmem:[%s308 + $0x10] sm:$0xf]
      %v1920 = vld [vmem:[%s308 + $0x14] sm:$0x1]
      %v1921 = vld [vmem:[%s308 + $0x18] sm:$0xf]
      %v1922 = vld [vmem:[%s308 + $0x1c] sm:$0xf]
      %v1923 = vld [vmem:[%s308 + $0x20] sm:$0x1]
      %v1924 = vld [vmem:[%s308 + $0x24] sm:$0xf]
      %v1925 = vld [vmem:[%s308 + $0x28] sm:$0xf]
      %v1926 = vld [vmem:[%s308 + $0x2c] sm:$0x1]
      %v1927 = vld [vmem:[%s308 + $0x30] sm:$0xf]
      %v1928 = vld [vmem:[%s308 + $0x34] sm:$0xf]
      %v1929 = vld [vmem:[%s308 + $0x38] sm:$0x1]
      %v1930 = vld [vmem:[%s308 + $0x3c] sm:$0xf]
      %v1931 = vld [vmem:[%s308 + $0x40] sm:$0xf]
      %v1932 = vld [vmem:[%s308 + $0x44] sm:$0x1]
      %v1933 = vld [vmem:[%s308 + $0x48] sm:$0xf]
      %v1934 = vld [vmem:[%s308 + $0x4c] sm:$0xf]
      %v1935 = vld [vmem:[%s308 + $0x50] sm:$0x1]
      %v1936 = vld [vmem:[%s308 + $0x54] sm:$0xf]
      %v1937 = vld [vmem:[%s308 + $0x58] sm:$0xf]
      %v1938 = vld [vmem:[%s308 + $0x5c] sm:$0x1]
      %v1939 = vld [vmem:[%s308 + $0x60] sm:$0xf]
      %v1940 = vld [vmem:[%s308 + $0x64] sm:$0xf]
      %v1941 = vld [vmem:[%s308 + $0x68] sm:$0x1]
      %v1942 = vld [vmem:[%s308 + $0x6c] sm:$0xf]
      %v1943 = vld [vmem:[%s308 + $0x70] sm:$0xf]
      %v1944 = vld [vmem:[%s308 + $0x74] sm:$0x1]
      %v1945 = vld [vmem:[%s308 + $0x78] sm:$0xf]
      %v1946 = vld [vmem:[%s308 + $0x7c] sm:$0xf]
      %v1947 = vld [vmem:[%s308 + $0x80] sm:$0x1]
      %v1948 = vld [vmem:[%s308 + $0x84] sm:$0xf]
      %v1949 = vld [vmem:[%s308 + $0x88] sm:$0xf]
      %v1950 = vld [vmem:[%s308 + $0x8c] sm:$0x1]
      %v1951 = vld [vmem:[%s308 + $0x90] sm:$0xf]
      %v1952 = vld [vmem:[%s308 + $0x94] sm:$0xf]
      %v1953 = vld [vmem:[%s308 + $0x98] sm:$0x1]
      %v1954 = vld [vmem:[%s308 + $0x9c] sm:$0xf]
      %v1955 = vld [vmem:[%s308 + $0xa0] sm:$0xf]
      %v1956 = vld [vmem:[%s308 + $0xa4] sm:$0x1]
      %v1957 = vld [vmem:[%s308 + $0xa8] sm:$0xf]
      %v1958 = vld [vmem:[%s308 + $0xac] sm:$0xf]
      %v1959 = vld [vmem:[%s308 + $0xb0] sm:$0x1]
      %v1960 = vld [vmem:[%s308 + $0xb4] sm:$0xf]
      %v1961 = vld [vmem:[%s308 + $0xb8] sm:$0xf]
      %v1962 = vld [vmem:[%s308 + $0xbc] sm:$0x1]
      %v1963 = vld [vmem:[%s308 + $0xc0] sm:$0xf]
      %v1964 = vld [vmem:[%s308 + $0xc4] sm:$0xf]
      %v1965 = vld [vmem:[%s308 + $0xc8] sm:$0x1]
      %v1966 = vld [vmem:[%s308 + $0xcc] sm:$0xf]
      %v1967 = vld [vmem:[%s308 + $0xd0] sm:$0xf]
      %v1968 = vld [vmem:[%s308 + $0xd4] sm:$0x1]
      %v1970 = vshrl.u32 %v1915, 16
      %v1972 = vrot.slane %v1970, 4
      %v1973 = vshll.u32 %v1915, 16
      %v1975 = vrot.slane %v1973, 5
      %v1976 = vor.u32 %v1972, %v1975
      %v1977 = vrot.slane %v1976, 4
      %v1979 = vshll.u32 %v1916, 16
      %v1981 = vrot.slane %v1979, 5
      %v1982 = vsel %vm376, %v1977, %v1981
      %v1983 = vshrl.u32 %v1916, 16
      %v1985 = vrot.slane %v1983, 4
      %v1986 = vor.u32 %v1985, %v1981
      %v1987 = vrot.slane %v1986, 4
      %v1989 = vshll.u32 %v1917, 16
      %v1991 = vrot.slane %v1989, 5
      %v1992 = vsel %vm376, %v1987, %v1991
      %v1994 = vshrl.u32 %v1918, 16
      %v1996 = vrot.slane %v1994, 4
      %v1997 = vshll.u32 %v1918, 16
      %v1999 = vrot.slane %v1997, 5
      %v2000 = vor.u32 %v1996, %v1999
      %v2001 = vrot.slane %v2000, 4
      %v2003 = vshll.u32 %v1919, 16
      %v2005 = vrot.slane %v2003, 5
      %v2006 = vsel %vm376, %v2001, %v2005
      %v2007 = vshrl.u32 %v1919, 16
      %v2009 = vrot.slane %v2007, 4
      %v2010 = vor.u32 %v2009, %v2005
      %v2011 = vrot.slane %v2010, 4
      %v2013 = vshll.u32 %v1920, 16
      %v2015 = vrot.slane %v2013, 5
      %v2016 = vsel %vm376, %v2011, %v2015
      %v2018 = vshrl.u32 %v1921, 16
      %v2020 = vrot.slane %v2018, 4
      %v2021 = vshll.u32 %v1921, 16
      %v2023 = vrot.slane %v2021, 5
      %v2024 = vor.u32 %v2020, %v2023
      %v2025 = vrot.slane %v2024, 4
      %v2027 = vshll.u32 %v1922, 16
      %v2029 = vrot.slane %v2027, 5
      %v2030 = vsel %vm376, %v2025, %v2029
      %v2031 = vshrl.u32 %v1922, 16
      %v2033 = vrot.slane %v2031, 4
      %v2034 = vor.u32 %v2033, %v2029
      %v2035 = vrot.slane %v2034, 4
      %v2037 = vshll.u32 %v1923, 16
      %v2039 = vrot.slane %v2037, 5
      %v2040 = vsel %vm376, %v2035, %v2039
      %v2042 = vshrl.u32 %v1924, 16
      %v2044 = vrot.slane %v2042, 4
      %v2045 = vshll.u32 %v1924, 16
      %v2047 = vrot.slane %v2045, 5
      %v2048 = vor.u32 %v2044, %v2047
      %v2049 = vrot.slane %v2048, 4
      %v2051 = vshll.u32 %v1925, 16
      %v2053 = vrot.slane %v2051, 5
      %v2054 = vsel %vm376, %v2049, %v2053
      %v2055 = vshrl.u32 %v1925, 16
      %v2057 = vrot.slane %v2055, 4
      %v2058 = vor.u32 %v2057, %v2053
      %v2059 = vrot.slane %v2058, 4
      %v2061 = vshll.u32 %v1926, 16
      %v2063 = vrot.slane %v2061, 5
      %v2064 = vsel %vm376, %v2059, %v2063
      %v2066 = vshrl.u32 %v1927, 16
      %v2068 = vrot.slane %v2066, 4
      %v2069 = vshll.u32 %v1927, 16
      %v2071 = vrot.slane %v2069, 5
      %v2072 = vor.u32 %v2068, %v2071
      %v2073 = vrot.slane %v2072, 4
      %v2075 = vshll.u32 %v1928, 16
      %v2077 = vrot.slane %v2075, 5
      %v2078 = vsel %vm376, %v2073, %v2077
      %v2079 = vshrl.u32 %v1928, 16
      %v2081 = vrot.slane %v2079, 4
      %v2082 = vor.u32 %v2081, %v2077
      %v2083 = vrot.slane %v2082, 4
      %v2085 = vshll.u32 %v1929, 16
      %v2087 = vrot.slane %v2085, 5
      %v2088 = vsel %vm376, %v2083, %v2087
      %v2090 = vshrl.u32 %v1930, 16
      %v2092 = vrot.slane %v2090, 4
      %v2093 = vshll.u32 %v1930, 16
      %v2095 = vrot.slane %v2093, 5
      %v2096 = vor.u32 %v2092, %v2095
      %v2097 = vrot.slane %v2096, 4
      %v2099 = vshll.u32 %v1931, 16
      %v2101 = vrot.slane %v2099, 5
      %v2102 = vsel %vm376, %v2097, %v2101
      %v2103 = vshrl.u32 %v1931, 16
      %v2105 = vrot.slane %v2103, 4
      %v2106 = vor.u32 %v2105, %v2101
      %v2107 = vrot.slane %v2106, 4
      %v2109 = vshll.u32 %v1932, 16
      %v2111 = vrot.slane %v2109, 5
      %v2112 = vsel %vm376, %v2107, %v2111
      %v2114 = vshrl.u32 %v1933, 16
      %v2116 = vrot.slane %v2114, 4
      %v2117 = vshll.u32 %v1933, 16
      %v2119 = vrot.slane %v2117, 5
      %v2120 = vor.u32 %v2116, %v2119
      %v2121 = vrot.slane %v2120, 4
      %v2123 = vshll.u32 %v1934, 16
      %v2125 = vrot.slane %v2123, 5
      %v2126 = vsel %vm376, %v2121, %v2125
      %v2127 = vshrl.u32 %v1934, 16
      %v2129 = vrot.slane %v2127, 4
      %v2130 = vor.u32 %v2129, %v2125
      %v2131 = vrot.slane %v2130, 4
      %v2133 = vshll.u32 %v1935, 16
      %v2135 = vrot.slane %v2133, 5
      %v2136 = vsel %vm376, %v2131, %v2135
      %v2138 = vshrl.u32 %v1936, 16
      %v2140 = vrot.slane %v2138, 4
      %v2141 = vshll.u32 %v1936, 16
      %v2143 = vrot.slane %v2141, 5
      %v2144 = vor.u32 %v2140, %v2143
      %v2145 = vrot.slane %v2144, 4
      %v2147 = vshll.u32 %v1937, 16
      %v2149 = vrot.slane %v2147, 5
      %v2150 = vsel %vm376, %v2145, %v2149
      %v2151 = vshrl.u32 %v1937, 16
      %v2153 = vrot.slane %v2151, 4
      %v2154 = vor.u32 %v2153, %v2149
      %v2155 = vrot.slane %v2154, 4
      %v2157 = vshll.u32 %v1938, 16
      %v2159 = vrot.slane %v2157, 5
      %v2160 = vsel %vm376, %v2155, %v2159
      %v2162 = vshrl.u32 %v1939, 16
      %v2164 = vrot.slane %v2162, 4
      %v2165 = vshll.u32 %v1939, 16
      %v2167 = vrot.slane %v2165, 5
      %v2168 = vor.u32 %v2164, %v2167
      %v2169 = vrot.slane %v2168, 4
      %v2171 = vshll.u32 %v1940, 16
      %v2173 = vrot.slane %v2171, 5
      %v2174 = vsel %vm376, %v2169, %v2173
      %v2175 = vshrl.u32 %v1940, 16
      %v2177 = vrot.slane %v2175, 4
      %v2178 = vor.u32 %v2177, %v2173
      %v2179 = vrot.slane %v2178, 4
      %v2181 = vshll.u32 %v1941, 16
      %v2183 = vrot.slane %v2181, 5
      %v2184 = vsel %vm376, %v2179, %v2183
      %v2186 = vshrl.u32 %v1942, 16
      %v2188 = vrot.slane %v2186, 4
      %v2189 = vshll.u32 %v1942, 16
      %v2191 = vrot.slane %v2189, 5
      %v2192 = vor.u32 %v2188, %v2191
      %v2193 = vrot.slane %v2192, 4
      %v2195 = vshll.u32 %v1943, 16
      %v2197 = vrot.slane %v2195, 5
      %v2198 = vsel %vm376, %v2193, %v2197
      %v2199 = vshrl.u32 %v1943, 16
      %v2201 = vrot.slane %v2199, 4
      %v2202 = vor.u32 %v2201, %v2197
      %v2203 = vrot.slane %v2202, 4
      %v2205 = vshll.u32 %v1944, 16
      %v2207 = vrot.slane %v2205, 5
      %v2208 = vsel %vm376, %v2203, %v2207
      %v2210 = vshrl.u32 %v1945, 16
      %v2212 = vrot.slane %v2210, 4
      %v2213 = vshll.u32 %v1945, 16
      %v2215 = vrot.slane %v2213, 5
      %v2216 = vor.u32 %v2212, %v2215
      %v2217 = vrot.slane %v2216, 4
      %v2219 = vshll.u32 %v1946, 16
      %v2221 = vrot.slane %v2219, 5
      %v2222 = vsel %vm376, %v2217, %v2221
      %v2223 = vshrl.u32 %v1946, 16
      %v2225 = vrot.slane %v2223, 4
      %v2226 = vor.u32 %v2225, %v2221
      %v2227 = vrot.slane %v2226, 4
      %v2229 = vshll.u32 %v1947, 16
      %v2231 = vrot.slane %v2229, 5
      %v2232 = vsel %vm376, %v2227, %v2231
      %v2234 = vshrl.u32 %v1948, 16
      %v2236 = vrot.slane %v2234, 4
      %v2237 = vshll.u32 %v1948, 16
      %v2239 = vrot.slane %v2237, 5
      %v2240 = vor.u32 %v2236, %v2239
      %v2241 = vrot.slane %v2240, 4
      %v2243 = vshll.u32 %v1949, 16
      %v2245 = vrot.slane %v2243, 5
      %v2246 = vsel %vm376, %v2241, %v2245
      %v2247 = vshrl.u32 %v1949, 16
      %v2249 = vrot.slane %v2247, 4
      %v2250 = vor.u32 %v2249, %v2245
      %v2251 = vrot.slane %v2250, 4
      %v2253 = vshll.u32 %v1950, 16
      %v2255 = vrot.slane %v2253, 5
      %v2256 = vsel %vm376, %v2251, %v2255
      %v2258 = vshrl.u32 %v1951, 16
      %v2260 = vrot.slane %v2258, 4
      %v2261 = vshll.u32 %v1951, 16
      %v2263 = vrot.slane %v2261, 5
      %v2264 = vor.u32 %v2260, %v2263
      %v2265 = vrot.slane %v2264, 4
      %v2267 = vshll.u32 %v1952, 16
      %v2269 = vrot.slane %v2267, 5
      %v2270 = vsel %vm376, %v2265, %v2269
      %v2271 = vshrl.u32 %v1952, 16
      %v2273 = vrot.slane %v2271, 4
      %v2274 = vor.u32 %v2273, %v2269
      %v2275 = vrot.slane %v2274, 4
      %v2277 = vshll.u32 %v1953, 16
      %v2279 = vrot.slane %v2277, 5
      %v2280 = vsel %vm376, %v2275, %v2279
      %v2282 = vshrl.u32 %v1954, 16
      %v2284 = vrot.slane %v2282, 4
      %v2285 = vshll.u32 %v1954, 16
      %v2287 = vrot.slane %v2285, 5
      %v2288 = vor.u32 %v2284, %v2287
      %v2289 = vrot.slane %v2288, 4
      %v2291 = vshll.u32 %v1955, 16
      %v2293 = vrot.slane %v2291, 5
      %v2294 = vsel %vm376, %v2289, %v2293
      %v2295 = vshrl.u32 %v1955, 16
      %v2297 = vrot.slane %v2295, 4
      %v2298 = vor.u32 %v2297, %v2293
      %v2299 = vrot.slane %v2298, 4
      %v2301 = vshll.u32 %v1956, 16
      %v2303 = vrot.slane %v2301, 5
      %v2304 = vsel %vm376, %v2299, %v2303
      %v2306 = vshrl.u32 %v1957, 16
      %v2308 = vrot.slane %v2306, 4
      %v2309 = vshll.u32 %v1957, 16
      %v2311 = vrot.slane %v2309, 5
      %v2312 = vor.u32 %v2308, %v2311
      %v2313 = vrot.slane %v2312, 4
      %v2315 = vshll.u32 %v1958, 16
      %v2317 = vrot.slane %v2315, 5
      %v2318 = vsel %vm376, %v2313, %v2317
      %v2319 = vshrl.u32 %v1958, 16
      %v2321 = vrot.slane %v2319, 4
      %v2322 = vor.u32 %v2321, %v2317
      %v2323 = vrot.slane %v2322, 4
      %v2325 = vshll.u32 %v1959, 16
      %v2327 = vrot.slane %v2325, 5
      %v2328 = vsel %vm376, %v2323, %v2327
      %v2330 = vshrl.u32 %v1960, 16
      %v2332 = vrot.slane %v2330, 4
      %v2333 = vshll.u32 %v1960, 16
      %v2335 = vrot.slane %v2333, 5
      %v2336 = vor.u32 %v2332, %v2335
      %v2337 = vrot.slane %v2336, 4
      %v2339 = vshll.u32 %v1961, 16
      %v2341 = vrot.slane %v2339, 5
      %v2342 = vsel %vm376, %v2337, %v2341
      %v2343 = vshrl.u32 %v1961, 16
      %v2345 = vrot.slane %v2343, 4
      %v2346 = vor.u32 %v2345, %v2341
      %v2347 = vrot.slane %v2346, 4
      %v2349 = vshll.u32 %v1962, 16
      %v2351 = vrot.slane %v2349, 5
      %v2352 = vsel %vm376, %v2347, %v2351
      %v2401 = vrot.slane %v1915, 5
      %v2402 = vrot.slane %v2401, 4
      %v2403 = vrot.slane %v1916, 5
      %v2404 = vsel %vm811, %v2402, %v2403
      %v2405 = vrot.slane %v2403, 4
      %v2406 = vrot.slane %v1917, 5
      %v2407 = vsel %vm811, %v2405, %v2406
      %v2408 = vrot.slane %v1918, 5
      %v2409 = vrot.slane %v2408, 4
      %v2410 = vrot.slane %v1919, 5
      %v2411 = vsel %vm811, %v2409, %v2410
      %v2412 = vrot.slane %v2410, 4
      %v2413 = vrot.slane %v1920, 5
      %v2414 = vsel %vm811, %v2412, %v2413
      %v2415 = vrot.slane %v1921, 5
      %v2416 = vrot.slane %v2415, 4
      %v2417 = vrot.slane %v1922, 5
      %v2418 = vsel %vm811, %v2416, %v2417
      %v2419 = vrot.slane %v2417, 4
      %v2420 = vrot.slane %v1923, 5
      %v2421 = vsel %vm811, %v2419, %v2420
      %v2422 = vrot.slane %v1924, 5
      %v2423 = vrot.slane %v2422, 4
      %v2424 = vrot.slane %v1925, 5
      %v2425 = vsel %vm811, %v2423, %v2424
      %v2426 = vrot.slane %v2424, 4
      %v2427 = vrot.slane %v1926, 5
      %v2428 = vsel %vm811, %v2426, %v2427
      %v2429 = vrot.slane %v1927, 5
      %v2430 = vrot.slane %v2429, 4
      %v2431 = vrot.slane %v1928, 5
      %v2432 = vsel %vm811, %v2430, %v2431
      %v2433 = vrot.slane %v2431, 4
      %v2434 = vrot.slane %v1929, 5
      %v2435 = vsel %vm811, %v2433, %v2434
      %v2436 = vrot.slane %v1930, 5
      %v2437 = vrot.slane %v2436, 4
      %v2438 = vrot.slane %v1931, 5
      %v2439 = vsel %vm811, %v2437, %v2438
      %v2440 = vrot.slane %v2438, 4
      %v2441 = vrot.slane %v1932, 5
      %v2442 = vsel %vm811, %v2440, %v2441
      %v2443 = vrot.slane %v1933, 5
      %v2444 = vrot.slane %v2443, 4
      %v2445 = vrot.slane %v1934, 5
      %v2446 = vsel %vm811, %v2444, %v2445
      %v2447 = vrot.slane %v2445, 4
      %v2448 = vrot.slane %v1935, 5
      %v2449 = vsel %vm811, %v2447, %v2448
      %v2450 = vrot.slane %v1936, 5
      %v2451 = vrot.slane %v2450, 4
      %v2452 = vrot.slane %v1937, 5
      %v2453 = vsel %vm811, %v2451, %v2452
      %v2454 = vrot.slane %v2452, 4
      %v2455 = vrot.slane %v1938, 5
      %v2456 = vsel %vm811, %v2454, %v2455
      %v2457 = vrot.slane %v1939, 5
      %v2458 = vrot.slane %v2457, 4
      %v2459 = vrot.slane %v1940, 5
      %v2460 = vsel %vm811, %v2458, %v2459
      %v2461 = vrot.slane %v2459, 4
      %v2462 = vrot.slane %v1941, 5
      %v2463 = vsel %vm811, %v2461, %v2462
      %v2464 = vrot.slane %v1942, 5
      %v2465 = vrot.slane %v2464, 4
      %v2466 = vrot.slane %v1943, 5
      %v2467 = vsel %vm811, %v2465, %v2466
      %v2468 = vrot.slane %v2466, 4
      %v2469 = vrot.slane %v1944, 5
      %v2470 = vsel %vm811, %v2468, %v2469
      %v2471 = vrot.slane %v1945, 5
      %v2472 = vrot.slane %v2471, 4
      %v2473 = vrot.slane %v1946, 5
      %v2474 = vsel %vm811, %v2472, %v2473
      %v2475 = vrot.slane %v2473, 4
      %v2476 = vrot.slane %v1947, 5
      %v2477 = vsel %vm811, %v2475, %v2476
      %v2478 = vrot.slane %v1948, 5
      %v2479 = vrot.slane %v2478, 4
      %v2480 = vrot.slane %v1949, 5
      %v2481 = vsel %vm811, %v2479, %v2480
      %v2482 = vrot.slane %v2480, 4
      %v2483 = vrot.slane %v1950, 5
      %v2484 = vsel %vm811, %v2482, %v2483
      %v2485 = vrot.slane %v1951, 5
      %v2486 = vrot.slane %v2485, 4
      %v2487 = vrot.slane %v1952, 5
      %v2488 = vsel %vm811, %v2486, %v2487
      %v2489 = vrot.slane %v2487, 4
      %v2490 = vrot.slane %v1953, 5
      %v2491 = vsel %vm811, %v2489, %v2490
      %v2492 = vrot.slane %v1954, 5
      %v2493 = vrot.slane %v2492, 4
      %v2494 = vrot.slane %v1955, 5
      %v2495 = vsel %vm811, %v2493, %v2494
      %v2496 = vrot.slane %v2494, 4
      %v2497 = vrot.slane %v1956, 5
      %v2498 = vsel %vm811, %v2496, %v2497
      %v2499 = vrot.slane %v1957, 5
      %v2500 = vrot.slane %v2499, 4
      %v2501 = vrot.slane %v1958, 5
      %v2502 = vsel %vm811, %v2500, %v2501
      %v2503 = vrot.slane %v2501, 4
      %v2504 = vrot.slane %v1959, 5
      %v2505 = vsel %vm811, %v2503, %v2504
      %v2506 = vrot.slane %v1960, 5
      %v2507 = vrot.slane %v2506, 4
      %v2508 = vrot.slane %v1961, 5
      %v2509 = vsel %vm811, %v2507, %v2508
      %v2510 = vrot.slane %v2508, 4
      %v2511 = vrot.slane %v1962, 5
      %v2512 = vsel %vm811, %v2510, %v2511
      %v2514 = vshrl.u32 %v1963, 16
      %v2516 = vrot.slane %v2514, 4
      %v2517 = vshll.u32 %v1963, 16
      %v2519 = vrot.slane %v2517, 5
      %v2520 = vor.u32 %v2516, %v2519
      %v2521 = vrot.slane %v2520, 4
      %v2523 = vshll.u32 %v1964, 16
      %v2525 = vrot.slane %v2523, 5
      %v2526 = vsel %vm376, %v2521, %v2525
      %v2527 = vshrl.u32 %v1964, 16
      %v2529 = vrot.slane %v2527, 4
      %v2530 = vor.u32 %v2529, %v2525
      %v2531 = vrot.slane %v2530, 4
      %v2533 = vshll.u32 %v1965, 16
      %v2535 = vrot.slane %v2533, 5
      %v2536 = vsel %vm376, %v2531, %v2535
      %v2540 = vrot.slane %v1963, 5
      %v2541 = vrot.slane %v2540, 4
      %v2542 = vrot.slane %v1964, 5
      %v2543 = vsel %vm811, %v2541, %v2542
      %v2544 = vrot.slane %v2542, 4
      %v2545 = vrot.slane %v1965, 5
      %v2546 = vsel %vm811, %v2544, %v2545
      %v2548 = vshrl.u32 %v1966, 16
      %v2550 = vrot.slane %v2548, 4
      %v2551 = vshll.u32 %v1966, 16
      %v2553 = vrot.slane %v2551, 5
      %v2554 = vor.u32 %v2550, %v2553
      %v2555 = vrot.slane %v2554, 4
      %v2557 = vshll.u32 %v1967, 16
      %v2559 = vrot.slane %v2557, 5
      %v2560 = vsel %vm376, %v2555, %v2559
      %v2561 = vshrl.u32 %v1967, 16
      %v2563 = vrot.slane %v2561, 4
      %v2564 = vor.u32 %v2563, %v2559
      %v2565 = vrot.slane %v2564, 4
      %v2567 = vshll.u32 %v1968, 16
      %v2569 = vrot.slane %v2567, 5
      %v2570 = vsel %vm376, %v2565, %v2569
      %v2574 = vrot.slane %v1966, 5
      %v2575 = vrot.slane %v2574, 4
      %v2576 = vrot.slane %v1967, 5
      %v2577 = vsel %vm811, %v2575, %v2576
      %v2578 = vrot.slane %v2576, 4
      %v2579 = vrot.slane %v1968, 5
      %v2580 = vsel %vm811, %v2578, %v2579
      %v2581 = vunpack.c.l.b16 %v1915
      %v2582 = vunpack.c.l.b16 %v1916
      %v2583 = vunpack.c.l.b16 %v1918
      %v2584 = vunpack.c.l.b16 %v1919
      %v2585 = vunpack.c.l.b16 %v1921
      %v2586 = vunpack.c.l.b16 %v1922
      %v2587 = vunpack.c.l.b16 %v1924
      %v2588 = vunpack.c.l.b16 %v1925
      %v2589 = vunpack.c.l.b16 %v1927
      %v2590 = vunpack.c.l.b16 %v1928
      %v2591 = vunpack.c.l.b16 %v1930
      %v2592 = vunpack.c.l.b16 %v1931
      %v2593 = vunpack.c.l.b16 %v1933
      %v2594 = vunpack.c.l.b16 %v1934
      %v2595 = vunpack.c.l.b16 %v1936
      %v2596 = vunpack.c.l.b16 %v1937
      %v2597 = vunpack.c.l.b16 %v1939
      %v2598 = vunpack.c.l.b16 %v1940
      %v2599 = vunpack.c.l.b16 %v1942
      %v2600 = vunpack.c.l.b16 %v1943
      %v2601 = vunpack.c.l.b16 %v1945
      %v2602 = vunpack.c.l.b16 %v1946
      %v2603 = vunpack.c.l.b16 %v1948
      %v2604 = vunpack.c.l.b16 %v1949
      %v2605 = vunpack.c.l.b16 %v1951
      %v2606 = vunpack.c.l.b16 %v1952
      %v2607 = vunpack.c.l.b16 %v1954
      %v2608 = vunpack.c.l.b16 %v1955
      %v2609 = vunpack.c.l.b16 %v1957
      %v2610 = vunpack.c.l.b16 %v1958
      %v2611 = vunpack.c.l.b16 %v1960
      %v2612 = vunpack.c.l.b16 %v1961
      %v2613 = vpack.c.b16 %v2582, %v2581
      %v2614 = vpack.c.b16 %v2584, %v2583
      %v2615 = vpack.c.b16 %v2586, %v2585
      %v2616 = vpack.c.b16 %v2588, %v2587
      %v2617 = vpack.c.b16 %v2590, %v2589
      %v2618 = vpack.c.b16 %v2592, %v2591
      %v2619 = vpack.c.b16 %v2594, %v2593
      %v2620 = vpack.c.b16 %v2596, %v2595
      %v2621 = vpack.c.b16 %v2598, %v2597
      %v2622 = vpack.c.b16 %v2600, %v2599
      %v2623 = vpack.c.b16 %v2602, %v2601
      %v2624 = vpack.c.b16 %v2604, %v2603
      %v2625 = vpack.c.b16 %v2606, %v2605
      %v2626 = vpack.c.b16 %v2608, %v2607
      %v2627 = vpack.c.b16 %v2610, %v2609
      %v2628 = vpack.c.b16 %v2612, %v2611
      %v2629 = vunpack.c.l.b16 %v1982
      %v2630 = vunpack.c.l.b16 %v1992
      %v2631 = vunpack.c.l.b16 %v2006
      %v2632 = vunpack.c.l.b16 %v2016
      %v2633 = vunpack.c.l.b16 %v2030
      %v2634 = vunpack.c.l.b16 %v2040
      %v2635 = vunpack.c.l.b16 %v2054
      %v2636 = vunpack.c.l.b16 %v2064
      %v2637 = vunpack.c.l.b16 %v2078
      %v2638 = vunpack.c.l.b16 %v2088
      %v2639 = vunpack.c.l.b16 %v2102
      %v2640 = vunpack.c.l.b16 %v2112
      %v2641 = vunpack.c.l.b16 %v2126
      %v2642 = vunpack.c.l.b16 %v2136
      %v2643 = vunpack.c.l.b16 %v2150
      %v2644 = vunpack.c.l.b16 %v2160
      %v2645 = vunpack.c.l.b16 %v2174
      %v2646 = vunpack.c.l.b16 %v2184
      %v2647 = vunpack.c.l.b16 %v2198
      %v2648 = vunpack.c.l.b16 %v2208
      %v2649 = vunpack.c.l.b16 %v2222
      %v2650 = vunpack.c.l.b16 %v2232
      %v2651 = vunpack.c.l.b16 %v2246
      %v2652 = vunpack.c.l.b16 %v2256
      %v2653 = vunpack.c.l.b16 %v2270
      %v2654 = vunpack.c.l.b16 %v2280
      %v2655 = vunpack.c.l.b16 %v2294
      %v2656 = vunpack.c.l.b16 %v2304
      %v2657 = vunpack.c.l.b16 %v2318
      %v2658 = vunpack.c.l.b16 %v2328
      %v2659 = vunpack.c.l.b16 %v2342
      %v2660 = vunpack.c.l.b16 %v2352
      %v2661 = vpack.c.b16 %v2630, %v2629
      %v2662 = vpack.c.b16 %v2632, %v2631
      %v2663 = vpack.c.b16 %v2634, %v2633
      %v2664 = vpack.c.b16 %v2636, %v2635
      %v2665 = vpack.c.b16 %v2638, %v2637
      %v2666 = vpack.c.b16 %v2640, %v2639
      %v2667 = vpack.c.b16 %v2642, %v2641
      %v2668 = vpack.c.b16 %v2644, %v2643
      %v2669 = vpack.c.b16 %v2646, %v2645
      %v2670 = vpack.c.b16 %v2648, %v2647
      %v2671 = vpack.c.b16 %v2650, %v2649
      %v2672 = vpack.c.b16 %v2652, %v2651
      %v2673 = vpack.c.b16 %v2654, %v2653
      %v2674 = vpack.c.b16 %v2656, %v2655
      %v2675 = vpack.c.b16 %v2658, %v2657
      %v2676 = vpack.c.b16 %v2660, %v2659
      %2677 = vrot.lane.b32.xlu0 %v2661, 8
      %v2678 = vpop.permute.xlu0 %2677
      %2679 = vrot.lane.b32.xlu0 %v2662, 8
      %v2680 = vpop.permute.xlu0 %2679
      %2681 = vrot.lane.b32.xlu0 %v2663, 8
      %v2682 = vpop.permute.xlu0 %2681
      %2683 = vrot.lane.b32.xlu0 %v2664, 8
      %v2684 = vpop.permute.xlu0 %2683
      %2685 = vrot.lane.b32.xlu0 %v2665, 8
      %v2686 = vpop.permute.xlu0 %2685
      %2687 = vrot.lane.b32.xlu0 %v2666, 8
      %v2688 = vpop.permute.xlu0 %2687
      %2689 = vrot.lane.b32.xlu0 %v2667, 8
      %v2690 = vpop.permute.xlu0 %2689
      %2691 = vrot.lane.b32.xlu0 %v2668, 8
      %v2692 = vpop.permute.xlu0 %2691
      %2693 = vrot.lane.b32.xlu0 %v2669, 8
      %v2694 = vpop.permute.xlu0 %2693
      %2695 = vrot.lane.b32.xlu0 %v2670, 8
      %v2696 = vpop.permute.xlu0 %2695
      %2697 = vrot.lane.b32.xlu0 %v2671, 8
      %v2698 = vpop.permute.xlu0 %2697
      %2699 = vrot.lane.b32.xlu0 %v2672, 8
      %v2700 = vpop.permute.xlu0 %2699
      %2701 = vrot.lane.b32.xlu0 %v2673, 8
      %v2702 = vpop.permute.xlu0 %2701
      %2703 = vrot.lane.b32.xlu0 %v2674, 8
      %v2704 = vpop.permute.xlu0 %2703
      %2705 = vrot.lane.b32.xlu0 %v2675, 8
      %v2706 = vpop.permute.xlu0 %2705
      %2707 = vrot.lane.b32.xlu0 %v2676, 8
      %v2708 = vpop.permute.xlu0 %2707
      %v2709 = vunpack.c.l.b16 %v2404
      %v2710 = vunpack.c.l.b16 %v2407
      %v2711 = vunpack.c.l.b16 %v2411
      %v2712 = vunpack.c.l.b16 %v2414
      %v2713 = vunpack.c.l.b16 %v2418
      %v2714 = vunpack.c.l.b16 %v2421
      %v2715 = vunpack.c.l.b16 %v2425
      %v2716 = vunpack.c.l.b16 %v2428
      %v2717 = vunpack.c.l.b16 %v2432
      %v2718 = vunpack.c.l.b16 %v2435
      %v2719 = vunpack.c.l.b16 %v2439
      %v2720 = vunpack.c.l.b16 %v2442
      %v2721 = vunpack.c.l.b16 %v2446
      %v2722 = vunpack.c.l.b16 %v2449
      %v2723 = vunpack.c.l.b16 %v2453
      %v2724 = vunpack.c.l.b16 %v2456
      %v2725 = vunpack.c.l.b16 %v2460
      %v2726 = vunpack.c.l.b16 %v2463
      %v2727 = vunpack.c.l.b16 %v2467
      %v2728 = vunpack.c.l.b16 %v2470
      %v2729 = vunpack.c.l.b16 %v2474
      %v2730 = vunpack.c.l.b16 %v2477
      %v2731 = vunpack.c.l.b16 %v2481
      %v2732 = vunpack.c.l.b16 %v2484
      %v2733 = vunpack.c.l.b16 %v2488
      %v2734 = vunpack.c.l.b16 %v2491
      %v2735 = vunpack.c.l.b16 %v2495
      %v2736 = vunpack.c.l.b16 %v2498
      %v2737 = vunpack.c.l.b16 %v2502
      %v2738 = vunpack.c.l.b16 %v2505
      %v2739 = vunpack.c.l.b16 %v2509
      %v2740 = vunpack.c.l.b16 %v2512
      %v2741 = vpack.c.b16 %v2710, %v2709
      %v2742 = vpack.c.b16 %v2712, %v2711
      %v2743 = vpack.c.b16 %v2714, %v2713
      %v2744 = vpack.c.b16 %v2716, %v2715
      %v2745 = vpack.c.b16 %v2718, %v2717
      %v2746 = vpack.c.b16 %v2720, %v2719
      %v2747 = vpack.c.b16 %v2722, %v2721
      %v2748 = vpack.c.b16 %v2724, %v2723
      %v2749 = vpack.c.b16 %v2726, %v2725
      %v2750 = vpack.c.b16 %v2728, %v2727
      %v2751 = vpack.c.b16 %v2730, %v2729
      %v2752 = vpack.c.b16 %v2732, %v2731
      %v2753 = vpack.c.b16 %v2734, %v2733
      %v2754 = vpack.c.b16 %v2736, %v2735
      %v2755 = vpack.c.b16 %v2738, %v2737
      %v2756 = vpack.c.b16 %v2740, %v2739
      %2757 = vrot.lane.b32.xlu0 %v2741, 16
      %v2758 = vpop.permute.xlu0 %2757
      %2759 = vrot.lane.b32.xlu0 %v2742, 16
      %v2760 = vpop.permute.xlu0 %2759
      %2761 = vrot.lane.b32.xlu0 %v2743, 16
      %v2762 = vpop.permute.xlu0 %2761
      %2763 = vrot.lane.b32.xlu0 %v2744, 16
      %v2764 = vpop.permute.xlu0 %2763
      %2765 = vrot.lane.b32.xlu0 %v2745, 16
      %v2766 = vpop.permute.xlu0 %2765
      %2767 = vrot.lane.b32.xlu0 %v2746, 16
      %v2768 = vpop.permute.xlu0 %2767
      %2769 = vrot.lane.b32.xlu0 %v2747, 16
      %v2770 = vpop.permute.xlu0 %2769
      %2771 = vrot.lane.b32.xlu0 %v2748, 16
      %v2772 = vpop.permute.xlu0 %2771
      %2773 = vrot.lane.b32.xlu0 %v2749, 16
      %v2774 = vpop.permute.xlu0 %2773
      %2775 = vrot.lane.b32.xlu0 %v2750, 16
      %v2776 = vpop.permute.xlu0 %2775
      %2777 = vrot.lane.b32.xlu0 %v2751, 16
      %v2778 = vpop.permute.xlu0 %2777
      %2779 = vrot.lane.b32.xlu0 %v2752, 16
      %v2780 = vpop.permute.xlu0 %2779
      %2781 = vrot.lane.b32.xlu0 %v2753, 16
      %v2782 = vpop.permute.xlu0 %2781
      %2783 = vrot.lane.b32.xlu0 %v2754, 16
      %v2784 = vpop.permute.xlu0 %2783
      %2785 = vrot.lane.b32.xlu0 %v2755, 16
      %v2786 = vpop.permute.xlu0 %2785
      %2787 = vrot.lane.b32.xlu0 %v2756, 16
      %v2788 = vpop.permute.xlu0 %2787
      %v2789 = vunpack.c.l.b16 %v1963
      %v2790 = vunpack.c.l.b16 %v1964
      %v2791 = vpack.c.b16 %v2790, %v2789
      %2792 = vrot.lane.b32.xlu0 %v2614, 24
      %v2793 = vpop.permute.xlu0 %2792
      %2794 = vrot.lane.b32.xlu0 %v2615, 24
      %v2795 = vpop.permute.xlu0 %2794
      %2796 = vrot.lane.b32.xlu0 %v2616, 24
      %v2797 = vpop.permute.xlu0 %2796
      %2798 = vrot.lane.b32.xlu0 %v2617, 24
      %v2799 = vpop.permute.xlu0 %2798
      %2800 = vrot.lane.b32.xlu0 %v2618, 24
      %v2801 = vpop.permute.xlu0 %2800
      %2802 = vrot.lane.b32.xlu0 %v2619, 24
      %v2803 = vpop.permute.xlu0 %2802
      %2804 = vrot.lane.b32.xlu0 %v2620, 24
      %v2805 = vpop.permute.xlu0 %2804
      %2806 = vrot.lane.b32.xlu0 %v2621, 24
      %v2807 = vpop.permute.xlu0 %2806
      %2808 = vrot.lane.b32.xlu0 %v2622, 24
      %v2809 = vpop.permute.xlu0 %2808
      %2810 = vrot.lane.b32.xlu0 %v2623, 24
      %v2811 = vpop.permute.xlu0 %2810
      %2812 = vrot.lane.b32.xlu0 %v2624, 24
      %v2813 = vpop.permute.xlu0 %2812
      %2814 = vrot.lane.b32.xlu0 %v2625, 24
      %v2815 = vpop.permute.xlu0 %2814
      %2816 = vrot.lane.b32.xlu0 %v2626, 24
      %v2817 = vpop.permute.xlu0 %2816
      %2818 = vrot.lane.b32.xlu0 %v2627, 24
      %v2819 = vpop.permute.xlu0 %2818
      %2820 = vrot.lane.b32.xlu0 %v2628, 24
      %v2821 = vpop.permute.xlu0 %2820
      %2822 = vrot.lane.b32.xlu0 %v2791, 24
      %v2823 = vpop.permute.xlu0 %2822
      %v2824 = vunpack.c.l.b16 %v2526
      %v2825 = vunpack.c.l.b16 %v2536
      %v2826 = vpack.c.b16 %v2825, %v2824
      %2827 = vrot.lane.b32.xlu0 %v2662, 32
      %v2828 = vpop.permute.xlu0 %2827
      %2829 = vrot.lane.b32.xlu0 %v2663, 32
      %v2830 = vpop.permute.xlu0 %2829
      %2831 = vrot.lane.b32.xlu0 %v2664, 32
      %v2832 = vpop.permute.xlu0 %2831
      %2833 = vrot.lane.b32.xlu0 %v2665, 32
      %v2834 = vpop.permute.xlu0 %2833
      %2835 = vrot.lane.b32.xlu0 %v2666, 32
      %v2836 = vpop.permute.xlu0 %2835
      %2837 = vrot.lane.b32.xlu0 %v2667, 32
      %v2838 = vpop.permute.xlu0 %2837
      %2839 = vrot.lane.b32.xlu0 %v2668, 32
      %v2840 = vpop.permute.xlu0 %2839
      %2841 = vrot.lane.b32.xlu0 %v2669, 32
      %v2842 = vpop.permute.xlu0 %2841
      %2843 = vrot.lane.b32.xlu0 %v2670, 32
      %v2844 = vpop.permute.xlu0 %2843
      %2845 = vrot.lane.b32.xlu0 %v2671, 32
      %v2846 = vpop.permute.xlu0 %2845
      %2847 = vrot.lane.b32.xlu0 %v2672, 32
      %v2848 = vpop.permute.xlu0 %2847
      %2849 = vrot.lane.b32.xlu0 %v2673, 32
      %v2850 = vpop.permute.xlu0 %2849
      %2851 = vrot.lane.b32.xlu0 %v2674, 32
      %v2852 = vpop.permute.xlu0 %2851
      %2853 = vrot.lane.b32.xlu0 %v2675, 32
      %v2854 = vpop.permute.xlu0 %2853
      %2855 = vrot.lane.b32.xlu0 %v2676, 32
      %v2856 = vpop.permute.xlu0 %2855
      %2857 = vrot.lane.b32.xlu0 %v2826, 32
      %v2858 = vpop.permute.xlu0 %2857
      %v2859 = vunpack.c.l.b16 %v2543
      %v2860 = vunpack.c.l.b16 %v2546
      %v2861 = vpack.c.b16 %v2860, %v2859
      %2862 = vrot.lane.b32.xlu0 %v2742, 40
      %v2863 = vpop.permute.xlu0 %2862
      %2864 = vrot.lane.b32.xlu0 %v2743, 40
      %v2865 = vpop.permute.xlu0 %2864
      %2866 = vrot.lane.b32.xlu0 %v2744, 40
      %v2867 = vpop.permute.xlu0 %2866
      %2868 = vrot.lane.b32.xlu0 %v2745, 40
      %v2869 = vpop.permute.xlu0 %2868
      %2870 = vrot.lane.b32.xlu0 %v2746, 40
      %v2871 = vpop.permute.xlu0 %2870
      %2872 = vrot.lane.b32.xlu0 %v2747, 40
      %v2873 = vpop.permute.xlu0 %2872
      %2874 = vrot.lane.b32.xlu0 %v2748, 40
      %v2875 = vpop.permute.xlu0 %2874
      %2876 = vrot.lane.b32.xlu0 %v2749, 40
      %v2877 = vpop.permute.xlu0 %2876
      %2878 = vrot.lane.b32.xlu0 %v2750, 40
      %v2879 = vpop.permute.xlu0 %2878
      %2880 = vrot.lane.b32.xlu0 %v2751, 40
      %v2881 = vpop.permute.xlu0 %2880
      %2882 = vrot.lane.b32.xlu0 %v2752, 40
      %v2883 = vpop.permute.xlu0 %2882
      %2884 = vrot.lane.b32.xlu0 %v2753, 40
      %v2885 = vpop.permute.xlu0 %2884
      %2886 = vrot.lane.b32.xlu0 %v2754, 40
      %v2887 = vpop.permute.xlu0 %2886
      %2888 = vrot.lane.b32.xlu0 %v2755, 40
      %v2889 = vpop.permute.xlu0 %2888
      %2890 = vrot.lane.b32.xlu0 %v2756, 40
      %v2891 = vpop.permute.xlu0 %2890
      %2892 = vrot.lane.b32.xlu0 %v2861, 40
      %v2893 = vpop.permute.xlu0 %2892
      %v2894 = vunpack.c.l.b16 %v1966
      %v2895 = vunpack.c.l.b16 %v1967
      %v2896 = vpack.c.b16 %v2895, %v2894
      %2897 = vrot.lane.b32.xlu0 %v2615, 48
      %v2898 = vpop.permute.xlu0 %2897
      %2899 = vrot.lane.b32.xlu0 %v2616, 48
      %v2900 = vpop.permute.xlu0 %2899
      %2901 = vrot.lane.b32.xlu0 %v2617, 48
      %v2902 = vpop.permute.xlu0 %2901
      %2903 = vrot.lane.b32.xlu0 %v2618, 48
      %v2904 = vpop.permute.xlu0 %2903
      %2905 = vrot.lane.b32.xlu0 %v2619, 48
      %v2906 = vpop.permute.xlu0 %2905
      %2907 = vrot.lane.b32.xlu0 %v2620, 48
      %v2908 = vpop.permute.xlu0 %2907
      %2909 = vrot.lane.b32.xlu0 %v2621, 48
      %v2910 = vpop.permute.xlu0 %2909
      %2911 = vrot.lane.b32.xlu0 %v2622, 48
      %v2912 = vpop.permute.xlu0 %2911
      %2913 = vrot.lane.b32.xlu0 %v2623, 48
      %v2914 = vpop.permute.xlu0 %2913
      %2915 = vrot.lane.b32.xlu0 %v2624, 48
      %v2916 = vpop.permute.xlu0 %2915
      %2917 = vrot.lane.b32.xlu0 %v2625, 48
      %v2918 = vpop.permute.xlu0 %2917
      %2919 = vrot.lane.b32.xlu0 %v2626, 48
      %v2920 = vpop.permute.xlu0 %2919
      %2921 = vrot.lane.b32.xlu0 %v2627, 48
      %v2922 = vpop.permute.xlu0 %2921
      %2923 = vrot.lane.b32.xlu0 %v2628, 48
      %v2924 = vpop.permute.xlu0 %2923
      %2925 = vrot.lane.b32.xlu0 %v2791, 48
      %v2926 = vpop.permute.xlu0 %2925
      %2927 = vrot.lane.b32.xlu0 %v2896, 48
      %v2928 = vpop.permute.xlu0 %2927
      %v2929 = vunpack.c.l.b16 %v2560
      %v2930 = vunpack.c.l.b16 %v2570
      %v2931 = vpack.c.b16 %v2930, %v2929
      %2932 = vrot.lane.b32.xlu0 %v2663, 56
      %v2933 = vpop.permute.xlu0 %2932
      %2934 = vrot.lane.b32.xlu0 %v2664, 56
      %v2935 = vpop.permute.xlu0 %2934
      %2936 = vrot.lane.b32.xlu0 %v2665, 56
      %v2937 = vpop.permute.xlu0 %2936
      %2938 = vrot.lane.b32.xlu0 %v2666, 56
      %v2939 = vpop.permute.xlu0 %2938
      %2940 = vrot.lane.b32.xlu0 %v2667, 56
      %v2941 = vpop.permute.xlu0 %2940
      %2942 = vrot.lane.b32.xlu0 %v2668, 56
      %v2943 = vpop.permute.xlu0 %2942
      %2944 = vrot.lane.b32.xlu0 %v2669, 56
      %v2945 = vpop.permute.xlu0 %2944
      %2946 = vrot.lane.b32.xlu0 %v2670, 56
      %v2947 = vpop.permute.xlu0 %2946
      %2948 = vrot.lane.b32.xlu0 %v2671, 56
      %v2949 = vpop.permute.xlu0 %2948
      %2950 = vrot.lane.b32.xlu0 %v2672, 56
      %v2951 = vpop.permute.xlu0 %2950
      %2952 = vrot.lane.b32.xlu0 %v2673, 56
      %v2953 = vpop.permute.xlu0 %2952
      %2954 = vrot.lane.b32.xlu0 %v2674, 56
      %v2955 = vpop.permute.xlu0 %2954
      %2956 = vrot.lane.b32.xlu0 %v2675, 56
      %v2957 = vpop.permute.xlu0 %2956
      %2958 = vrot.lane.b32.xlu0 %v2676, 56
      %v2959 = vpop.permute.xlu0 %2958
      %2960 = vrot.lane.b32.xlu0 %v2826, 56
      %v2961 = vpop.permute.xlu0 %2960
      %2962 = vrot.lane.b32.xlu0 %v2931, 56
      %v2963 = vpop.permute.xlu0 %2962
      %v2964 = vunpack.c.l.b16 %v2577
      %v2965 = vunpack.c.l.b16 %v2580
      %v2966 = vpack.c.b16 %v2965, %v2964
      %2967 = vrot.lane.b32.xlu0 %v2743, 64
      %v2968 = vpop.permute.xlu0 %2967
      %2969 = vrot.lane.b32.xlu0 %v2744, 64
      %v2970 = vpop.permute.xlu0 %2969
      %2971 = vrot.lane.b32.xlu0 %v2745, 64
      %v2972 = vpop.permute.xlu0 %2971
      %2973 = vrot.lane.b32.xlu0 %v2746, 64
      %v2974 = vpop.permute.xlu0 %2973
      %2975 = vrot.lane.b32.xlu0 %v2747, 64
      %v2976 = vpop.permute.xlu0 %2975
      %2977 = vrot.lane.b32.xlu0 %v2748, 64
      %v2978 = vpop.permute.xlu0 %2977
      %2979 = vrot.lane.b32.xlu0 %v2749, 64
      %v2980 = vpop.permute.xlu0 %2979
      %2981 = vrot.lane.b32.xlu0 %v2750, 64
      %v2982 = vpop.permute.xlu0 %2981
      %2983 = vrot.lane.b32.xlu0 %v2751, 64
      %v2984 = vpop.permute.xlu0 %2983
      %2985 = vrot.lane.b32.xlu0 %v2752, 64
      %v2986 = vpop.permute.xlu0 %2985
      %2987 = vrot.lane.b32.xlu0 %v2753, 64
      %v2988 = vpop.permute.xlu0 %2987
      %2989 = vrot.lane.b32.xlu0 %v2754, 64
      %v2990 = vpop.permute.xlu0 %2989
      %2991 = vrot.lane.b32.xlu0 %v2755, 64
      %v2992 = vpop.permute.xlu0 %2991
      %2993 = vrot.lane.b32.xlu0 %v2756, 64
      %v2994 = vpop.permute.xlu0 %2993
      %2995 = vrot.lane.b32.xlu0 %v2861, 64
      %v2996 = vpop.permute.xlu0 %2995
      %2997 = vrot.lane.b32.xlu0 %v2966, 64
      %v2998 = vpop.permute.xlu0 %2997
      %v3001 = vsel %vm1459, %v2613, %v2678
      %v3004 = vsel %vm1459, %v2614, %v2680
      %v3007 = vsel %vm1459, %v2615, %v2682
      %v3010 = vsel %vm1459, %v2616, %v2684
      %v3013 = vsel %vm1459, %v2617, %v2686
      %v3016 = vsel %vm1459, %v2618, %v2688
      %v3019 = vsel %vm1459, %v2619, %v2690
      %v3022 = vsel %vm1459, %v2620, %v2692
      %v3025 = vsel %vm1459, %v2621, %v2694
      %v3028 = vsel %vm1459, %v2622, %v2696
      %v3031 = vsel %vm1459, %v2623, %v2698
      %v3034 = vsel %vm1459, %v2624, %v2700
      %v3037 = vsel %vm1459, %v2625, %v2702
      %v3040 = vsel %vm1459, %v2626, %v2704
      %v3043 = vsel %vm1459, %v2627, %v2706
      %v3046 = vsel %vm1459, %v2628, %v2708
      %v3048 = vsel %vm1525, %v3001, %v2758
      %v3050 = vsel %vm1525, %v3004, %v2760
      %v3052 = vsel %vm1525, %v3007, %v2762
      %v3054 = vsel %vm1525, %v3010, %v2764
      %v3056 = vsel %vm1525, %v3013, %v2766
      %v3058 = vsel %vm1525, %v3016, %v2768
      %v3060 = vsel %vm1525, %v3019, %v2770
      %v3062 = vsel %vm1525, %v3022, %v2772
      %v3064 = vsel %vm1525, %v3025, %v2774
      %v3066 = vsel %vm1525, %v3028, %v2776
      %v3068 = vsel %vm1525, %v3031, %v2778
      %v3070 = vsel %vm1525, %v3034, %v2780
      %v3072 = vsel %vm1525, %v3037, %v2782
      %v3074 = vsel %vm1525, %v3040, %v2784
      %v3076 = vsel %vm1525, %v3043, %v2786
      %v3078 = vsel %vm1525, %v3046, %v2788
      %v3080 = vsel %vm1591, %v3048, %v2793
      %v3082 = vsel %vm1591, %v3050, %v2795
      %v3084 = vsel %vm1591, %v3052, %v2797
      %v3086 = vsel %vm1591, %v3054, %v2799
      %v3088 = vsel %vm1591, %v3056, %v2801
      %v3090 = vsel %vm1591, %v3058, %v2803
      %v3092 = vsel %vm1591, %v3060, %v2805
      %v3094 = vsel %vm1591, %v3062, %v2807
      %v3096 = vsel %vm1591, %v3064, %v2809
      %v3098 = vsel %vm1591, %v3066, %v2811
      %v3100 = vsel %vm1591, %v3068, %v2813
      %v3102 = vsel %vm1591, %v3070, %v2815
      %v3104 = vsel %vm1591, %v3072, %v2817
      %v3106 = vsel %vm1591, %v3074, %v2819
      %v3108 = vsel %vm1591, %v3076, %v2821
      %v3110 = vsel %vm1591, %v3078, %v2823
      %v3112 = vsel %vm1657, %v3080, %v2828
      %v3114 = vsel %vm1657, %v3082, %v2830
      %v3116 = vsel %vm1657, %v3084, %v2832
      %v3118 = vsel %vm1657, %v3086, %v2834
      %v3120 = vsel %vm1657, %v3088, %v2836
      %v3122 = vsel %vm1657, %v3090, %v2838
      %v3124 = vsel %vm1657, %v3092, %v2840
      %v3126 = vsel %vm1657, %v3094, %v2842
      %v3128 = vsel %vm1657, %v3096, %v2844
      %v3130 = vsel %vm1657, %v3098, %v2846
      %v3132 = vsel %vm1657, %v3100, %v2848
      %v3134 = vsel %vm1657, %v3102, %v2850
      %v3136 = vsel %vm1657, %v3104, %v2852
      %v3138 = vsel %vm1657, %v3106, %v2854
      %v3140 = vsel %vm1657, %v3108, %v2856
      %v3142 = vsel %vm1657, %v3110, %v2858
      %vm3143 = vcmask 326656
      %v3145 = vsel %vm3143, %v3112, %v2863
      %v3147 = vsel %vm3143, %v3114, %v2865
      %v3149 = vsel %vm3143, %v3116, %v2867
      %v3151 = vsel %vm3143, %v3118, %v2869
      %v3153 = vsel %vm3143, %v3120, %v2871
      %v3155 = vsel %vm3143, %v3122, %v2873
      %v3157 = vsel %vm3143, %v3124, %v2875
      %v3159 = vsel %vm3143, %v3126, %v2877
      %v3161 = vsel %vm3143, %v3128, %v2879
      %v3163 = vsel %vm3143, %v3130, %v2881
      %v3165 = vsel %vm3143, %v3132, %v2883
      %v3167 = vsel %vm3143, %v3134, %v2885
      %v3169 = vsel %vm3143, %v3136, %v2887
      %v3171 = vsel %vm3143, %v3138, %v2889
      %v3173 = vsel %vm3143, %v3140, %v2891
      %v3175 = vsel %vm3143, %v3142, %v2893
      %vm3176 = vcmask 392192
      %v3178 = vsel %vm3176, %v3145, %v2898
      %v3180 = vsel %vm3176, %v3147, %v2900
      %v3182 = vsel %vm3176, %v3149, %v2902
      %v3184 = vsel %vm3176, %v3151, %v2904
      %v3186 = vsel %vm3176, %v3153, %v2906
      %v3188 = vsel %vm3176, %v3155, %v2908
      %v3190 = vsel %vm3176, %v3157, %v2910
      %v3192 = vsel %vm3176, %v3159, %v2912
      %v3194 = vsel %vm3176, %v3161, %v2914
      %v3196 = vsel %vm3176, %v3163, %v2916
      %v3198 = vsel %vm3176, %v3165, %v2918
      %v3200 = vsel %vm3176, %v3167, %v2920
      %v3202 = vsel %vm3176, %v3169, %v2922
      %v3204 = vsel %vm3176, %v3171, %v2924
      %v3206 = vsel %vm3176, %v3173, %v2926
      %v3208 = vsel %vm3176, %v3175, %v2928
      %vm3209 = vcmask 457728
      %v3211 = vsel %vm3209, %v3178, %v2933
      %v3213 = vsel %vm3209, %v3180, %v2935
      %v3215 = vsel %vm3209, %v3182, %v2937
      %v3217 = vsel %vm3209, %v3184, %v2939
      %v3219 = vsel %vm3209, %v3186, %v2941
      %v3221 = vsel %vm3209, %v3188, %v2943
      %v3223 = vsel %vm3209, %v3190, %v2945
      %v3225 = vsel %vm3209, %v3192, %v2947
      %v3227 = vsel %vm3209, %v3194, %v2949
      %v3229 = vsel %vm3209, %v3196, %v2951
      %v3231 = vsel %vm3209, %v3198, %v2953
      %v3233 = vsel %vm3209, %v3200, %v2955
      %v3235 = vsel %vm3209, %v3202, %v2957
      %v3237 = vsel %vm3209, %v3204, %v2959
      %v3239 = vsel %vm3209, %v3206, %v2961
      %v3241 = vsel %vm3209, %v3208, %v2963
      %vm3242 = vcmask 523264
      %v3244 = vsel %vm3242, %v3211, %v2968
      %v3246 = vsel %vm3242, %v3213, %v2970
      %v3248 = vsel %vm3242, %v3215, %v2972
      %v3250 = vsel %vm3242, %v3217, %v2974
      %v3252 = vsel %vm3242, %v3219, %v2976
      %v3254 = vsel %vm3242, %v3221, %v2978
      %v3256 = vsel %vm3242, %v3223, %v2980
      %v3258 = vsel %vm3242, %v3225, %v2982
      %v3260 = vsel %vm3242, %v3227, %v2984
      %v3262 = vsel %vm3242, %v3229, %v2986
      %v3264 = vsel %vm3242, %v3231, %v2988
      %v3266 = vsel %vm3242, %v3233, %v2990
      %v3268 = vsel %vm3242, %v3235, %v2992
      %v3270 = vsel %vm3242, %v3237, %v2994
      %v3272 = vsel %vm3242, %v3239, %v2996
      %v3274 = vsel %vm3242, %v3241, %v2998
      %v3275 = vld [vmem:[%s4] sm:$0xf]
      %v3276 = vld [vmem:[%s4 + $0x4] sm:$0xf]
      %v3277 = vld [vmem:[%s4 + $0x8] sm:$0xf]
      %v3278 = vld [vmem:[%s4 + $0xc] sm:$0xf]
      %v3279 = vld [vmem:[%s4 + $0x10] sm:$0xf]
      %v3280 = vld [vmem:[%s4 + $0x14] sm:$0xf]
      %v3281 = vld [vmem:[%s4 + $0x18] sm:$0xf]
      %v3282 = vld [vmem:[%s4 + $0x1c] sm:$0xf]
      %v3283 = vld [vmem:[%s4 + $0x20] sm:$0xf]
      %v3293 = vunpack.c.l.b16 %v3275
      %v3294 = vunpack.c.l.b16 %v3276
      %v3295 = vunpack.c.l.b16 %v3277
      %v3296 = vunpack.c.l.b16 %v3278
      %v3297 = vunpack.c.l.b16 %v3279
      %v3298 = vunpack.c.l.b16 %v3280
      %v3299 = vunpack.c.l.b16 %v3281
      %v3300 = vunpack.c.l.b16 %v3282
      %v3301 = vunpack.c.l.b16 %v3283
      %v3302 = vpack.c.b16 %v3294, %v3293
      %v3303 = vpack.c.b16 %v3296, %v3295
      %v3304 = vpack.c.b16 %v3298, %v3297
      %v3305 = vpack.c.b16 %v3300, %v3299
      %v3306 = vpack.c.b16 %v3301, %v3301
      %vm3311 = vcmask 588800
      %v3312 = vsel %vm3311, %v3244, 0
      %v3314 = vsel %vm3311, %v3246, 0
      %v3316 = vsel %vm3311, %v3248, 0
      %v3318 = vsel %vm3311, %v3250, 0
      %v3320 = vsel %vm3311, %v3252, 0
      %v3322 = vsel %vm3311, %v3254, 0
      %v3324 = vsel %vm3311, %v3256, 0
      %v3326 = vsel %vm3311, %v3258, 0
      %v3328 = vsel %vm3311, %v3260, 0
      %v3330 = vsel %vm3311, %v3262, 0
      %v3332 = vsel %vm3311, %v3264, 0
      %v3334 = vsel %vm3311, %v3266, 0
      %v3336 = vsel %vm3311, %v3268, 0
      %v3338 = vsel %vm3311, %v3270, 0
      %v3340 = vsel %vm3311, %v3272, 0
      %v3342 = vsel %vm3311, %v3274, 0
      %vm3344 = vcmask 1043456
      %v3346 = vsel %vm3344, %v3306, 0
      %3348 = vmatprep.subr.bf16.mxu0 0
      %3349 = vmatpush1.bf16.msra.mxu0 0
      %3350 = vmatprep.subr.bf16.mxu0 0
      %3351 = vmatpush1.bf16.msra.mxu0 0
      %3352 = vmatprep.subr.bf16.mxu0 0
      %3353 = vmatpush1.bf16.msra.mxu0 0
      %3354 = vmatprep.subr.bf16.mxu0 0
      %3355 = vmatpush1.bf16.msra.mxu0 %v3346
      %3356 = vmatprep.subr.bf16.mxu0 0
      %3357 = vmatpush1.bf16.msra.mxu0 %v3305
      %3358 = vmatprep.subr.bf16.mxu0 0
      %3359 = vmatpush1.bf16.msra.mxu0 %v3304
      %3360 = vmatprep.subr.bf16.mxu0 0
      %3361 = vmatpush1.bf16.msra.mxu0 %v3303
      %3362 = vmatprep.subr.bf16.mxu0 0
      %3363 = vmatpush1.bf16.msra.mxu0 %v3302
      %3364 = vmatprep.subr.bf16.mxu0 0
      %3365 = vmatpush2.bf16.msra.mxu0 0
      %3366 = vmatprep.subr.bf16.mxu0 0
      %3367 = vmatpush2.bf16.msra.mxu0 0
      %3368 = vmatprep.subr.bf16.mxu0 0
      %3369 = vmatpush2.bf16.msra.mxu0 0
      %3370 = vmatprep.subr.bf16.mxu0 0
      %3371 = vmatpush2.bf16.msra.mxu0 0
      %3372 = vmatprep.subr.bf16.mxu0 0
      %3373 = vmatpush2.bf16.msra.mxu0 0
      %3374 = vmatprep.subr.bf16.mxu0 0
      %3375 = vmatpush2.bf16.msra.mxu0 0
      %3376 = vmatprep.subr.bf16.mxu0 0
      %3377 = vmatpush2.bf16.msra.mxu0 0
      %3378 = vmatprep.subr.bf16.mxu0 0
      %3379 = vmatpush2.bf16.msra.mxu0 0
      %3380 = vmatprep.mubr.bf16.mxu0 0
      %3381 = vmatmul.mubr.bf16.gmra.mxu0 %v3312
      %v3382 = vpop.f32.mrf.mxu0
      %v3383 = vadd.f32 0.0, %v3382
      %v3384 = vpop.f32.mrf.mxu0
      %v3385 = vpop.f32.mrf.mxu0
      %v3386 = vadd.f32 0.0, %v3385
      %v3387 = vpop.f32.mrf.mxu0
      %3388 = vmatprep.mubr.bf16.mxu0 0
      %3389 = vmatmul.mubr.bf16.gmra.mxu0 %v3314
      %v3390 = vpop.f32.mrf.mxu0
      %v3391 = vadd.f32 0.0, %v3390
      %v3392 = vpop.f32.mrf.mxu0
      %v3393 = vpop.f32.mrf.mxu0
      %v3394 = vadd.f32 0.0, %v3393
      %v3395 = vpop.f32.mrf.mxu0
      %3396 = vmatprep.mubr.bf16.mxu0 0
      %3397 = vmatmul.mubr.bf16.gmra.mxu0 %v3316
      %v3398 = vpop.f32.mrf.mxu0
      %v3399 = vadd.f32 0.0, %v3398
      %v3400 = vpop.f32.mrf.mxu0
      %v3401 = vpop.f32.mrf.mxu0
      %v3402 = vadd.f32 0.0, %v3401
      %v3403 = vpop.f32.mrf.mxu0
      %3404 = vmatprep.mubr.bf16.mxu0 0
      %3405 = vmatmul.mubr.bf16.gmra.mxu0 %v3318
      %v3406 = vpop.f32.mrf.mxu0
      %v3407 = vadd.f32 0.0, %v3406
      %v3408 = vpop.f32.mrf.mxu0
      %v3409 = vpop.f32.mrf.mxu0
      %v3410 = vadd.f32 0.0, %v3409
      %v3411 = vpop.f32.mrf.mxu0
      %3412 = vmatprep.mubr.bf16.mxu0 0
      %3413 = vmatmul.mubr.bf16.gmra.mxu0 %v3320
      %v3414 = vpop.f32.mrf.mxu0
      %v3415 = vadd.f32 0.0, %v3414
      %v3416 = vpop.f32.mrf.mxu0
      %v3417 = vpop.f32.mrf.mxu0
      %v3418 = vadd.f32 0.0, %v3417
      %v3419 = vpop.f32.mrf.mxu0
      %3420 = vmatprep.mubr.bf16.mxu0 0
      %3421 = vmatmul.mubr.bf16.gmra.mxu0 %v3322
      %v3422 = vpop.f32.mrf.mxu0
      %v3423 = vadd.f32 0.0, %v3422
      %v3424 = vpop.f32.mrf.mxu0
      %v3425 = vpop.f32.mrf.mxu0
      %v3426 = vadd.f32 0.0, %v3425
      %v3427 = vpop.f32.mrf.mxu0
      %3428 = vmatprep.mubr.bf16.mxu0 0
      %3429 = vmatmul.mubr.bf16.gmra.mxu0 %v3324
      %v3430 = vpop.f32.mrf.mxu0
      %v3431 = vadd.f32 0.0, %v3430
      %v3432 = vpop.f32.mrf.mxu0
      %v3433 = vpop.f32.mrf.mxu0
      %v3434 = vadd.f32 0.0, %v3433
      %v3435 = vpop.f32.mrf.mxu0
      %3436 = vmatprep.mubr.bf16.mxu0 0
      %3437 = vmatmul.mubr.bf16.gmra.mxu0 %v3326
      %v3438 = vpop.f32.mrf.mxu0
      %v3439 = vadd.f32 0.0, %v3438
      %v3440 = vpop.f32.mrf.mxu0
      %v3441 = vpop.f32.mrf.mxu0
      %v3442 = vadd.f32 0.0, %v3441
      %v3443 = vpop.f32.mrf.mxu0
      %3444 = vmatprep.mubr.bf16.mxu0 0
      %3445 = vmatmul.mubr.bf16.gmra.mxu0 %v3328
      %v3446 = vpop.f32.mrf.mxu0
      %v3447 = vadd.f32 0.0, %v3446
      %v3448 = vpop.f32.mrf.mxu0
      %v3449 = vpop.f32.mrf.mxu0
      %v3450 = vadd.f32 0.0, %v3449
      %v3451 = vpop.f32.mrf.mxu0
      %3452 = vmatprep.mubr.bf16.mxu0 0
      %3453 = vmatmul.mubr.bf16.gmra.mxu0 %v3330
      %v3454 = vpop.f32.mrf.mxu0
      %v3455 = vadd.f32 0.0, %v3454
      %v3456 = vpop.f32.mrf.mxu0
      %v3457 = vpop.f32.mrf.mxu0
      %v3458 = vadd.f32 0.0, %v3457
      %v3459 = vpop.f32.mrf.mxu0
      %3460 = vmatprep.mubr.bf16.mxu0 0
      %3461 = vmatmul.mubr.bf16.gmra.mxu0 %v3332
      %v3462 = vpop.f32.mrf.mxu0
      %v3463 = vadd.f32 0.0, %v3462
      %v3464 = vpop.f32.mrf.mxu0
      %v3465 = vpop.f32.mrf.mxu0
      %v3466 = vadd.f32 0.0, %v3465
      %v3467 = vpop.f32.mrf.mxu0
      %3468 = vmatprep.mubr.bf16.mxu0 0
      %3469 = vmatmul.mubr.bf16.gmra.mxu0 %v3334
      %v3470 = vpop.f32.mrf.mxu0
      %v3471 = vadd.f32 0.0, %v3470
      %v3472 = vpop.f32.mrf.mxu0
      %v3473 = vpop.f32.mrf.mxu0
      %v3474 = vadd.f32 0.0, %v3473
      %v3475 = vpop.f32.mrf.mxu0
      %3476 = vmatprep.mubr.bf16.mxu0 0
      %3477 = vmatmul.mubr.bf16.gmra.mxu0 %v3336
      %v3478 = vpop.f32.mrf.mxu0
      %v3479 = vadd.f32 0.0, %v3478
      %v3480 = vpop.f32.mrf.mxu0
      %v3481 = vpop.f32.mrf.mxu0
      %v3482 = vadd.f32 0.0, %v3481
      %v3483 = vpop.f32.mrf.mxu0
      %3484 = vmatprep.mubr.bf16.mxu0 0
      %3485 = vmatmul.mubr.bf16.gmra.mxu0 %v3338
      %v3486 = vpop.f32.mrf.mxu0
      %v3487 = vadd.f32 0.0, %v3486
      %v3488 = vpop.f32.mrf.mxu0
      %v3489 = vpop.f32.mrf.mxu0
      %v3490 = vadd.f32 0.0, %v3489
      %v3491 = vpop.f32.mrf.mxu0
      %3492 = vmatprep.mubr.bf16.mxu0 0
      %3493 = vmatmul.mubr.bf16.gmra.mxu0 %v3340
      %v3494 = vpop.f32.mrf.mxu0
      %v3495 = vadd.f32 0.0, %v3494
      %v3496 = vpop.f32.mrf.mxu0
      %v3497 = vpop.f32.mrf.mxu0
      %v3498 = vadd.f32 0.0, %v3497
      %v3499 = vpop.f32.mrf.mxu0
      %3500 = vmatprep.mubr.bf16.mxu0 0
      %3501 = vmatmul.mubr.bf16.gmra.mxu0 %v3342
      %v3502 = vpop.f32.mrf.mxu0
      %v3503 = vadd.f32 0.0, %v3502
      %v3504 = vpop.f32.mrf.mxu0
      %v3505 = vpop.f32.mrf.mxu0
      %v3506 = vadd.f32 0.0, %v3505
      %v3507 = vpop.f32.mrf.mxu0
      %3508 = vdwg.mxu0
      %v3509 = vadd.f32 %v1789, %v3383
      %v3510 = vadd.f32 %v1792, %v3386
      %v3511 = vadd.f32 %v1797, %v3391
      %v3512 = vadd.f32 %v1800, %v3394
      %v3513 = vadd.f32 %v1805, %v3399
      %v3514 = vadd.f32 %v1808, %v3402
      %v3515 = vadd.f32 %v1813, %v3407
      %v3516 = vadd.f32 %v1816, %v3410
      %v3517 = vadd.f32 %v1821, %v3415
      %v3518 = vadd.f32 %v1824, %v3418
      %v3519 = vadd.f32 %v1829, %v3423
      %v3520 = vadd.f32 %v1832, %v3426
      %v3521 = vadd.f32 %v1837, %v3431
      %v3522 = vadd.f32 %v1840, %v3434
      %v3523 = vadd.f32 %v1845, %v3439
      %v3524 = vadd.f32 %v1848, %v3442
      %v3525 = vadd.f32 %v1853, %v3447
      %v3526 = vadd.f32 %v1856, %v3450
      %v3527 = vadd.f32 %v1861, %v3455
      %v3528 = vadd.f32 %v1864, %v3458
      %v3529 = vadd.f32 %v1869, %v3463
      %v3530 = vadd.f32 %v1872, %v3466
      %v3531 = vadd.f32 %v1877, %v3471
      %v3532 = vadd.f32 %v1880, %v3474
      %v3533 = vadd.f32 %v1885, %v3479
      %v3534 = vadd.f32 %v1888, %v3482
      %v3535 = vadd.f32 %v1893, %v3487
      %v3536 = vadd.f32 %v1896, %v3490
      %v3537 = vadd.f32 %v1901, %v3495
      %v3538 = vadd.f32 %v1904, %v3498
      %v3539 = vadd.f32 %v1909, %v3503
      %v3540 = vadd.f32 %v1912, %v3506
      %v3541 = vxor.u32 %v3509, 2147483648
      %v3542 = vxor.u32 %v3510, 2147483648
      %v3543 = vxor.u32 %v3511, 2147483648
      %v3544 = vxor.u32 %v3512, 2147483648
      %v3545 = vxor.u32 %v3513, 2147483648
      %v3546 = vxor.u32 %v3514, 2147483648
      %v3547 = vxor.u32 %v3515, 2147483648
      %v3548 = vxor.u32 %v3516, 2147483648
      %v3549 = vxor.u32 %v3517, 2147483648
      %v3550 = vxor.u32 %v3518, 2147483648
      %v3551 = vxor.u32 %v3519, 2147483648
      %v3552 = vxor.u32 %v3520, 2147483648
      %v3553 = vxor.u32 %v3521, 2147483648
      %v3554 = vxor.u32 %v3522, 2147483648
      %v3555 = vxor.u32 %v3523, 2147483648
      %v3556 = vxor.u32 %v3524, 2147483648
      %v3557 = vxor.u32 %v3525, 2147483648
      %v3558 = vxor.u32 %v3526, 2147483648
      %v3559 = vxor.u32 %v3527, 2147483648
      %v3560 = vxor.u32 %v3528, 2147483648
      %v3561 = vxor.u32 %v3529, 2147483648
      %v3562 = vxor.u32 %v3530, 2147483648
      %v3563 = vxor.u32 %v3531, 2147483648
      %v3564 = vxor.u32 %v3532, 2147483648
      %v3565 = vxor.u32 %v3533, 2147483648
      %v3566 = vxor.u32 %v3534, 2147483648
      %v3567 = vxor.u32 %v3535, 2147483648
      %v3568 = vxor.u32 %v3536, 2147483648
      %v3569 = vxor.u32 %v3537, 2147483648
      %v3570 = vxor.u32 %v3538, 2147483648
      %v3571 = vxor.u32 %v3539, 2147483648
      %v3572 = vxor.u32 %v3540, 2147483648
      %v3573 = vmul.f32 %v3541, 1.442695
      %v3574 = vpow.pop %v3573
      %v3575 = vmul.f32 %v3542, 1.442695
      %v3576 = vpow.pop %v3575
      %v3577 = vmul.f32 %v3543, 1.442695
      %v3578 = vpow.pop %v3577
      %v3579 = vmul.f32 %v3544, 1.442695
      %v3580 = vpow.pop %v3579
      %v3581 = vmul.f32 %v3545, 1.442695
      %v3582 = vpow.pop %v3581
      %v3583 = vmul.f32 %v3546, 1.442695
      %v3584 = vpow.pop %v3583
      %v3585 = vmul.f32 %v3547, 1.442695
      %v3586 = vpow.pop %v3585
      %v3587 = vmul.f32 %v3548, 1.442695
      %v3588 = vpow.pop %v3587
      %v3589 = vmul.f32 %v3549, 1.442695
      %v3590 = vpow.pop %v3589
      %v3591 = vmul.f32 %v3550, 1.442695
      %v3592 = vpow.pop %v3591
      %v3593 = vmul.f32 %v3551, 1.442695
      %v3594 = vpow.pop %v3593
      %v3595 = vmul.f32 %v3552, 1.442695
      %v3596 = vpow.pop %v3595
      %v3597 = vmul.f32 %v3553, 1.442695
      %v3598 = vpow.pop %v3597
      %v3599 = vmul.f32 %v3554, 1.442695
      %v3600 = vpow.pop %v3599
      %v3601 = vmul.f32 %v3555, 1.442695
      %v3602 = vpow.pop %v3601
      %v3603 = vmul.f32 %v3556, 1.442695
      %v3604 = vpow.pop %v3603
      %v3605 = vmul.f32 %v3557, 1.442695
      %v3606 = vpow.pop %v3605
      %v3607 = vmul.f32 %v3558, 1.442695
      %v3608 = vpow.pop %v3607
      %v3609 = vmul.f32 %v3559, 1.442695
      %v3610 = vpow.pop %v3609
      %v3611 = vmul.f32 %v3560, 1.442695
      %v3612 = vpow.pop %v3611
      %v3613 = vmul.f32 %v3561, 1.442695
      %v3614 = vpow.pop %v3613
      %v3615 = vmul.f32 %v3562, 1.442695
      %v3616 = vpow.pop %v3615
      %v3617 = vmul.f32 %v3563, 1.442695
      %v3618 = vpow.pop %v3617
      %v3619 = vmul.f32 %v3564, 1.442695
      %v3620 = vpow.pop %v3619
      %v3621 = vmul.f32 %v3565, 1.442695
      %v3622 = vpow.pop %v3621
      %v3623 = vmul.f32 %v3566, 1.442695
      %v3624 = vpow.pop %v3623
      %v3625 = vmul.f32 %v3567, 1.442695
      %v3626 = vpow.pop %v3625
      %v3627 = vmul.f32 %v3568, 1.442695
      %v3628 = vpow.pop %v3627
      %v3629 = vmul.f32 %v3569, 1.442695
      %v3630 = vpow.pop %v3629
      %v3631 = vmul.f32 %v3570, 1.442695
      %v3632 = vpow.pop %v3631
      %v3633 = vmul.f32 %v3571, 1.442695
      %v3634 = vpow.pop %v3633
      %v3635 = vmul.f32 %v3572, 1.442695
      %v3636 = vpow.pop %v3635
      %v3637 = vadd.f32 %v3574, 1.0
      %v3638 = vadd.f32 %v3576, 1.0
      %v3639 = vadd.f32 %v3578, 1.0
      %v3640 = vadd.f32 %v3580, 1.0
      %v3641 = vadd.f32 %v3582, 1.0
      %v3642 = vadd.f32 %v3584, 1.0
      %v3643 = vadd.f32 %v3586, 1.0
      %v3644 = vadd.f32 %v3588, 1.0
      %v3645 = vadd.f32 %v3590, 1.0
      %v3646 = vadd.f32 %v3592, 1.0
      %v3647 = vadd.f32 %v3594, 1.0
      %v3648 = vadd.f32 %v3596, 1.0
      %v3649 = vadd.f32 %v3598, 1.0
      %v3650 = vadd.f32 %v3600, 1.0
      %v3651 = vadd.f32 %v3602, 1.0
      %v3652 = vadd.f32 %v3604, 1.0
      %v3653 = vadd.f32 %v3606, 1.0
      %v3654 = vadd.f32 %v3608, 1.0
      %v3655 = vadd.f32 %v3610, 1.0
      %v3656 = vadd.f32 %v3612, 1.0
      %v3657 = vadd.f32 %v3614, 1.0
      %v3658 = vadd.f32 %v3616, 1.0
      %v3659 = vadd.f32 %v3618, 1.0
      %v3660 = vadd.f32 %v3620, 1.0
      %v3661 = vadd.f32 %v3622, 1.0
      %v3662 = vadd.f32 %v3624, 1.0
      %v3663 = vadd.f32 %v3626, 1.0
      %v3664 = vadd.f32 %v3628, 1.0
      %v3665 = vadd.f32 %v3630, 1.0
      %v3666 = vadd.f32 %v3632, 1.0
      %v3667 = vadd.f32 %v3634, 1.0
      %v3668 = vadd.f32 %v3636, 1.0
      %v3669 = vrcp.pop %v3637
      %v3670 = vmul.f32 1.0, %v3669
      %v3671 = vrcp.pop %v3638
      %v3672 = vmul.f32 1.0, %v3671
      %v3673 = vrcp.pop %v3639
      %v3674 = vmul.f32 1.0, %v3673
      %v3675 = vrcp.pop %v3640
      %v3676 = vmul.f32 1.0, %v3675
      %v3677 = vrcp.pop %v3641
      %v3678 = vmul.f32 1.0, %v3677
      %v3679 = vrcp.pop %v3642
      %v3680 = vmul.f32 1.0, %v3679
      %v3681 = vrcp.pop %v3643
      %v3682 = vmul.f32 1.0, %v3681
      %v3683 = vrcp.pop %v3644
      %v3684 = vmul.f32 1.0, %v3683
      %v3685 = vrcp.pop %v3645
      %v3686 = vmul.f32 1.0, %v3685
      %v3687 = vrcp.pop %v3646
      %v3688 = vmul.f32 1.0, %v3687
      %v3689 = vrcp.pop %v3647
      %v3690 = vmul.f32 1.0, %v3689
      %v3691 = vrcp.pop %v3648
      %v3692 = vmul.f32 1.0, %v3691
      %v3693 = vrcp.pop %v3649
      %v3694 = vmul.f32 1.0, %v3693
      %v3695 = vrcp.pop %v3650
      %v3696 = vmul.f32 1.0, %v3695
      %v3697 = vrcp.pop %v3651
      %v3698 = vmul.f32 1.0, %v3697
      %v3699 = vrcp.pop %v3652
      %v3700 = vmul.f32 1.0, %v3699
      %v3701 = vrcp.pop %v3653
      %v3702 = vmul.f32 1.0, %v3701
      %v3703 = vrcp.pop %v3654
      %v3704 = vmul.f32 1.0, %v3703
      %v3705 = vrcp.pop %v3655
      %v3706 = vmul.f32 1.0, %v3705
      %v3707 = vrcp.pop %v3656
      %v3708 = vmul.f32 1.0, %v3707
      %v3709 = vrcp.pop %v3657
      %v3710 = vmul.f32 1.0, %v3709
      %v3711 = vrcp.pop %v3658
      %v3712 = vmul.f32 1.0, %v3711
      %v3713 = vrcp.pop %v3659
      %v3714 = vmul.f32 1.0, %v3713
      %v3715 = vrcp.pop %v3660
      %v3716 = vmul.f32 1.0, %v3715
      %v3717 = vrcp.pop %v3661
      %v3718 = vmul.f32 1.0, %v3717
      %v3719 = vrcp.pop %v3662
      %v3720 = vmul.f32 1.0, %v3719
      %v3721 = vrcp.pop %v3663
      %v3722 = vmul.f32 1.0, %v3721
      %v3723 = vrcp.pop %v3664
      %v3724 = vmul.f32 1.0, %v3723
      %v3725 = vrcp.pop %v3665
      %v3726 = vmul.f32 1.0, %v3725
      %v3727 = vrcp.pop %v3666
      %v3728 = vmul.f32 1.0, %v3727
      %v3729 = vrcp.pop %v3667
      %v3730 = vmul.f32 1.0, %v3729
      %v3731 = vrcp.pop %v3668
      %v3732 = vmul.f32 1.0, %v3731
      %v3733 = vld [vmem:[%s313] sm:$0xff]
      %v3734 = vld [vmem:[%s313 + $0x8] sm:$0xff]
      %v3735 = vld [vmem:[%s313 + $0x10] sm:$0xff]
      %v3736 = vld [vmem:[%s313 + $0x18] sm:$0xff]
      %v3737 = vld [vmem:[%s313 + $0x20] sm:$0xff]
      %v3738 = vld [vmem:[%s313 + $0x28] sm:$0xff]
      %v3739 = vld [vmem:[%s313 + $0x30] sm:$0xff]
      %v3740 = vld [vmem:[%s313 + $0x38] sm:$0xff]
      %v3741 = vld [vmem:[%s313 + $0x40] sm:$0xff]
      %v3742 = vld [vmem:[%s313 + $0x48] sm:$0xff]
      %v3743 = vld [vmem:[%s313 + $0x50] sm:$0xff]
      %v3744 = vld [vmem:[%s313 + $0x58] sm:$0xff]
      %v3745 = vld [vmem:[%s313 + $0x60] sm:$0xff]
      %v3746 = vld [vmem:[%s313 + $0x68] sm:$0xff]
      %v3747 = vld [vmem:[%s313 + $0x70] sm:$0xff]
      %v3748 = vld [vmem:[%s313 + $0x78] sm:$0xff]
      %v3749 = vld [vmem:[%s313 + $0x80] sm:$0xff]
      %v3750 = vld [vmem:[%s313 + $0x88] sm:$0xff]
      %v3751 = vld [vmem:[%s313 + $0x90] sm:$0xff]
      %v3752 = vld [vmem:[%s313 + $0x98] sm:$0xff]
      %v3753 = vld [vmem:[%s313 + $0xa0] sm:$0xff]
      %v3754 = vld [vmem:[%s313 + $0xa8] sm:$0xff]
      %v3755 = vld [vmem:[%s313 + $0xb0] sm:$0xff]
      %v3756 = vld [vmem:[%s313 + $0xb8] sm:$0xff]
      %v3757 = vld [vmem:[%s313 + $0xc0] sm:$0xff]
      %v3758 = vld [vmem:[%s313 + $0xc8] sm:$0xff]
      %v3759 = vld [vmem:[%s313 + $0xd0] sm:$0xff]
      %v3760 = vld [vmem:[%s313 + $0xd8] sm:$0xff]
      %v3761 = vld [vmem:[%s313 + $0xe0] sm:$0xff]
      %v3762 = vld [vmem:[%s313 + $0xe8] sm:$0xff]
      %v3763 = vld [vmem:[%s313 + $0xf0] sm:$0xff]
      %v3764 = vld [vmem:[%s313 + $0xf8] sm:$0xff]
      %3765 = vst.msk [vmem:[#allocation2] sm:$0xff] %vm1459, 0.0
      %3766 = vst.msk [vmem:[#allocation2 + $0x8] sm:$0xff] %vm1459, 0.0
      %vm3767 = vcmask 58368
      %3768 = vst.msk [vmem:[#allocation2 + $0x10] sm:$0x3] %vm3767, 0.0
      %s3769 = scalar_lea.vmem [#allocation2], 408
      %3770 = vst.msk [vmem:[%s3769] sm:$0xff] %vm1459, 0.0
      %3771 = vst.msk [vmem:[%s3769 + $0x8] sm:$0xff] %vm1459, 0.0
      %3772 = vst.msk [vmem:[%s3769 + $0x10] sm:$0x3] %vm3767, 0.0
      %s3773 = scalar_lea.vmem [#allocation2], 24
      %vm3774 = vcmask 57344
      %3775 = vst.msk [vmem:[%s3773] sm:$0x1] %vm3774, 0.0
      %3776 = vst.msk [vmem:[%s3773 + $0x18] sm:$0x1] %vm3774, 0.0
      %3777 = vst.msk [vmem:[%s3773 + $0x30] sm:$0x1] %vm3774, 0.0
      %3778 = vst.msk [vmem:[%s3773 + $0x48] sm:$0x1] %vm3774, 0.0
      %3779 = vst.msk [vmem:[%s3773 + $0x60] sm:$0x1] %vm3774, 0.0
      %3780 = vst.msk [vmem:[%s3773 + $0x78] sm:$0x1] %vm3774, 0.0
      %3781 = vst.msk [vmem:[%s3773 + $0x90] sm:$0x1] %vm3774, 0.0
      %3782 = vst.msk [vmem:[%s3773 + $0xa8] sm:$0x1] %vm3774, 0.0
      %3783 = vst.msk [vmem:[%s3773 + $0xc0] sm:$0x1] %vm3774, 0.0
      %3784 = vst.msk [vmem:[%s3773 + $0xd8] sm:$0x1] %vm3774, 0.0
      %3785 = vst.msk [vmem:[%s3773 + $0xf0] sm:$0x1] %vm3774, 0.0
      %3786 = vst.msk [vmem:[%s3773 + $0x108] sm:$0x1] %vm3774, 0.0
      %3787 = vst.msk [vmem:[%s3773 + $0x120] sm:$0x1] %vm3774, 0.0
      %3788 = vst.msk [vmem:[%s3773 + $0x138] sm:$0x1] %vm3774, 0.0
      %3789 = vst.msk [vmem:[%s3773 + $0x150] sm:$0x1] %vm3774, 0.0
      %3790 = vst.msk [vmem:[%s3773 + $0x168] sm:$0x1] %vm3774, 0.0
      %3791 = vst.msk [vmem:[%s3773 + $0x11] sm:$0x1] %vm3774, 0.0
      %3792 = vst.msk [vmem:[%s3773 + $0x29] sm:$0x1] %vm3774, 0.0
      %3793 = vst.msk [vmem:[%s3773 + $0x41] sm:$0x1] %vm3774, 0.0
      %3794 = vst.msk [vmem:[%s3773 + $0x59] sm:$0x1] %vm3774, 0.0
      %3795 = vst.msk [vmem:[%s3773 + $0x71] sm:$0x1] %vm3774, 0.0
      %3796 = vst.msk [vmem:[%s3773 + $0x89] sm:$0x1] %vm3774, 0.0
      %3797 = vst.msk [vmem:[%s3773 + $0xa1] sm:$0x1] %vm3774, 0.0
      %3798 = vst.msk [vmem:[%s3773 + $0xb9] sm:$0x1] %vm3774, 0.0
      %3799 = vst.msk [vmem:[%s3773 + $0xd1] sm:$0x1] %vm3774, 0.0
      %3800 = vst.msk [vmem:[%s3773 + $0xe9] sm:$0x1] %vm3774, 0.0
      %3801 = vst.msk [vmem:[%s3773 + $0x101] sm:$0x1] %vm3774, 0.0
      %3802 = vst.msk [vmem:[%s3773 + $0x119] sm:$0x1] %vm3774, 0.0
      %3803 = vst.msk [vmem:[%s3773 + $0x131] sm:$0x1] %vm3774, 0.0
      %3804 = vst.msk [vmem:[%s3773 + $0x149] sm:$0x1] %vm3774, 0.0
      %3805 = vst.msk [vmem:[%s3773 + $0x161] sm:$0x1] %vm3774, 0.0
      %3806 = vst.msk [vmem:[%s3773 + $0x179] sm:$0x1] %vm3774, 0.0
      %3839 = vrot.lane.b32.xlu0 %v3670, 120
      %v3840 = vpop.permute.xlu0 %3839
      %3841 = vrot.lane.b32.xlu0 %v3672, 120
      %v3842 = vpop.permute.xlu0 %3841
      %3843 = vrot.lane.b32.xlu0 %v3674, 120
      %v3844 = vpop.permute.xlu0 %3843
      %3845 = vrot.lane.b32.xlu0 %v3676, 120
      %v3846 = vpop.permute.xlu0 %3845
      %3847 = vrot.lane.b32.xlu0 %v3678, 120
      %v3848 = vpop.permute.xlu0 %3847
      %3849 = vrot.lane.b32.xlu0 %v3680, 120
      %v3850 = vpop.permute.xlu0 %3849
      %3851 = vrot.lane.b32.xlu0 %v3682, 120
      %v3852 = vpop.permute.xlu0 %3851
      %3853 = vrot.lane.b32.xlu0 %v3684, 120
      %v3854 = vpop.permute.xlu0 %3853
      %3855 = vrot.lane.b32.xlu0 %v3686, 120
      %v3856 = vpop.permute.xlu0 %3855
      %3857 = vrot.lane.b32.xlu0 %v3688, 120
      %v3858 = vpop.permute.xlu0 %3857
      %3859 = vrot.lane.b32.xlu0 %v3690, 120
      %v3860 = vpop.permute.xlu0 %3859
      %3861 = vrot.lane.b32.xlu0 %v3692, 120
      %v3862 = vpop.permute.xlu0 %3861
      %3863 = vrot.lane.b32.xlu0 %v3694, 120
      %v3864 = vpop.permute.xlu0 %3863
      %3865 = vrot.lane.b32.xlu0 %v3696, 120
      %v3866 = vpop.permute.xlu0 %3865
      %3867 = vrot.lane.b32.xlu0 %v3698, 120
      %v3868 = vpop.permute.xlu0 %3867
      %3869 = vrot.lane.b32.xlu0 %v3700, 120
      %v3870 = vpop.permute.xlu0 %3869
      %3871 = vrot.lane.b32.xlu0 %v3702, 120
      %v3872 = vpop.permute.xlu0 %3871
      %3873 = vrot.lane.b32.xlu0 %v3704, 120
      %v3874 = vpop.permute.xlu0 %3873
      %3875 = vrot.lane.b32.xlu0 %v3706, 120
      %v3876 = vpop.permute.xlu0 %3875
      %3877 = vrot.lane.b32.xlu0 %v3708, 120
      %v3878 = vpop.permute.xlu0 %3877
      %3879 = vrot.lane.b32.xlu0 %v3710, 120
      %v3880 = vpop.permute.xlu0 %3879
      %3881 = vrot.lane.b32.xlu0 %v3712, 120
      %v3882 = vpop.permute.xlu0 %3881
      %3883 = vrot.lane.b32.xlu0 %v3714, 120
      %v3884 = vpop.permute.xlu0 %3883
      %3885 = vrot.lane.b32.xlu0 %v3716, 120
      %v3886 = vpop.permute.xlu0 %3885
      %3887 = vrot.lane.b32.xlu0 %v3718, 120
      %v3888 = vpop.permute.xlu0 %3887
      %3889 = vrot.lane.b32.xlu0 %v3720, 120
      %v3890 = vpop.permute.xlu0 %3889
      %3891 = vrot.lane.b32.xlu0 %v3722, 120
      %v3892 = vpop.permute.xlu0 %3891
      %3893 = vrot.lane.b32.xlu0 %v3724, 120
      %v3894 = vpop.permute.xlu0 %3893
      %3895 = vrot.lane.b32.xlu0 %v3726, 120
      %v3896 = vpop.permute.xlu0 %3895
      %3897 = vrot.lane.b32.xlu0 %v3728, 120
      %v3898 = vpop.permute.xlu0 %3897
      %3899 = vrot.lane.b32.xlu0 %v3730, 120
      %v3900 = vpop.permute.xlu0 %3899
      %3901 = vrot.lane.b32.xlu0 %v3732, 120
      %v3902 = vpop.permute.xlu0 %3901
      %v3935 = vmul.f32 %v3733, %v3840
      %v3936 = vmul.f32 %v3734, %v3842
      %v3937 = vmul.f32 %v3735, %v3844
      %v3938 = vmul.f32 %v3736, %v3846
      %v3939 = vmul.f32 %v3737, %v3848
      %v3940 = vmul.f32 %v3738, %v3850
      %v3941 = vmul.f32 %v3739, %v3852
      %v3942 = vmul.f32 %v3740, %v3854
      %v3943 = vmul.f32 %v3741, %v3856
      %v3944 = vmul.f32 %v3742, %v3858
      %v3945 = vmul.f32 %v3743, %v3860
      %v3946 = vmul.f32 %v3744, %v3862
      %v3947 = vmul.f32 %v3745, %v3864
      %v3948 = vmul.f32 %v3746, %v3866
      %v3949 = vmul.f32 %v3747, %v3868
      %v3950 = vmul.f32 %v3748, %v3870
      %v3951 = vmul.f32 %v3749, %v3872
      %v3952 = vmul.f32 %v3750, %v3874
      %v3953 = vmul.f32 %v3751, %v3876
      %v3954 = vmul.f32 %v3752, %v3878
      %v3955 = vmul.f32 %v3753, %v3880
      %v3956 = vmul.f32 %v3754, %v3882
      %v3957 = vmul.f32 %v3755, %v3884
      %v3958 = vmul.f32 %v3756, %v3886
      %v3959 = vmul.f32 %v3757, %v3888
      %v3960 = vmul.f32 %v3758, %v3890
      %v3961 = vmul.f32 %v3759, %v3892
      %v3962 = vmul.f32 %v3760, %v3894
      %v3963 = vmul.f32 %v3761, %v3896
      %v3964 = vmul.f32 %v3762, %v3898
      %v3965 = vmul.f32 %v3763, %v3900
      %v3966 = vmul.f32 %v3764, %v3902
      %3967 = vst.msk [vmem:[%s3773 + $0x1] sm:$0xff] %vm1459, %v3935
      %3968 = vst.msk [vmem:[%s3773 + $0x9] sm:$0xff] %vm1459, %v3936
      %3969 = vst.msk [vmem:[%s3773 + $0x19] sm:$0xff] %vm1459, %v3937
      %3970 = vst.msk [vmem:[%s3773 + $0x21] sm:$0xff] %vm1459, %v3938
      %3971 = vst.msk [vmem:[%s3773 + $0x31] sm:$0xff] %vm1459, %v3939
      %3972 = vst.msk [vmem:[%s3773 + $0x39] sm:$0xff] %vm1459, %v3940
      %3973 = vst.msk [vmem:[%s3773 + $0x49] sm:$0xff] %vm1459, %v3941
      %3974 = vst.msk [vmem:[%s3773 + $0x51] sm:$0xff] %vm1459, %v3942
      %3975 = vst.msk [vmem:[%s3773 + $0x61] sm:$0xff] %vm1459, %v3943
      %3976 = vst.msk [vmem:[%s3773 + $0x69] sm:$0xff] %vm1459, %v3944
      %3977 = vst.msk [vmem:[%s3773 + $0x79] sm:$0xff] %vm1459, %v3945
      %3978 = vst.msk [vmem:[%s3773 + $0x81] sm:$0xff] %vm1459, %v3946
      %3979 = vst.msk [vmem:[%s3773 + $0x91] sm:$0xff] %vm1459, %v3947
      %3980 = vst.msk [vmem:[%s3773 + $0x99] sm:$0xff] %vm1459, %v3948
      %3981 = vst.msk [vmem:[%s3773 + $0xa9] sm:$0xff] %vm1459, %v3949
      %3982 = vst.msk [vmem:[%s3773 + $0xb1] sm:$0xff] %vm1459, %v3950
      %3983 = vst.msk [vmem:[%s3773 + $0xc1] sm:$0xff] %vm1459, %v3951
      %3984 = vst.msk [vmem:[%s3773 + $0xc9] sm:$0xff] %vm1459, %v3952
      %3985 = vst.msk [vmem:[%s3773 + $0xd9] sm:$0xff] %vm1459, %v3953
      %3986 = vst.msk [vmem:[%s3773 + $0xe1] sm:$0xff] %vm1459, %v3954
      %3987 = vst.msk [vmem:[%s3773 + $0xf1] sm:$0xff] %vm1459, %v3955
      %3988 = vst.msk [vmem:[%s3773 + $0xf9] sm:$0xff] %vm1459, %v3956
      %3989 = vst.msk [vmem:[%s3773 + $0x109] sm:$0xff] %vm1459, %v3957
      %3990 = vst.msk [vmem:[%s3773 + $0x111] sm:$0xff] %vm1459, %v3958
      %3991 = vst.msk [vmem:[%s3773 + $0x121] sm:$0xff] %vm1459, %v3959
      %3992 = vst.msk [vmem:[%s3773 + $0x129] sm:$0xff] %vm1459, %v3960
      %3993 = vst.msk [vmem:[%s3773 + $0x139] sm:$0xff] %vm1459, %v3961
      %3994 = vst.msk [vmem:[%s3773 + $0x141] sm:$0xff] %vm1459, %v3962
      %3995 = vst.msk [vmem:[%s3773 + $0x151] sm:$0xff] %vm1459, %v3963
      %3996 = vst.msk [vmem:[%s3773 + $0x159] sm:$0xff] %vm1459, %v3964
      %3997 = vst.msk [vmem:[%s3773 + $0x169] sm:$0xff] %vm1459, %v3965
      %3998 = vst.msk [vmem:[%s3773 + $0x171] sm:$0xff] %vm1459, %v3966
      %v3999 = vld [vmem:[#allocation2] sm:$0xff]
      %v4000 = vld [vmem:[#allocation2 + $0x8] sm:$0xff]
      %v4001 = vld [vmem:[#allocation2 + $0x10] sm:$0x3]
      %v4002 = vld [vmem:[#allocation2 + $0x18] sm:$0xff]
      %v4003 = vld [vmem:[#allocation2 + $0x20] sm:$0xff]
      %v4004 = vld [vmem:[#allocation2 + $0x28] sm:$0x3]
      %v4005 = vld [vmem:[#allocation2 + $0x30] sm:$0xff]
      %v4006 = vld [vmem:[#allocation2 + $0x38] sm:$0xff]
      %v4007 = vld [vmem:[#allocation2 + $0x40] sm:$0x3]
      %v4008 = vld [vmem:[#allocation2 + $0x48] sm:$0xff]
      %v4009 = vld [vmem:[#allocation2 + $0x50] sm:$0xff]
      %v4010 = vld [vmem:[#allocation2 + $0x58] sm:$0x3]
      %v4011 = vld [vmem:[#allocation2 + $0x60] sm:$0xff]
      %v4012 = vld [vmem:[#allocation2 + $0x68] sm:$0xff]
      %v4013 = vld [vmem:[#allocation2 + $0x70] sm:$0x3]
      %v4014 = vld [vmem:[#allocation2 + $0x78] sm:$0xff]
      %v4015 = vld [vmem:[#allocation2 + $0x80] sm:$0xff]
      %v4016 = vld [vmem:[#allocation2 + $0x88] sm:$0x3]
      %v4017 = vld [vmem:[#allocation2 + $0x90] sm:$0xff]
      %v4018 = vld [vmem:[#allocation2 + $0x98] sm:$0xff]
      %v4019 = vld [vmem:[#allocation2 + $0xa0] sm:$0x3]
      %v4020 = vld [vmem:[#allocation2 + $0xa8] sm:$0xff]
      %v4021 = vld [vmem:[#allocation2 + $0xb0] sm:$0xff]
      %v4022 = vld [vmem:[#allocation2 + $0xb8] sm:$0x3]
      %v4023 = vld [vmem:[#allocation2 + $0xc0] sm:$0xff]
      %v4024 = vld [vmem:[#allocation2 + $0xc8] sm:$0xff]
      %v4025 = vld [vmem:[#allocation2 + $0xd0] sm:$0x3]
      %v4026 = vld [vmem:[#allocation2 + $0xd8] sm:$0xff]
      %v4027 = vld [vmem:[#allocation2 + $0xe0] sm:$0xff]
      %v4028 = vld [vmem:[#allocation2 + $0xe8] sm:$0x3]
      %v4029 = vld [vmem:[#allocation2 + $0xf0] sm:$0xff]
      %v4030 = vld [vmem:[#allocation2 + $0xf8] sm:$0xff]
      %v4031 = vld [vmem:[#allocation2 + $0x100] sm:$0x3]
      %v4032 = vld [vmem:[#allocation2 + $0x108] sm:$0xff]
      %v4033 = vld [vmem:[#allocation2 + $0x110] sm:$0xff]
      %v4034 = vld [vmem:[#allocation2 + $0x118] sm:$0x3]
      %v4035 = vld [vmem:[#allocation2 + $0x120] sm:$0xff]
      %v4036 = vld [vmem:[#allocation2 + $0x128] sm:$0xff]
      %v4037 = vld [vmem:[#allocation2 + $0x130] sm:$0x3]
      %v4038 = vld [vmem:[#allocation2 + $0x138] sm:$0xff]
      %v4039 = vld [vmem:[#allocation2 + $0x140] sm:$0xff]
      %v4040 = vld [vmem:[#allocation2 + $0x148] sm:$0x3]
      %v4041 = vld [vmem:[#allocation2 + $0x150] sm:$0xff]
      %v4042 = vld [vmem:[#allocation2 + $0x158] sm:$0xff]
      %v4043 = vld [vmem:[#allocation2 + $0x160] sm:$0x3]
      %v4044 = vld [vmem:[#allocation2 + $0x168] sm:$0xff]
      %v4045 = vld [vmem:[#allocation2 + $0x170] sm:$0xff]
      %v4046 = vld [vmem:[#allocation2 + $0x178] sm:$0x3]
      %v4047 = vld [vmem:[#allocation2 + $0x180] sm:$0xff]
      %v4048 = vld [vmem:[#allocation2 + $0x188] sm:$0xff]
      %v4049 = vld [vmem:[#allocation2 + $0x190] sm:$0x3]
      %v4050 = vld [vmem:[#allocation2 + $0x198] sm:$0xff]
      %v4051 = vld [vmem:[#allocation2 + $0x1a0] sm:$0xff]
      %v4052 = vld [vmem:[#allocation2 + $0x1a8] sm:$0x3]
      %vm4101 = vcmask 1046528
      %v4102 = vrot.slane %v3999, 1
      %v4103 = vrot.slane %v4000, 1
      %v4104 = vsel %vm4101, %v4102, %v4103
      %v4105 = vrot.slane %v4001, 1
      %v4106 = vsel %vm4101, %v4103, %v4105
      %v4107 = vrot.slane %v4002, 1
      %v4108 = vrot.slane %v4003, 1
      %v4109 = vsel %vm4101, %v4107, %v4108
      %v4110 = vrot.slane %v4004, 1
      %v4111 = vsel %vm4101, %v4108, %v4110
      %v4112 = vrot.slane %v4005, 1
      %v4113 = vrot.slane %v4006, 1
      %v4114 = vsel %vm4101, %v4112, %v4113
      %v4115 = vrot.slane %v4007, 1
      %v4116 = vsel %vm4101, %v4113, %v4115
      %v4117 = vrot.slane %v4008, 1
      %v4118 = vrot.slane %v4009, 1
      %v4119 = vsel %vm4101, %v4117, %v4118
      %v4120 = vrot.slane %v4010, 1
      %v4121 = vsel %vm4101, %v4118, %v4120
      %v4122 = vrot.slane %v4011, 1
      %v4123 = vrot.slane %v4012, 1
      %v4124 = vsel %vm4101, %v4122, %v4123
      %v4125 = vrot.slane %v4013, 1
      %v4126 = vsel %vm4101, %v4123, %v4125
      %v4127 = vrot.slane %v4014, 1
      %v4128 = vrot.slane %v4015, 1
      %v4129 = vsel %vm4101, %v4127, %v4128
      %v4130 = vrot.slane %v4016, 1
      %v4131 = vsel %vm4101, %v4128, %v4130
      %v4132 = vrot.slane %v4017, 1
      %v4133 = vrot.slane %v4018, 1
      %v4134 = vsel %vm4101, %v4132, %v4133
      %v4135 = vrot.slane %v4019, 1
      %v4136 = vsel %vm4101, %v4133, %v4135
      %v4137 = vrot.slane %v4020, 1
      %v4138 = vrot.slane %v4021, 1
      %v4139 = vsel %vm4101, %v4137, %v4138
      %v4140 = vrot.slane %v4022, 1
      %v4141 = vsel %vm4101, %v4138, %v4140
      %v4142 = vrot.slane %v4023, 1
      %v4143 = vrot.slane %v4024, 1
      %v4144 = vsel %vm4101, %v4142, %v4143
      %v4145 = vrot.slane %v4025, 1
      %v4146 = vsel %vm4101, %v4143, %v4145
      %v4147 = vrot.slane %v4026, 1
      %v4148 = vrot.slane %v4027, 1
      %v4149 = vsel %vm4101, %v4147, %v4148
      %v4150 = vrot.slane %v4028, 1
      %v4151 = vsel %vm4101, %v4148, %v4150
      %v4152 = vrot.slane %v4029, 1
      %v4153 = vrot.slane %v4030, 1
      %v4154 = vsel %vm4101, %v4152, %v4153
      %v4155 = vrot.slane %v4031, 1
      %v4156 = vsel %vm4101, %v4153, %v4155
      %v4157 = vrot.slane %v4032, 1
      %v4158 = vrot.slane %v4033, 1
      %v4159 = vsel %vm4101, %v4157, %v4158
      %v4160 = vrot.slane %v4034, 1
      %v4161 = vsel %vm4101, %v4158, %v4160
      %v4162 = vrot.slane %v4035, 1
      %v4163 = vrot.slane %v4036, 1
      %v4164 = vsel %vm4101, %v4162, %v4163
      %v4165 = vrot.slane %v4037, 1
      %v4166 = vsel %vm4101, %v4163, %v4165
      %v4167 = vrot.slane %v4038, 1
      %v4168 = vrot.slane %v4039, 1
      %v4169 = vsel %vm4101, %v4167, %v4168
      %v4170 = vrot.slane %v4040, 1
      %v4171 = vsel %vm4101, %v4168, %v4170
      %v4172 = vrot.slane %v4041, 1
      %v4173 = vrot.slane %v4042, 1
      %v4174 = vsel %vm4101, %v4172, %v4173
      %v4175 = vrot.slane %v4043, 1
      %v4176 = vsel %vm4101, %v4173, %v4175
      %v4177 = vrot.slane %v4044, 1
      %v4178 = vrot.slane %v4045, 1
      %v4179 = vsel %vm4101, %v4177, %v4178
      %v4180 = vrot.slane %v4046, 1
      %v4181 = vsel %vm4101, %v4178, %v4180
      %vm4182 = vcmask 1045504
      %v4183 = vrot.slane %v3999, 2
      %v4184 = vrot.slane %v4000, 2
      %v4185 = vsel %vm4182, %v4183, %v4184
      %v4186 = vrot.slane %v4001, 2
      %v4187 = vsel %vm4182, %v4184, %v4186
      %v4188 = vrot.slane %v4002, 2
      %v4189 = vrot.slane %v4003, 2
      %v4190 = vsel %vm4182, %v4188, %v4189
      %v4191 = vrot.slane %v4004, 2
      %v4192 = vsel %vm4182, %v4189, %v4191
      %v4193 = vrot.slane %v4005, 2
      %v4194 = vrot.slane %v4006, 2
      %v4195 = vsel %vm4182, %v4193, %v4194
      %v4196 = vrot.slane %v4007, 2
      %v4197 = vsel %vm4182, %v4194, %v4196
      %v4198 = vrot.slane %v4008, 2
      %v4199 = vrot.slane %v4009, 2
      %v4200 = vsel %vm4182, %v4198, %v4199
      %v4201 = vrot.slane %v4010, 2
      %v4202 = vsel %vm4182, %v4199, %v4201
      %v4203 = vrot.slane %v4011, 2
      %v4204 = vrot.slane %v4012, 2
      %v4205 = vsel %vm4182, %v4203, %v4204
      %v4206 = vrot.slane %v4013, 2
      %v4207 = vsel %vm4182, %v4204, %v4206
      %v4208 = vrot.slane %v4014, 2
      %v4209 = vrot.slane %v4015, 2
      %v4210 = vsel %vm4182, %v4208, %v4209
      %v4211 = vrot.slane %v4016, 2
      %v4212 = vsel %vm4182, %v4209, %v4211
      %v4213 = vrot.slane %v4017, 2
      %v4214 = vrot.slane %v4018, 2
      %v4215 = vsel %vm4182, %v4213, %v4214
      %v4216 = vrot.slane %v4019, 2
      %v4217 = vsel %vm4182, %v4214, %v4216
      %v4218 = vrot.slane %v4020, 2
      %v4219 = vrot.slane %v4021, 2
      %v4220 = vsel %vm4182, %v4218, %v4219
      %v4221 = vrot.slane %v4022, 2
      %v4222 = vsel %vm4182, %v4219, %v4221
      %v4223 = vrot.slane %v4023, 2
      %v4224 = vrot.slane %v4024, 2
      %v4225 = vsel %vm4182, %v4223, %v4224
      %v4226 = vrot.slane %v4025, 2
      %v4227 = vsel %vm4182, %v4224, %v4226
      %v4228 = vrot.slane %v4026, 2
      %v4229 = vrot.slane %v4027, 2
      %v4230 = vsel %vm4182, %v4228, %v4229
      %v4231 = vrot.slane %v4028, 2
      %v4232 = vsel %vm4182, %v4229, %v4231
      %v4233 = vrot.slane %v4029, 2
      %v4234 = vrot.slane %v4030, 2
      %v4235 = vsel %vm4182, %v4233, %v4234
      %v4236 = vrot.slane %v4031, 2
      %v4237 = vsel %vm4182, %v4234, %v4236
      %v4238 = vrot.slane %v4032, 2
      %v4239 = vrot.slane %v4033, 2
      %v4240 = vsel %vm4182, %v4238, %v4239
      %v4241 = vrot.slane %v4034, 2
      %v4242 = vsel %vm4182, %v4239, %v4241
      %v4243 = vrot.slane %v4035, 2
      %v4244 = vrot.slane %v4036, 2
      %v4245 = vsel %vm4182, %v4243, %v4244
      %v4246 = vrot.slane %v4037, 2
      %v4247 = vsel %vm4182, %v4244, %v4246
      %v4248 = vrot.slane %v4038, 2
      %v4249 = vrot.slane %v4039, 2
      %v4250 = vsel %vm4182, %v4248, %v4249
      %v4251 = vrot.slane %v4040, 2
      %v4252 = vsel %vm4182, %v4249, %v4251
      %v4253 = vrot.slane %v4041, 2
      %v4254 = vrot.slane %v4042, 2
      %v4255 = vsel %vm4182, %v4253, %v4254
      %v4256 = vrot.slane %v4043, 2
      %v4257 = vsel %vm4182, %v4254, %v4256
      %v4258 = vrot.slane %v4044, 2
      %v4259 = vrot.slane %v4045, 2
      %v4260 = vsel %vm4182, %v4258, %v4259
      %v4261 = vrot.slane %v4046, 2
      %v4262 = vsel %vm4182, %v4259, %v4261
      %v4266 = vrot.slane %v4047, 1
      %v4267 = vrot.slane %v4048, 1
      %v4268 = vsel %vm4101, %v4266, %v4267
      %v4269 = vrot.slane %v4049, 1
      %v4270 = vsel %vm4101, %v4267, %v4269
      %v4271 = vrot.slane %v4047, 2
      %v4272 = vrot.slane %v4048, 2
      %v4273 = vsel %vm4182, %v4271, %v4272
      %v4274 = vrot.slane %v4049, 2
      %v4275 = vsel %vm4182, %v4272, %v4274
      %v4279 = vrot.slane %v4050, 1
      %v4280 = vrot.slane %v4051, 1
      %v4281 = vsel %vm4101, %v4279, %v4280
      %v4282 = vrot.slane %v4052, 1
      %v4283 = vsel %vm4101, %v4280, %v4282
      %v4284 = vrot.slane %v4050, 2
      %v4285 = vrot.slane %v4051, 2
      %v4286 = vsel %vm4182, %v4284, %v4285
      %v4287 = vrot.slane %v4052, 2
      %v4288 = vsel %vm4182, %v4285, %v4287
      %4289 = vrot.lane.b32.xlu0 %v4104, 8
      %v4290 = vpop.permute.xlu0 %4289
      %4291 = vrot.lane.b32.xlu0 %v4106, 8
      %v4292 = vpop.permute.xlu0 %4291
      %4293 = vrot.lane.b32.xlu0 %v4109, 8
      %v4294 = vpop.permute.xlu0 %4293
      %4295 = vrot.lane.b32.xlu0 %v4111, 8
      %v4296 = vpop.permute.xlu0 %4295
      %4297 = vrot.lane.b32.xlu0 %v4114, 8
      %v4298 = vpop.permute.xlu0 %4297
      %4299 = vrot.lane.b32.xlu0 %v4116, 8
      %v4300 = vpop.permute.xlu0 %4299
      %4301 = vrot.lane.b32.xlu0 %v4119, 8
      %v4302 = vpop.permute.xlu0 %4301
      %4303 = vrot.lane.b32.xlu0 %v4121, 8
      %v4304 = vpop.permute.xlu0 %4303
      %4305 = vrot.lane.b32.xlu0 %v4124, 8
      %v4306 = vpop.permute.xlu0 %4305
      %4307 = vrot.lane.b32.xlu0 %v4126, 8
      %v4308 = vpop.permute.xlu0 %4307
      %4309 = vrot.lane.b32.xlu0 %v4129, 8
      %v4310 = vpop.permute.xlu0 %4309
      %4311 = vrot.lane.b32.xlu0 %v4131, 8
      %v4312 = vpop.permute.xlu0 %4311
      %4313 = vrot.lane.b32.xlu0 %v4134, 8
      %v4314 = vpop.permute.xlu0 %4313
      %4315 = vrot.lane.b32.xlu0 %v4136, 8
      %v4316 = vpop.permute.xlu0 %4315
      %4317 = vrot.lane.b32.xlu0 %v4139, 8
      %v4318 = vpop.permute.xlu0 %4317
      %4319 = vrot.lane.b32.xlu0 %v4141, 8
      %v4320 = vpop.permute.xlu0 %4319
      %4321 = vrot.lane.b32.xlu0 %v4144, 8
      %v4322 = vpop.permute.xlu0 %4321
      %4323 = vrot.lane.b32.xlu0 %v4146, 8
      %v4324 = vpop.permute.xlu0 %4323
      %4325 = vrot.lane.b32.xlu0 %v4149, 8
      %v4326 = vpop.permute.xlu0 %4325
      %4327 = vrot.lane.b32.xlu0 %v4151, 8
      %v4328 = vpop.permute.xlu0 %4327
      %4329 = vrot.lane.b32.xlu0 %v4154, 8
      %v4330 = vpop.permute.xlu0 %4329
      %4331 = vrot.lane.b32.xlu0 %v4156, 8
      %v4332 = vpop.permute.xlu0 %4331
      %4333 = vrot.lane.b32.xlu0 %v4159, 8
      %v4334 = vpop.permute.xlu0 %4333
      %4335 = vrot.lane.b32.xlu0 %v4161, 8
      %v4336 = vpop.permute.xlu0 %4335
      %4337 = vrot.lane.b32.xlu0 %v4164, 8
      %v4338 = vpop.permute.xlu0 %4337
      %4339 = vrot.lane.b32.xlu0 %v4166, 8
      %v4340 = vpop.permute.xlu0 %4339
      %4341 = vrot.lane.b32.xlu0 %v4169, 8
      %v4342 = vpop.permute.xlu0 %4341
      %4343 = vrot.lane.b32.xlu0 %v4171, 8
      %v4344 = vpop.permute.xlu0 %4343
      %4345 = vrot.lane.b32.xlu0 %v4174, 8
      %v4346 = vpop.permute.xlu0 %4345
      %4347 = vrot.lane.b32.xlu0 %v4176, 8
      %v4348 = vpop.permute.xlu0 %4347
      %4349 = vrot.lane.b32.xlu0 %v4179, 8
      %v4350 = vpop.permute.xlu0 %4349
      %4351 = vrot.lane.b32.xlu0 %v4181, 8
      %v4352 = vpop.permute.xlu0 %4351
      %4385 = vrot.lane.b32.xlu0 %v4185, 16
      %v4386 = vpop.permute.xlu0 %4385
      %4387 = vrot.lane.b32.xlu0 %v4187, 16
      %v4388 = vpop.permute.xlu0 %4387
      %4389 = vrot.lane.b32.xlu0 %v4190, 16
      %v4390 = vpop.permute.xlu0 %4389
      %4391 = vrot.lane.b32.xlu0 %v4192, 16
      %v4392 = vpop.permute.xlu0 %4391
      %4393 = vrot.lane.b32.xlu0 %v4195, 16
      %v4394 = vpop.permute.xlu0 %4393
      %4395 = vrot.lane.b32.xlu0 %v4197, 16
      %v4396 = vpop.permute.xlu0 %4395
      %4397 = vrot.lane.b32.xlu0 %v4200, 16
      %v4398 = vpop.permute.xlu0 %4397
      %4399 = vrot.lane.b32.xlu0 %v4202, 16
      %v4400 = vpop.permute.xlu0 %4399
      %4401 = vrot.lane.b32.xlu0 %v4205, 16
      %v4402 = vpop.permute.xlu0 %4401
      %4403 = vrot.lane.b32.xlu0 %v4207, 16
      %v4404 = vpop.permute.xlu0 %4403
      %4405 = vrot.lane.b32.xlu0 %v4210, 16
      %v4406 = vpop.permute.xlu0 %4405
      %4407 = vrot.lane.b32.xlu0 %v4212, 16
      %v4408 = vpop.permute.xlu0 %4407
      %4409 = vrot.lane.b32.xlu0 %v4215, 16
      %v4410 = vpop.permute.xlu0 %4409
      %4411 = vrot.lane.b32.xlu0 %v4217, 16
      %v4412 = vpop.permute.xlu0 %4411
      %4413 = vrot.lane.b32.xlu0 %v4220, 16
      %v4414 = vpop.permute.xlu0 %4413
      %4415 = vrot.lane.b32.xlu0 %v4222, 16
      %v4416 = vpop.permute.xlu0 %4415
      %4417 = vrot.lane.b32.xlu0 %v4225, 16
      %v4418 = vpop.permute.xlu0 %4417
      %4419 = vrot.lane.b32.xlu0 %v4227, 16
      %v4420 = vpop.permute.xlu0 %4419
      %4421 = vrot.lane.b32.xlu0 %v4230, 16
      %v4422 = vpop.permute.xlu0 %4421
      %4423 = vrot.lane.b32.xlu0 %v4232, 16
      %v4424 = vpop.permute.xlu0 %4423
      %4425 = vrot.lane.b32.xlu0 %v4235, 16
      %v4426 = vpop.permute.xlu0 %4425
      %4427 = vrot.lane.b32.xlu0 %v4237, 16
      %v4428 = vpop.permute.xlu0 %4427
      %4429 = vrot.lane.b32.xlu0 %v4240, 16
      %v4430 = vpop.permute.xlu0 %4429
      %4431 = vrot.lane.b32.xlu0 %v4242, 16
      %v4432 = vpop.permute.xlu0 %4431
      %4433 = vrot.lane.b32.xlu0 %v4245, 16
      %v4434 = vpop.permute.xlu0 %4433
      %4435 = vrot.lane.b32.xlu0 %v4247, 16
      %v4436 = vpop.permute.xlu0 %4435
      %4437 = vrot.lane.b32.xlu0 %v4250, 16
      %v4438 = vpop.permute.xlu0 %4437
      %4439 = vrot.lane.b32.xlu0 %v4252, 16
      %v4440 = vpop.permute.xlu0 %4439
      %4441 = vrot.lane.b32.xlu0 %v4255, 16
      %v4442 = vpop.permute.xlu0 %4441
      %4443 = vrot.lane.b32.xlu0 %v4257, 16
      %v4444 = vpop.permute.xlu0 %4443
      %4445 = vrot.lane.b32.xlu0 %v4260, 16
      %v4446 = vpop.permute.xlu0 %4445
      %4447 = vrot.lane.b32.xlu0 %v4262, 16
      %v4448 = vpop.permute.xlu0 %4447
      %4481 = vrot.lane.b32.xlu0 %v4002, 24
      %v4482 = vpop.permute.xlu0 %4481
      %4483 = vrot.lane.b32.xlu0 %v4003, 24
      %v4484 = vpop.permute.xlu0 %4483
      %4485 = vrot.lane.b32.xlu0 %v4005, 24
      %v4486 = vpop.permute.xlu0 %4485
      %4487 = vrot.lane.b32.xlu0 %v4006, 24
      %v4488 = vpop.permute.xlu0 %4487
      %4489 = vrot.lane.b32.xlu0 %v4008, 24
      %v4490 = vpop.permute.xlu0 %4489
      %4491 = vrot.lane.b32.xlu0 %v4009, 24
      %v4492 = vpop.permute.xlu0 %4491
      %4493 = vrot.lane.b32.xlu0 %v4011, 24
      %v4494 = vpop.permute.xlu0 %4493
      %4495 = vrot.lane.b32.xlu0 %v4012, 24
      %v4496 = vpop.permute.xlu0 %4495
      %4497 = vrot.lane.b32.xlu0 %v4014, 24
      %v4498 = vpop.permute.xlu0 %4497
      %4499 = vrot.lane.b32.xlu0 %v4015, 24
      %v4500 = vpop.permute.xlu0 %4499
      %4501 = vrot.lane.b32.xlu0 %v4017, 24
      %v4502 = vpop.permute.xlu0 %4501
      %4503 = vrot.lane.b32.xlu0 %v4018, 24
      %v4504 = vpop.permute.xlu0 %4503
      %4505 = vrot.lane.b32.xlu0 %v4020, 24
      %v4506 = vpop.permute.xlu0 %4505
      %4507 = vrot.lane.b32.xlu0 %v4021, 24
      %v4508 = vpop.permute.xlu0 %4507
      %4509 = vrot.lane.b32.xlu0 %v4023, 24
      %v4510 = vpop.permute.xlu0 %4509
      %4511 = vrot.lane.b32.xlu0 %v4024, 24
      %v4512 = vpop.permute.xlu0 %4511
      %4513 = vrot.lane.b32.xlu0 %v4026, 24
      %v4514 = vpop.permute.xlu0 %4513
      %4515 = vrot.lane.b32.xlu0 %v4027, 24
      %v4516 = vpop.permute.xlu0 %4515
      %4517 = vrot.lane.b32.xlu0 %v4029, 24
      %v4518 = vpop.permute.xlu0 %4517
      %4519 = vrot.lane.b32.xlu0 %v4030, 24
      %v4520 = vpop.permute.xlu0 %4519
      %4521 = vrot.lane.b32.xlu0 %v4032, 24
      %v4522 = vpop.permute.xlu0 %4521
      %4523 = vrot.lane.b32.xlu0 %v4033, 24
      %v4524 = vpop.permute.xlu0 %4523
      %4525 = vrot.lane.b32.xlu0 %v4035, 24
      %v4526 = vpop.permute.xlu0 %4525
      %4527 = vrot.lane.b32.xlu0 %v4036, 24
      %v4528 = vpop.permute.xlu0 %4527
      %4529 = vrot.lane.b32.xlu0 %v4038, 24
      %v4530 = vpop.permute.xlu0 %4529
      %4531 = vrot.lane.b32.xlu0 %v4039, 24
      %v4532 = vpop.permute.xlu0 %4531
      %4533 = vrot.lane.b32.xlu0 %v4041, 24
      %v4534 = vpop.permute.xlu0 %4533
      %4535 = vrot.lane.b32.xlu0 %v4042, 24
      %v4536 = vpop.permute.xlu0 %4535
      %4537 = vrot.lane.b32.xlu0 %v4044, 24
      %v4538 = vpop.permute.xlu0 %4537
      %4539 = vrot.lane.b32.xlu0 %v4045, 24
      %v4540 = vpop.permute.xlu0 %4539
      %4541 = vrot.lane.b32.xlu0 %v4047, 24
      %v4542 = vpop.permute.xlu0 %4541
      %4543 = vrot.lane.b32.xlu0 %v4048, 24
      %v4544 = vpop.permute.xlu0 %4543
      %4577 = vrot.lane.b32.xlu0 %v4109, 32
      %v4578 = vpop.permute.xlu0 %4577
      %4579 = vrot.lane.b32.xlu0 %v4111, 32
      %v4580 = vpop.permute.xlu0 %4579
      %4581 = vrot.lane.b32.xlu0 %v4114, 32
      %v4582 = vpop.permute.xlu0 %4581
      %4583 = vrot.lane.b32.xlu0 %v4116, 32
      %v4584 = vpop.permute.xlu0 %4583
      %4585 = vrot.lane.b32.xlu0 %v4119, 32
      %v4586 = vpop.permute.xlu0 %4585
      %4587 = vrot.lane.b32.xlu0 %v4121, 32
      %v4588 = vpop.permute.xlu0 %4587
      %4589 = vrot.lane.b32.xlu0 %v4124, 32
      %v4590 = vpop.permute.xlu0 %4589
      %4591 = vrot.lane.b32.xlu0 %v4126, 32
      %v4592 = vpop.permute.xlu0 %4591
      %4593 = vrot.lane.b32.xlu0 %v4129, 32
      %v4594 = vpop.permute.xlu0 %4593
      %4595 = vrot.lane.b32.xlu0 %v4131, 32
      %v4596 = vpop.permute.xlu0 %4595
      %4597 = vrot.lane.b32.xlu0 %v4134, 32
      %v4598 = vpop.permute.xlu0 %4597
      %4599 = vrot.lane.b32.xlu0 %v4136, 32
      %v4600 = vpop.permute.xlu0 %4599
      %4601 = vrot.lane.b32.xlu0 %v4139, 32
      %v4602 = vpop.permute.xlu0 %4601
      %4603 = vrot.lane.b32.xlu0 %v4141, 32
      %v4604 = vpop.permute.xlu0 %4603
      %4605 = vrot.lane.b32.xlu0 %v4144, 32
      %v4606 = vpop.permute.xlu0 %4605
      %4607 = vrot.lane.b32.xlu0 %v4146, 32
      %v4608 = vpop.permute.xlu0 %4607
      %4609 = vrot.lane.b32.xlu0 %v4149, 32
      %v4610 = vpop.permute.xlu0 %4609
      %4611 = vrot.lane.b32.xlu0 %v4151, 32
      %v4612 = vpop.permute.xlu0 %4611
      %4613 = vrot.lane.b32.xlu0 %v4154, 32
      %v4614 = vpop.permute.xlu0 %4613
      %4615 = vrot.lane.b32.xlu0 %v4156, 32
      %v4616 = vpop.permute.xlu0 %4615
      %4617 = vrot.lane.b32.xlu0 %v4159, 32
      %v4618 = vpop.permute.xlu0 %4617
      %4619 = vrot.lane.b32.xlu0 %v4161, 32
      %v4620 = vpop.permute.xlu0 %4619
      %4621 = vrot.lane.b32.xlu0 %v4164, 32
      %v4622 = vpop.permute.xlu0 %4621
      %4623 = vrot.lane.b32.xlu0 %v4166, 32
      %v4624 = vpop.permute.xlu0 %4623
      %4625 = vrot.lane.b32.xlu0 %v4169, 32
      %v4626 = vpop.permute.xlu0 %4625
      %4627 = vrot.lane.b32.xlu0 %v4171, 32
      %v4628 = vpop.permute.xlu0 %4627
      %4629 = vrot.lane.b32.xlu0 %v4174, 32
      %v4630 = vpop.permute.xlu0 %4629
      %4631 = vrot.lane.b32.xlu0 %v4176, 32
      %v4632 = vpop.permute.xlu0 %4631
      %4633 = vrot.lane.b32.xlu0 %v4179, 32
      %v4634 = vpop.permute.xlu0 %4633
      %4635 = vrot.lane.b32.xlu0 %v4181, 32
      %v4636 = vpop.permute.xlu0 %4635
      %4637 = vrot.lane.b32.xlu0 %v4268, 32
      %v4638 = vpop.permute.xlu0 %4637
      %4639 = vrot.lane.b32.xlu0 %v4270, 32
      %v4640 = vpop.permute.xlu0 %4639
      %4673 = vrot.lane.b32.xlu0 %v4190, 40
      %v4674 = vpop.permute.xlu0 %4673
      %4675 = vrot.lane.b32.xlu0 %v4192, 40
      %v4676 = vpop.permute.xlu0 %4675
      %4677 = vrot.lane.b32.xlu0 %v4195, 40
      %v4678 = vpop.permute.xlu0 %4677
      %4679 = vrot.lane.b32.xlu0 %v4197, 40
      %v4680 = vpop.permute.xlu0 %4679
      %4681 = vrot.lane.b32.xlu0 %v4200, 40
      %v4682 = vpop.permute.xlu0 %4681
      %4683 = vrot.lane.b32.xlu0 %v4202, 40
      %v4684 = vpop.permute.xlu0 %4683
      %4685 = vrot.lane.b32.xlu0 %v4205, 40
      %v4686 = vpop.permute.xlu0 %4685
      %4687 = vrot.lane.b32.xlu0 %v4207, 40
      %v4688 = vpop.permute.xlu0 %4687
      %4689 = vrot.lane.b32.xlu0 %v4210, 40
      %v4690 = vpop.permute.xlu0 %4689
      %4691 = vrot.lane.b32.xlu0 %v4212, 40
      %v4692 = vpop.permute.xlu0 %4691
      %4693 = vrot.lane.b32.xlu0 %v4215, 40
      %v4694 = vpop.permute.xlu0 %4693
      %4695 = vrot.lane.b32.xlu0 %v4217, 40
      %v4696 = vpop.permute.xlu0 %4695
      %4697 = vrot.lane.b32.xlu0 %v4220, 40
      %v4698 = vpop.permute.xlu0 %4697
      %4699 = vrot.lane.b32.xlu0 %v4222, 40
      %v4700 = vpop.permute.xlu0 %4699
      %4701 = vrot.lane.b32.xlu0 %v4225, 40
      %v4702 = vpop.permute.xlu0 %4701
      %4703 = vrot.lane.b32.xlu0 %v4227, 40
      %v4704 = vpop.permute.xlu0 %4703
      %4705 = vrot.lane.b32.xlu0 %v4230, 40
      %v4706 = vpop.permute.xlu0 %4705
      %4707 = vrot.lane.b32.xlu0 %v4232, 40
      %v4708 = vpop.permute.xlu0 %4707
      %4709 = vrot.lane.b32.xlu0 %v4235, 40
      %v4710 = vpop.permute.xlu0 %4709
      %4711 = vrot.lane.b32.xlu0 %v4237, 40
      %v4712 = vpop.permute.xlu0 %4711
      %4713 = vrot.lane.b32.xlu0 %v4240, 40
      %v4714 = vpop.permute.xlu0 %4713
      %4715 = vrot.lane.b32.xlu0 %v4242, 40
      %v4716 = vpop.permute.xlu0 %4715
      %4717 = vrot.lane.b32.xlu0 %v4245, 40
      %v4718 = vpop.permute.xlu0 %4717
      %4719 = vrot.lane.b32.xlu0 %v4247, 40
      %v4720 = vpop.permute.xlu0 %4719
      %4721 = vrot.lane.b32.xlu0 %v4250, 40
      %v4722 = vpop.permute.xlu0 %4721
      %4723 = vrot.lane.b32.xlu0 %v4252, 40
      %v4724 = vpop.permute.xlu0 %4723
      %4725 = vrot.lane.b32.xlu0 %v4255, 40
      %v4726 = vpop.permute.xlu0 %4725
      %4727 = vrot.lane.b32.xlu0 %v4257, 40
      %v4728 = vpop.permute.xlu0 %4727
      %4729 = vrot.lane.b32.xlu0 %v4260, 40
      %v4730 = vpop.permute.xlu0 %4729
      %4731 = vrot.lane.b32.xlu0 %v4262, 40
      %v4732 = vpop.permute.xlu0 %4731
      %4733 = vrot.lane.b32.xlu0 %v4273, 40
      %v4734 = vpop.permute.xlu0 %4733
      %4735 = vrot.lane.b32.xlu0 %v4275, 40
      %v4736 = vpop.permute.xlu0 %4735
      %4769 = vrot.lane.b32.xlu0 %v4005, 48
      %v4770 = vpop.permute.xlu0 %4769
      %4771 = vrot.lane.b32.xlu0 %v4006, 48
      %v4772 = vpop.permute.xlu0 %4771
      %4773 = vrot.lane.b32.xlu0 %v4008, 48
      %v4774 = vpop.permute.xlu0 %4773
      %4775 = vrot.lane.b32.xlu0 %v4009, 48
      %v4776 = vpop.permute.xlu0 %4775
      %4777 = vrot.lane.b32.xlu0 %v4011, 48
      %v4778 = vpop.permute.xlu0 %4777
      %4779 = vrot.lane.b32.xlu0 %v4012, 48
      %v4780 = vpop.permute.xlu0 %4779
      %4781 = vrot.lane.b32.xlu0 %v4014, 48
      %v4782 = vpop.permute.xlu0 %4781
      %4783 = vrot.lane.b32.xlu0 %v4015, 48
      %v4784 = vpop.permute.xlu0 %4783
      %4785 = vrot.lane.b32.xlu0 %v4017, 48
      %v4786 = vpop.permute.xlu0 %4785
      %4787 = vrot.lane.b32.xlu0 %v4018, 48
      %v4788 = vpop.permute.xlu0 %4787
      %4789 = vrot.lane.b32.xlu0 %v4020, 48
      %v4790 = vpop.permute.xlu0 %4789
      %4791 = vrot.lane.b32.xlu0 %v4021, 48
      %v4792 = vpop.permute.xlu0 %4791
      %4793 = vrot.lane.b32.xlu0 %v4023, 48
      %v4794 = vpop.permute.xlu0 %4793
      %4795 = vrot.lane.b32.xlu0 %v4024, 48
      %v4796 = vpop.permute.xlu0 %4795
      %4797 = vrot.lane.b32.xlu0 %v4026, 48
      %v4798 = vpop.permute.xlu0 %4797
      %4799 = vrot.lane.b32.xlu0 %v4027, 48
      %v4800 = vpop.permute.xlu0 %4799
      %4801 = vrot.lane.b32.xlu0 %v4029, 48
      %v4802 = vpop.permute.xlu0 %4801
      %4803 = vrot.lane.b32.xlu0 %v4030, 48
      %v4804 = vpop.permute.xlu0 %4803
      %4805 = vrot.lane.b32.xlu0 %v4032, 48
      %v4806 = vpop.permute.xlu0 %4805
      %4807 = vrot.lane.b32.xlu0 %v4033, 48
      %v4808 = vpop.permute.xlu0 %4807
      %4809 = vrot.lane.b32.xlu0 %v4035, 48
      %v4810 = vpop.permute.xlu0 %4809
      %4811 = vrot.lane.b32.xlu0 %v4036, 48
      %v4812 = vpop.permute.xlu0 %4811
      %4813 = vrot.lane.b32.xlu0 %v4038, 48
      %v4814 = vpop.permute.xlu0 %4813
      %4815 = vrot.lane.b32.xlu0 %v4039, 48
      %v4816 = vpop.permute.xlu0 %4815
      %4817 = vrot.lane.b32.xlu0 %v4041, 48
      %v4818 = vpop.permute.xlu0 %4817
      %4819 = vrot.lane.b32.xlu0 %v4042, 48
      %v4820 = vpop.permute.xlu0 %4819
      %4821 = vrot.lane.b32.xlu0 %v4044, 48
      %v4822 = vpop.permute.xlu0 %4821
      %4823 = vrot.lane.b32.xlu0 %v4045, 48
      %v4824 = vpop.permute.xlu0 %4823
      %4825 = vrot.lane.b32.xlu0 %v4047, 48
      %v4826 = vpop.permute.xlu0 %4825
      %4827 = vrot.lane.b32.xlu0 %v4048, 48
      %v4828 = vpop.permute.xlu0 %4827
      %4829 = vrot.lane.b32.xlu0 %v4050, 48
      %v4830 = vpop.permute.xlu0 %4829
      %4831 = vrot.lane.b32.xlu0 %v4051, 48
      %v4832 = vpop.permute.xlu0 %4831
      %4865 = vrot.lane.b32.xlu0 %v4114, 56
      %v4866 = vpop.permute.xlu0 %4865
      %4867 = vrot.lane.b32.xlu0 %v4116, 56
      %v4868 = vpop.permute.xlu0 %4867
      %4869 = vrot.lane.b32.xlu0 %v4119, 56
      %v4870 = vpop.permute.xlu0 %4869
      %4871 = vrot.lane.b32.xlu0 %v4121, 56
      %v4872 = vpop.permute.xlu0 %4871
      %4873 = vrot.lane.b32.xlu0 %v4124, 56
      %v4874 = vpop.permute.xlu0 %4873
      %4875 = vrot.lane.b32.xlu0 %v4126, 56
      %v4876 = vpop.permute.xlu0 %4875
      %4877 = vrot.lane.b32.xlu0 %v4129, 56
      %v4878 = vpop.permute.xlu0 %4877
      %4879 = vrot.lane.b32.xlu0 %v4131, 56
      %v4880 = vpop.permute.xlu0 %4879
      %4881 = vrot.lane.b32.xlu0 %v4134, 56
      %v4882 = vpop.permute.xlu0 %4881
      %4883 = vrot.lane.b32.xlu0 %v4136, 56
      %v4884 = vpop.permute.xlu0 %4883
      %4885 = vrot.lane.b32.xlu0 %v4139, 56
      %v4886 = vpop.permute.xlu0 %4885
      %4887 = vrot.lane.b32.xlu0 %v4141, 56
      %v4888 = vpop.permute.xlu0 %4887
      %4889 = vrot.lane.b32.xlu0 %v4144, 56
      %v4890 = vpop.permute.xlu0 %4889
      %4891 = vrot.lane.b32.xlu0 %v4146, 56
      %v4892 = vpop.permute.xlu0 %4891
      %4893 = vrot.lane.b32.xlu0 %v4149, 56
      %v4894 = vpop.permute.xlu0 %4893
      %4895 = vrot.lane.b32.xlu0 %v4151, 56
      %v4896 = vpop.permute.xlu0 %4895
      %4897 = vrot.lane.b32.xlu0 %v4154, 56
      %v4898 = vpop.permute.xlu0 %4897
      %4899 = vrot.lane.b32.xlu0 %v4156, 56
      %v4900 = vpop.permute.xlu0 %4899
      %4901 = vrot.lane.b32.xlu0 %v4159, 56
      %v4902 = vpop.permute.xlu0 %4901
      %4903 = vrot.lane.b32.xlu0 %v4161, 56
      %v4904 = vpop.permute.xlu0 %4903
      %4905 = vrot.lane.b32.xlu0 %v4164, 56
      %v4906 = vpop.permute.xlu0 %4905
      %4907 = vrot.lane.b32.xlu0 %v4166, 56
      %v4908 = vpop.permute.xlu0 %4907
      %4909 = vrot.lane.b32.xlu0 %v4169, 56
      %v4910 = vpop.permute.xlu0 %4909
      %4911 = vrot.lane.b32.xlu0 %v4171, 56
      %v4912 = vpop.permute.xlu0 %4911
      %4913 = vrot.lane.b32.xlu0 %v4174, 56
      %v4914 = vpop.permute.xlu0 %4913
      %4915 = vrot.lane.b32.xlu0 %v4176, 56
      %v4916 = vpop.permute.xlu0 %4915
      %4917 = vrot.lane.b32.xlu0 %v4179, 56
      %v4918 = vpop.permute.xlu0 %4917
      %4919 = vrot.lane.b32.xlu0 %v4181, 56
      %v4920 = vpop.permute.xlu0 %4919
      %4921 = vrot.lane.b32.xlu0 %v4268, 56
      %v4922 = vpop.permute.xlu0 %4921
      %4923 = vrot.lane.b32.xlu0 %v4270, 56
      %v4924 = vpop.permute.xlu0 %4923
      %4925 = vrot.lane.b32.xlu0 %v4281, 56
      %v4926 = vpop.permute.xlu0 %4925
      %4927 = vrot.lane.b32.xlu0 %v4283, 56
      %v4928 = vpop.permute.xlu0 %4927
      %4961 = vrot.lane.b32.xlu0 %v4195, 64
      %v4962 = vpop.permute.xlu0 %4961
      %4963 = vrot.lane.b32.xlu0 %v4197, 64
      %v4964 = vpop.permute.xlu0 %4963
      %4965 = vrot.lane.b32.xlu0 %v4200, 64
      %v4966 = vpop.permute.xlu0 %4965
      %4967 = vrot.lane.b32.xlu0 %v4202, 64
      %v4968 = vpop.permute.xlu0 %4967
      %4969 = vrot.lane.b32.xlu0 %v4205, 64
      %v4970 = vpop.permute.xlu0 %4969
      %4971 = vrot.lane.b32.xlu0 %v4207, 64
      %v4972 = vpop.permute.xlu0 %4971
      %4973 = vrot.lane.b32.xlu0 %v4210, 64
      %v4974 = vpop.permute.xlu0 %4973
      %4975 = vrot.lane.b32.xlu0 %v4212, 64
      %v4976 = vpop.permute.xlu0 %4975
      %4977 = vrot.lane.b32.xlu0 %v4215, 64
      %v4978 = vpop.permute.xlu0 %4977
      %4979 = vrot.lane.b32.xlu0 %v4217, 64
      %v4980 = vpop.permute.xlu0 %4979
      %4981 = vrot.lane.b32.xlu0 %v4220, 64
      %v4982 = vpop.permute.xlu0 %4981
      %4983 = vrot.lane.b32.xlu0 %v4222, 64
      %v4984 = vpop.permute.xlu0 %4983
      %4985 = vrot.lane.b32.xlu0 %v4225, 64
      %v4986 = vpop.permute.xlu0 %4985
      %4987 = vrot.lane.b32.xlu0 %v4227, 64
      %v4988 = vpop.permute.xlu0 %4987
      %4989 = vrot.lane.b32.xlu0 %v4230, 64
      %v4990 = vpop.permute.xlu0 %4989
      %4991 = vrot.lane.b32.xlu0 %v4232, 64
      %v4992 = vpop.permute.xlu0 %4991
      %4993 = vrot.lane.b32.xlu0 %v4235, 64
      %v4994 = vpop.permute.xlu0 %4993
      %4995 = vrot.lane.b32.xlu0 %v4237, 64
      %v4996 = vpop.permute.xlu0 %4995
      %4997 = vrot.lane.b32.xlu0 %v4240, 64
      %v4998 = vpop.permute.xlu0 %4997
      %4999 = vrot.lane.b32.xlu0 %v4242, 64
      %v5000 = vpop.permute.xlu0 %4999
      %5001 = vrot.lane.b32.xlu0 %v4245, 64
      %v5002 = vpop.permute.xlu0 %5001
      %5003 = vrot.lane.b32.xlu0 %v4247, 64
      %v5004 = vpop.permute.xlu0 %5003
      %5005 = vrot.lane.b32.xlu0 %v4250, 64
      %v5006 = vpop.permute.xlu0 %5005
      %5007 = vrot.lane.b32.xlu0 %v4252, 64
      %v5008 = vpop.permute.xlu0 %5007
      %5009 = vrot.lane.b32.xlu0 %v4255, 64
      %v5010 = vpop.permute.xlu0 %5009
      %5011 = vrot.lane.b32.xlu0 %v4257, 64
      %v5012 = vpop.permute.xlu0 %5011
      %5013 = vrot.lane.b32.xlu0 %v4260, 64
      %v5014 = vpop.permute.xlu0 %5013
      %5015 = vrot.lane.b32.xlu0 %v4262, 64
      %v5016 = vpop.permute.xlu0 %5015
      %5017 = vrot.lane.b32.xlu0 %v4273, 64
      %v5018 = vpop.permute.xlu0 %5017
      %5019 = vrot.lane.b32.xlu0 %v4275, 64
      %v5020 = vpop.permute.xlu0 %5019
      %5021 = vrot.lane.b32.xlu0 %v4286, 64
      %v5022 = vpop.permute.xlu0 %5021
      %5023 = vrot.lane.b32.xlu0 %v4288, 64
      %v5024 = vpop.permute.xlu0 %5023
      %v5057 = vsel %vm1459, %v3999, %v4290
      %v5058 = vsel %vm1459, %v4000, %v4292
      %v5059 = vsel %vm1459, %v4002, %v4294
      %v5060 = vsel %vm1459, %v4003, %v4296
      %v5061 = vsel %vm1459, %v4005, %v4298
      %v5062 = vsel %vm1459, %v4006, %v4300
      %v5063 = vsel %vm1459, %v4008, %v4302
      %v5064 = vsel %vm1459, %v4009, %v4304
      %v5065 = vsel %vm1459, %v4011, %v4306
      %v5066 = vsel %vm1459, %v4012, %v4308
      %v5067 = vsel %vm1459, %v4014, %v4310
      %v5068 = vsel %vm1459, %v4015, %v4312
      %v5069 = vsel %vm1459, %v4017, %v4314
      %v5070 = vsel %vm1459, %v4018, %v4316
      %v5071 = vsel %vm1459, %v4020, %v4318
      %v5072 = vsel %vm1459, %v4021, %v4320
      %v5073 = vsel %vm1459, %v4023, %v4322
      %v5074 = vsel %vm1459, %v4024, %v4324
      %v5075 = vsel %vm1459, %v4026, %v4326
      %v5076 = vsel %vm1459, %v4027, %v4328
      %v5077 = vsel %vm1459, %v4029, %v4330
      %v5078 = vsel %vm1459, %v4030, %v4332
      %v5079 = vsel %vm1459, %v4032, %v4334
      %v5080 = vsel %vm1459, %v4033, %v4336
      %v5081 = vsel %vm1459, %v4035, %v4338
      %v5082 = vsel %vm1459, %v4036, %v4340
      %v5083 = vsel %vm1459, %v4038, %v4342
      %v5084 = vsel %vm1459, %v4039, %v4344
      %v5085 = vsel %vm1459, %v4041, %v4346
      %v5086 = vsel %vm1459, %v4042, %v4348
      %v5087 = vsel %vm1459, %v4044, %v4350
      %v5088 = vsel %vm1459, %v4045, %v4352
      %v5089 = vsel %vm1525, %v5057, %v4386
      %v5090 = vsel %vm1525, %v5058, %v4388
      %v5091 = vsel %vm1525, %v5059, %v4390
      %v5092 = vsel %vm1525, %v5060, %v4392
      %v5093 = vsel %vm1525, %v5061, %v4394
      %v5094 = vsel %vm1525, %v5062, %v4396
      %v5095 = vsel %vm1525, %v5063, %v4398
      %v5096 = vsel %vm1525, %v5064, %v4400
      %v5097 = vsel %vm1525, %v5065, %v4402
      %v5098 = vsel %vm1525, %v5066, %v4404
      %v5099 = vsel %vm1525, %v5067, %v4406
      %v5100 = vsel %vm1525, %v5068, %v4408
      %v5101 = vsel %vm1525, %v5069, %v4410
      %v5102 = vsel %vm1525, %v5070, %v4412
      %v5103 = vsel %vm1525, %v5071, %v4414
      %v5104 = vsel %vm1525, %v5072, %v4416
      %v5105 = vsel %vm1525, %v5073, %v4418
      %v5106 = vsel %vm1525, %v5074, %v4420
      %v5107 = vsel %vm1525, %v5075, %v4422
      %v5108 = vsel %vm1525, %v5076, %v4424
      %v5109 = vsel %vm1525, %v5077, %v4426
      %v5110 = vsel %vm1525, %v5078, %v4428
      %v5111 = vsel %vm1525, %v5079, %v4430
      %v5112 = vsel %vm1525, %v5080, %v4432
      %v5113 = vsel %vm1525, %v5081, %v4434
      %v5114 = vsel %vm1525, %v5082, %v4436
      %v5115 = vsel %vm1525, %v5083, %v4438
      %v5116 = vsel %vm1525, %v5084, %v4440
      %v5117 = vsel %vm1525, %v5085, %v4442
      %v5118 = vsel %vm1525, %v5086, %v4444
      %v5119 = vsel %vm1525, %v5087, %v4446
      %v5120 = vsel %vm1525, %v5088, %v4448
      %v5121 = vsel %vm1591, %v5089, %v4482
      %v5122 = vsel %vm1591, %v5090, %v4484
      %v5123 = vsel %vm1591, %v5091, %v4486
      %v5124 = vsel %vm1591, %v5092, %v4488
      %v5125 = vsel %vm1591, %v5093, %v4490
      %v5126 = vsel %vm1591, %v5094, %v4492
      %v5127 = vsel %vm1591, %v5095, %v4494
      %v5128 = vsel %vm1591, %v5096, %v4496
      %v5129 = vsel %vm1591, %v5097, %v4498
      %v5130 = vsel %vm1591, %v5098, %v4500
      %v5131 = vsel %vm1591, %v5099, %v4502
      %v5132 = vsel %vm1591, %v5100, %v4504
      %v5133 = vsel %vm1591, %v5101, %v4506
      %v5134 = vsel %vm1591, %v5102, %v4508
      %v5135 = vsel %vm1591, %v5103, %v4510
      %v5136 = vsel %vm1591, %v5104, %v4512
      %v5137 = vsel %vm1591, %v5105, %v4514
      %v5138 = vsel %vm1591, %v5106, %v4516
      %v5139 = vsel %vm1591, %v5107, %v4518
      %v5140 = vsel %vm1591, %v5108, %v4520
      %v5141 = vsel %vm1591, %v5109, %v4522
      %v5142 = vsel %vm1591, %v5110, %v4524
      %v5143 = vsel %vm1591, %v5111, %v4526
      %v5144 = vsel %vm1591, %v5112, %v4528
      %v5145 = vsel %vm1591, %v5113, %v4530
      %v5146 = vsel %vm1591, %v5114, %v4532
      %v5147 = vsel %vm1591, %v5115, %v4534
      %v5148 = vsel %vm1591, %v5116, %v4536
      %v5149 = vsel %vm1591, %v5117, %v4538
      %v5150 = vsel %vm1591, %v5118, %v4540
      %v5151 = vsel %vm1591, %v5119, %v4542
      %v5152 = vsel %vm1591, %v5120, %v4544
      %v5153 = vsel %vm1657, %v5121, %v4578
      %v5154 = vsel %vm1657, %v5122, %v4580
      %v5155 = vsel %vm1657, %v5123, %v4582
      %v5156 = vsel %vm1657, %v5124, %v4584
      %v5157 = vsel %vm1657, %v5125, %v4586
      %v5158 = vsel %vm1657, %v5126, %v4588
      %v5159 = vsel %vm1657, %v5127, %v4590
      %v5160 = vsel %vm1657, %v5128, %v4592
      %v5161 = vsel %vm1657, %v5129, %v4594
      %v5162 = vsel %vm1657, %v5130, %v4596
      %v5163 = vsel %vm1657, %v5131, %v4598
      %v5164 = vsel %vm1657, %v5132, %v4600
      %v5165 = vsel %vm1657, %v5133, %v4602
      %v5166 = vsel %vm1657, %v5134, %v4604
      %v5167 = vsel %vm1657, %v5135, %v4606
      %v5168 = vsel %vm1657, %v5136, %v4608
      %v5169 = vsel %vm1657, %v5137, %v4610
      %v5170 = vsel %vm1657, %v5138, %v4612
      %v5171 = vsel %vm1657, %v5139, %v4614
      %v5172 = vsel %vm1657, %v5140, %v4616
      %v5173 = vsel %vm1657, %v5141, %v4618
      %v5174 = vsel %vm1657, %v5142, %v4620
      %v5175 = vsel %vm1657, %v5143, %v4622
      %v5176 = vsel %vm1657, %v5144, %v4624
      %v5177 = vsel %vm1657, %v5145, %v4626
      %v5178 = vsel %vm1657, %v5146, %v4628
      %v5179 = vsel %vm1657, %v5147, %v4630
      %v5180 = vsel %vm1657, %v5148, %v4632
      %v5181 = vsel %vm1657, %v5149, %v4634
      %v5182 = vsel %vm1657, %v5150, %v4636
      %v5183 = vsel %vm1657, %v5151, %v4638
      %v5184 = vsel %vm1657, %v5152, %v4640
      %v5185 = vsel %vm3143, %v5153, %v4674
      %v5186 = vsel %vm3143, %v5154, %v4676
      %v5187 = vsel %vm3143, %v5155, %v4678
      %v5188 = vsel %vm3143, %v5156, %v4680
      %v5189 = vsel %vm3143, %v5157, %v4682
      %v5190 = vsel %vm3143, %v5158, %v4684
      %v5191 = vsel %vm3143, %v5159, %v4686
      %v5192 = vsel %vm3143, %v5160, %v4688
      %v5193 = vsel %vm3143, %v5161, %v4690
      %v5194 = vsel %vm3143, %v5162, %v4692
      %v5195 = vsel %vm3143, %v5163, %v4694
      %v5196 = vsel %vm3143, %v5164, %v4696
      %v5197 = vsel %vm3143, %v5165, %v4698
      %v5198 = vsel %vm3143, %v5166, %v4700
      %v5199 = vsel %vm3143, %v5167, %v4702
      %v5200 = vsel %vm3143, %v5168, %v4704
      %v5201 = vsel %vm3143, %v5169, %v4706
      %v5202 = vsel %vm3143, %v5170, %v4708
      %v5203 = vsel %vm3143, %v5171, %v4710
      %v5204 = vsel %vm3143, %v5172, %v4712
      %v5205 = vsel %vm3143, %v5173, %v4714
      %v5206 = vsel %vm3143, %v5174, %v4716
      %v5207 = vsel %vm3143, %v5175, %v4718
      %v5208 = vsel %vm3143, %v5176, %v4720
      %v5209 = vsel %vm3143, %v5177, %v4722
      %v5210 = vsel %vm3143, %v5178, %v4724
      %v5211 = vsel %vm3143, %v5179, %v4726
      %v5212 = vsel %vm3143, %v5180, %v4728
      %v5213 = vsel %vm3143, %v5181, %v4730
      %v5214 = vsel %vm3143, %v5182, %v4732
      %v5215 = vsel %vm3143, %v5183, %v4734
      %v5216 = vsel %vm3143, %v5184, %v4736
      %v5217 = vsel %vm3176, %v5185, %v4770
      %v5218 = vsel %vm3176, %v5186, %v4772
      %v5219 = vsel %vm3176, %v5187, %v4774
      %v5220 = vsel %vm3176, %v5188, %v4776
      %v5221 = vsel %vm3176, %v5189, %v4778
      %v5222 = vsel %vm3176, %v5190, %v4780
      %v5223 = vsel %vm3176, %v5191, %v4782
      %v5224 = vsel %vm3176, %v5192, %v4784
      %v5225 = vsel %vm3176, %v5193, %v4786
      %v5226 = vsel %vm3176, %v5194, %v4788
      %v5227 = vsel %vm3176, %v5195, %v4790
      %v5228 = vsel %vm3176, %v5196, %v4792
      %v5229 = vsel %vm3176, %v5197, %v4794
      %v5230 = vsel %vm3176, %v5198, %v4796
      %v5231 = vsel %vm3176, %v5199, %v4798
      %v5232 = vsel %vm3176, %v5200, %v4800
      %v5233 = vsel %vm3176, %v5201, %v4802
      %v5234 = vsel %vm3176, %v5202, %v4804
      %v5235 = vsel %vm3176, %v5203, %v4806
      %v5236 = vsel %vm3176, %v5204, %v4808
      %v5237 = vsel %vm3176, %v5205, %v4810
      %v5238 = vsel %vm3176, %v5206, %v4812
      %v5239 = vsel %vm3176, %v5207, %v4814
      %v5240 = vsel %vm3176, %v5208, %v4816
      %v5241 = vsel %vm3176, %v5209, %v4818
      %v5242 = vsel %vm3176, %v5210, %v4820
      %v5243 = vsel %vm3176, %v5211, %v4822
      %v5244 = vsel %vm3176, %v5212, %v4824
      %v5245 = vsel %vm3176, %v5213, %v4826
      %v5246 = vsel %vm3176, %v5214, %v4828
      %v5247 = vsel %vm3176, %v5215, %v4830
      %v5248 = vsel %vm3176, %v5216, %v4832
      %v5249 = vsel %vm3209, %v5217, %v4866
      %v5250 = vsel %vm3209, %v5218, %v4868
      %v5251 = vsel %vm3209, %v5219, %v4870
      %v5252 = vsel %vm3209, %v5220, %v4872
      %v5253 = vsel %vm3209, %v5221, %v4874
      %v5254 = vsel %vm3209, %v5222, %v4876
      %v5255 = vsel %vm3209, %v5223, %v4878
      %v5256 = vsel %vm3209, %v5224, %v4880
      %v5257 = vsel %vm3209, %v5225, %v4882
      %v5258 = vsel %vm3209, %v5226, %v4884
      %v5259 = vsel %vm3209, %v5227, %v4886
      %v5260 = vsel %vm3209, %v5228, %v4888
      %v5261 = vsel %vm3209, %v5229, %v4890
      %v5262 = vsel %vm3209, %v5230, %v4892
      %v5263 = vsel %vm3209, %v5231, %v4894
      %v5264 = vsel %vm3209, %v5232, %v4896
      %v5265 = vsel %vm3209, %v5233, %v4898
      %v5266 = vsel %vm3209, %v5234, %v4900
      %v5267 = vsel %vm3209, %v5235, %v4902
      %v5268 = vsel %vm3209, %v5236, %v4904
      %v5269 = vsel %vm3209, %v5237, %v4906
      %v5270 = vsel %vm3209, %v5238, %v4908
      %v5271 = vsel %vm3209, %v5239, %v4910
      %v5272 = vsel %vm3209, %v5240, %v4912
      %v5273 = vsel %vm3209, %v5241, %v4914
      %v5274 = vsel %vm3209, %v5242, %v4916
      %v5275 = vsel %vm3209, %v5243, %v4918
      %v5276 = vsel %vm3209, %v5244, %v4920
      %v5277 = vsel %vm3209, %v5245, %v4922
      %v5278 = vsel %vm3209, %v5246, %v4924
      %v5279 = vsel %vm3209, %v5247, %v4926
      %v5280 = vsel %vm3209, %v5248, %v4928
      %v5281 = vsel %vm3242, %v5249, %v4962
      %v5282 = vsel %vm3242, %v5250, %v4964
      %v5283 = vsel %vm3242, %v5251, %v4966
      %v5284 = vsel %vm3242, %v5252, %v4968
      %v5285 = vsel %vm3242, %v5253, %v4970
      %v5286 = vsel %vm3242, %v5254, %v4972
      %v5287 = vsel %vm3242, %v5255, %v4974
      %v5288 = vsel %vm3242, %v5256, %v4976
      %v5289 = vsel %vm3242, %v5257, %v4978
      %v5290 = vsel %vm3242, %v5258, %v4980
      %v5291 = vsel %vm3242, %v5259, %v4982
      %v5292 = vsel %vm3242, %v5260, %v4984
      %v5293 = vsel %vm3242, %v5261, %v4986
      %v5294 = vsel %vm3242, %v5262, %v4988
      %v5295 = vsel %vm3242, %v5263, %v4990
      %v5296 = vsel %vm3242, %v5264, %v4992
      %v5297 = vsel %vm3242, %v5265, %v4994
      %v5298 = vsel %vm3242, %v5266, %v4996
      %v5299 = vsel %vm3242, %v5267, %v4998
      %v5300 = vsel %vm3242, %v5268, %v5000
      %v5301 = vsel %vm3242, %v5269, %v5002
      %v5302 = vsel %vm3242, %v5270, %v5004
      %v5303 = vsel %vm3242, %v5271, %v5006
      %v5304 = vsel %vm3242, %v5272, %v5008
      %v5305 = vsel %vm3242, %v5273, %v5010
      %v5306 = vsel %vm3242, %v5274, %v5012
      %v5307 = vsel %vm3242, %v5275, %v5014
      %v5308 = vsel %vm3242, %v5276, %v5016
      %v5309 = vsel %vm3242, %v5277, %v5018
      %v5310 = vsel %vm3242, %v5278, %v5020
      %v5311 = vsel %vm3242, %v5279, %v5022
      %v5312 = vsel %vm3242, %v5280, %v5024
      %v5313 = vpack.c.bf16 %v5282, %v5281
      %v5314 = vpack.c.bf16 %v5284, %v5283
      %v5315 = vpack.c.bf16 %v5286, %v5285
      %v5316 = vpack.c.bf16 %v5288, %v5287
      %v5317 = vpack.c.bf16 %v5290, %v5289
      %v5318 = vpack.c.bf16 %v5292, %v5291
      %v5319 = vpack.c.bf16 %v5294, %v5293
      %v5320 = vpack.c.bf16 %v5296, %v5295
      %v5321 = vpack.c.bf16 %v5298, %v5297
      %v5322 = vpack.c.bf16 %v5300, %v5299
      %v5323 = vpack.c.bf16 %v5302, %v5301
      %v5324 = vpack.c.bf16 %v5304, %v5303
      %v5325 = vpack.c.bf16 %v5306, %v5305
      %v5326 = vpack.c.bf16 %v5308, %v5307
      %v5327 = vpack.c.bf16 %v5310, %v5309
      %v5328 = vpack.c.bf16 %v5312, %v5311
      %v5329 = vld [vmem:[%s5] sm:$0xf]
      %v5330 = vld [vmem:[%s5 + $0x4] sm:$0xf]
      %v5331 = vld [vmem:[%s5 + $0x8] sm:$0xf]
      %v5332 = vld [vmem:[%s5 + $0xc] sm:$0xf]
      %v5333 = vld [vmem:[%s5 + $0x10] sm:$0xf]
      %v5334 = vld [vmem:[%s5 + $0x14] sm:$0xf]
      %v5335 = vld [vmem:[%s5 + $0x18] sm:$0xf]
      %v5336 = vld [vmem:[%s5 + $0x1c] sm:$0xf]
      %v5337 = vld [vmem:[%s5 + $0x20] sm:$0xf]
      %v5347 = vunpack.c.l.b16 %v5329
      %v5348 = vunpack.c.l.b16 %v5330
      %v5349 = vunpack.c.l.b16 %v5331
      %v5350 = vunpack.c.l.b16 %v5332
      %v5351 = vunpack.c.l.b16 %v5333
      %v5352 = vunpack.c.l.b16 %v5334
      %v5353 = vunpack.c.l.b16 %v5335
      %v5354 = vunpack.c.l.b16 %v5336
      %v5355 = vunpack.c.l.b16 %v5337
      %v5356 = vpack.c.b16 %v5348, %v5347
      %v5357 = vpack.c.b16 %v5350, %v5349
      %v5358 = vpack.c.b16 %v5352, %v5351
      %v5359 = vpack.c.b16 %v5354, %v5353
      %v5360 = vpack.c.b16 %v5355, %v5355
      %v5366 = vsel %vm3311, %v5313, 0
      %v5369 = vsel %vm3311, %v5314, 0
      %v5372 = vsel %vm3311, %v5315, 0
      %v5375 = vsel %vm3311, %v5316, 0
      %v5378 = vsel %vm3311, %v5317, 0
      %v5381 = vsel %vm3311, %v5318, 0
      %v5384 = vsel %vm3311, %v5319, 0
      %v5387 = vsel %vm3311, %v5320, 0
      %v5390 = vsel %vm3311, %v5321, 0
      %v5393 = vsel %vm3311, %v5322, 0
      %v5396 = vsel %vm3311, %v5323, 0
      %v5399 = vsel %vm3311, %v5324, 0
      %v5402 = vsel %vm3311, %v5325, 0
      %v5405 = vsel %vm3311, %v5326, 0
      %v5408 = vsel %vm3311, %v5327, 0
      %v5411 = vsel %vm3311, %v5328, 0
      %v5414 = vsel %vm3344, %v5360, 0
      %5416 = vmatprep.subr.bf16.mxu0 0
      %5417 = vmatpush1.bf16.msra.mxu0 0
      %5418 = vmatprep.subr.bf16.mxu0 0
      %5419 = vmatpush1.bf16.msra.mxu0 0
      %5420 = vmatprep.subr.bf16.mxu0 0
      %5421 = vmatpush1.bf16.msra.mxu0 0
      %5422 = vmatprep.subr.bf16.mxu0 0
      %5423 = vmatpush1.bf16.msra.mxu0 %v5414
      %5424 = vmatprep.subr.bf16.mxu0 0
      %5425 = vmatpush1.bf16.msra.mxu0 %v5359
      %5426 = vmatprep.subr.bf16.mxu0 0
      %5427 = vmatpush1.bf16.msra.mxu0 %v5358
      %5428 = vmatprep.subr.bf16.mxu0 0
      %5429 = vmatpush1.bf16.msra.mxu0 %v5357
      %5430 = vmatprep.subr.bf16.mxu0 0
      %5431 = vmatpush1.bf16.msra.mxu0 %v5356
      %5432 = vmatprep.subr.bf16.mxu0 0
      %5433 = vmatpush2.bf16.msra.mxu0 0
      %5434 = vmatprep.subr.bf16.mxu0 0
      %5435 = vmatpush2.bf16.msra.mxu0 0
      %5436 = vmatprep.subr.bf16.mxu0 0
      %5437 = vmatpush2.bf16.msra.mxu0 0
      %5438 = vmatprep.subr.bf16.mxu0 0
      %5439 = vmatpush2.bf16.msra.mxu0 0
      %5440 = vmatprep.subr.bf16.mxu0 0
      %5441 = vmatpush2.bf16.msra.mxu0 0
      %5442 = vmatprep.subr.bf16.mxu0 0
      %5443 = vmatpush2.bf16.msra.mxu0 0
      %5444 = vmatprep.subr.bf16.mxu0 0
      %5445 = vmatpush2.bf16.msra.mxu0 0
      %5446 = vmatprep.subr.bf16.mxu0 0
      %5447 = vmatpush2.bf16.msra.mxu0 0
      %5448 = vmatprep.mubr.bf16.mxu0 0
      %5449 = vmatmul.mubr.bf16.gmra.mxu0 %v5366
      %v5450 = vpop.f32.mrf.mxu0
      %v5451 = vadd.f32 0.0, %v5450
      %v5452 = vpop.f32.mrf.mxu0
      %v5453 = vpop.f32.mrf.mxu0
      %v5454 = vadd.f32 0.0, %v5453
      %v5455 = vpop.f32.mrf.mxu0
      %5456 = vmatprep.mubr.bf16.mxu0 0
      %5457 = vmatmul.mubr.bf16.gmra.mxu0 %v5369
      %v5458 = vpop.f32.mrf.mxu0
      %v5459 = vadd.f32 0.0, %v5458
      %v5460 = vpop.f32.mrf.mxu0
      %v5461 = vpop.f32.mrf.mxu0
      %v5462 = vadd.f32 0.0, %v5461
      %v5463 = vpop.f32.mrf.mxu0
      %5464 = vmatprep.mubr.bf16.mxu0 0
      %5465 = vmatmul.mubr.bf16.gmra.mxu0 %v5372
      %v5466 = vpop.f32.mrf.mxu0
      %v5467 = vadd.f32 0.0, %v5466
      %v5468 = vpop.f32.mrf.mxu0
      %v5469 = vpop.f32.mrf.mxu0
      %v5470 = vadd.f32 0.0, %v5469
      %v5471 = vpop.f32.mrf.mxu0
      %5472 = vmatprep.mubr.bf16.mxu0 0
      %5473 = vmatmul.mubr.bf16.gmra.mxu0 %v5375
      %v5474 = vpop.f32.mrf.mxu0
      %v5475 = vadd.f32 0.0, %v5474
      %v5476 = vpop.f32.mrf.mxu0
      %v5477 = vpop.f32.mrf.mxu0
      %v5478 = vadd.f32 0.0, %v5477
      %v5479 = vpop.f32.mrf.mxu0
      %5480 = vmatprep.mubr.bf16.mxu0 0
      %5481 = vmatmul.mubr.bf16.gmra.mxu0 %v5378
      %v5482 = vpop.f32.mrf.mxu0
      %v5483 = vadd.f32 0.0, %v5482
      %v5484 = vpop.f32.mrf.mxu0
      %v5485 = vpop.f32.mrf.mxu0
      %v5486 = vadd.f32 0.0, %v5485
      %v5487 = vpop.f32.mrf.mxu0
      %5488 = vmatprep.mubr.bf16.mxu0 0
      %5489 = vmatmul.mubr.bf16.gmra.mxu0 %v5381
      %v5490 = vpop.f32.mrf.mxu0
      %v5491 = vadd.f32 0.0, %v5490
      %v5492 = vpop.f32.mrf.mxu0
      %v5493 = vpop.f32.mrf.mxu0
      %v5494 = vadd.f32 0.0, %v5493
      %v5495 = vpop.f32.mrf.mxu0
      %5496 = vmatprep.mubr.bf16.mxu0 0
      %5497 = vmatmul.mubr.bf16.gmra.mxu0 %v5384
      %v5498 = vpop.f32.mrf.mxu0
      %v5499 = vadd.f32 0.0, %v5498
      %v5500 = vpop.f32.mrf.mxu0
      %v5501 = vpop.f32.mrf.mxu0
      %v5502 = vadd.f32 0.0, %v5501
      %v5503 = vpop.f32.mrf.mxu0
      %5504 = vmatprep.mubr.bf16.mxu0 0
      %5505 = vmatmul.mubr.bf16.gmra.mxu0 %v5387
      %v5506 = vpop.f32.mrf.mxu0
      %v5507 = vadd.f32 0.0, %v5506
      %v5508 = vpop.f32.mrf.mxu0
      %v5509 = vpop.f32.mrf.mxu0
      %v5510 = vadd.f32 0.0, %v5509
      %v5511 = vpop.f32.mrf.mxu0
      %5512 = vmatprep.mubr.bf16.mxu0 0
      %5513 = vmatmul.mubr.bf16.gmra.mxu0 %v5390
      %v5514 = vpop.f32.mrf.mxu0
      %v5515 = vadd.f32 0.0, %v5514
      %v5516 = vpop.f32.mrf.mxu0
      %v5517 = vpop.f32.mrf.mxu0
      %v5518 = vadd.f32 0.0, %v5517
      %v5519 = vpop.f32.mrf.mxu0
      %5520 = vmatprep.mubr.bf16.mxu0 0
      %5521 = vmatmul.mubr.bf16.gmra.mxu0 %v5393
      %v5522 = vpop.f32.mrf.mxu0
      %v5523 = vadd.f32 0.0, %v5522
      %v5524 = vpop.f32.mrf.mxu0
      %v5525 = vpop.f32.mrf.mxu0
      %v5526 = vadd.f32 0.0, %v5525
      %v5527 = vpop.f32.mrf.mxu0
      %5528 = vmatprep.mubr.bf16.mxu0 0
      %5529 = vmatmul.mubr.bf16.gmra.mxu0 %v5396
      %v5530 = vpop.f32.mrf.mxu0
      %v5531 = vadd.f32 0.0, %v5530
      %v5532 = vpop.f32.mrf.mxu0
      %v5533 = vpop.f32.mrf.mxu0
      %v5534 = vadd.f32 0.0, %v5533
      %v5535 = vpop.f32.mrf.mxu0
      %5536 = vmatprep.mubr.bf16.mxu0 0
      %5537 = vmatmul.mubr.bf16.gmra.mxu0 %v5399
      %v5538 = vpop.f32.mrf.mxu0
      %v5539 = vadd.f32 0.0, %v5538
      %v5540 = vpop.f32.mrf.mxu0
      %v5541 = vpop.f32.mrf.mxu0
      %v5542 = vadd.f32 0.0, %v5541
      %v5543 = vpop.f32.mrf.mxu0
      %5544 = vmatprep.mubr.bf16.mxu0 0
      %5545 = vmatmul.mubr.bf16.gmra.mxu0 %v5402
      %v5546 = vpop.f32.mrf.mxu0
      %v5547 = vadd.f32 0.0, %v5546
      %v5548 = vpop.f32.mrf.mxu0
      %v5549 = vpop.f32.mrf.mxu0
      %v5550 = vadd.f32 0.0, %v5549
      %v5551 = vpop.f32.mrf.mxu0
      %5552 = vmatprep.mubr.bf16.mxu0 0
      %5553 = vmatmul.mubr.bf16.gmra.mxu0 %v5405
      %v5554 = vpop.f32.mrf.mxu0
      %v5555 = vadd.f32 0.0, %v5554
      %v5556 = vpop.f32.mrf.mxu0
      %v5557 = vpop.f32.mrf.mxu0
      %v5558 = vadd.f32 0.0, %v5557
      %v5559 = vpop.f32.mrf.mxu0
      %5560 = vmatprep.mubr.bf16.mxu0 0
      %5561 = vmatmul.mubr.bf16.gmra.mxu0 %v5408
      %v5562 = vpop.f32.mrf.mxu0
      %v5563 = vadd.f32 0.0, %v5562
      %v5564 = vpop.f32.mrf.mxu0
      %v5565 = vpop.f32.mrf.mxu0
      %v5566 = vadd.f32 0.0, %v5565
      %v5567 = vpop.f32.mrf.mxu0
      %5568 = vmatprep.mubr.bf16.mxu0 0
      %5569 = vmatmul.mubr.bf16.gmra.mxu0 %v5411
      %v5570 = vpop.f32.mrf.mxu0
      %v5571 = vadd.f32 0.0, %v5570
      %v5572 = vpop.f32.mrf.mxu0
      %v5573 = vpop.f32.mrf.mxu0
      %v5574 = vadd.f32 0.0, %v5573
      %v5575 = vpop.f32.mrf.mxu0
      %5576 = vdwg.mxu0
      %5609 = vrot.lane.b32.xlu0 %v5451, 16
      %v5610 = vpop.permute.xlu0 %5609
      %5611 = vrot.lane.b32.xlu0 %v5454, 16
      %v5612 = vpop.permute.xlu0 %5611
      %5613 = vrot.lane.b32.xlu0 %v5459, 16
      %v5614 = vpop.permute.xlu0 %5613
      %5615 = vrot.lane.b32.xlu0 %v5462, 16
      %v5616 = vpop.permute.xlu0 %5615
      %5617 = vrot.lane.b32.xlu0 %v5467, 16
      %v5618 = vpop.permute.xlu0 %5617
      %5619 = vrot.lane.b32.xlu0 %v5470, 16
      %v5620 = vpop.permute.xlu0 %5619
      %5621 = vrot.lane.b32.xlu0 %v5475, 16
      %v5622 = vpop.permute.xlu0 %5621
      %5623 = vrot.lane.b32.xlu0 %v5478, 16
      %v5624 = vpop.permute.xlu0 %5623
      %5625 = vrot.lane.b32.xlu0 %v5483, 16
      %v5626 = vpop.permute.xlu0 %5625
      %5627 = vrot.lane.b32.xlu0 %v5486, 16
      %v5628 = vpop.permute.xlu0 %5627
      %5629 = vrot.lane.b32.xlu0 %v5491, 16
      %v5630 = vpop.permute.xlu0 %5629
      %5631 = vrot.lane.b32.xlu0 %v5494, 16
      %v5632 = vpop.permute.xlu0 %5631
      %5633 = vrot.lane.b32.xlu0 %v5499, 16
      %v5634 = vpop.permute.xlu0 %5633
      %5635 = vrot.lane.b32.xlu0 %v5502, 16
      %v5636 = vpop.permute.xlu0 %5635
      %5637 = vrot.lane.b32.xlu0 %v5507, 16
      %v5638 = vpop.permute.xlu0 %5637
      %5639 = vrot.lane.b32.xlu0 %v5510, 16
      %v5640 = vpop.permute.xlu0 %5639
      %5641 = vrot.lane.b32.xlu0 %v5515, 16
      %v5642 = vpop.permute.xlu0 %5641
      %5643 = vrot.lane.b32.xlu0 %v5518, 16
      %v5644 = vpop.permute.xlu0 %5643
      %5645 = vrot.lane.b32.xlu0 %v5523, 16
      %v5646 = vpop.permute.xlu0 %5645
      %5647 = vrot.lane.b32.xlu0 %v5526, 16
      %v5648 = vpop.permute.xlu0 %5647
      %5649 = vrot.lane.b32.xlu0 %v5531, 16
      %v5650 = vpop.permute.xlu0 %5649
      %5651 = vrot.lane.b32.xlu0 %v5534, 16
      %v5652 = vpop.permute.xlu0 %5651
      %5653 = vrot.lane.b32.xlu0 %v5539, 16
      %v5654 = vpop.permute.xlu0 %5653
      %5655 = vrot.lane.b32.xlu0 %v5542, 16
      %v5656 = vpop.permute.xlu0 %5655
      %5657 = vrot.lane.b32.xlu0 %v5547, 16
      %v5658 = vpop.permute.xlu0 %5657
      %5659 = vrot.lane.b32.xlu0 %v5550, 16
      %v5660 = vpop.permute.xlu0 %5659
      %5661 = vrot.lane.b32.xlu0 %v5555, 16
      %v5662 = vpop.permute.xlu0 %5661
      %5663 = vrot.lane.b32.xlu0 %v5558, 16
      %v5664 = vpop.permute.xlu0 %5663
      %5665 = vrot.lane.b32.xlu0 %v5563, 16
      %v5666 = vpop.permute.xlu0 %5665
      %5667 = vrot.lane.b32.xlu0 %v5566, 16
      %v5668 = vpop.permute.xlu0 %5667
      %5669 = vrot.lane.b32.xlu0 %v5571, 16
      %v5670 = vpop.permute.xlu0 %5669
      %5671 = vrot.lane.b32.xlu0 %v5574, 16
      %v5672 = vpop.permute.xlu0 %5671
      %v5705 = vadd.f32 %v1789, %v5610
      %v5706 = vadd.f32 %v1792, %v5612
      %v5707 = vadd.f32 %v1797, %v5614
      %v5708 = vadd.f32 %v1800, %v5616
      %v5709 = vadd.f32 %v1805, %v5618
      %v5710 = vadd.f32 %v1808, %v5620
      %v5711 = vadd.f32 %v1813, %v5622
      %v5712 = vadd.f32 %v1816, %v5624
      %v5713 = vadd.f32 %v1821, %v5626
      %v5714 = vadd.f32 %v1824, %v5628
      %v5715 = vadd.f32 %v1829, %v5630
      %v5716 = vadd.f32 %v1832, %v5632
      %v5717 = vadd.f32 %v1837, %v5634
      %v5718 = vadd.f32 %v1840, %v5636
      %v5719 = vadd.f32 %v1845, %v5638
      %v5720 = vadd.f32 %v1848, %v5640
      %v5721 = vadd.f32 %v1853, %v5642
      %v5722 = vadd.f32 %v1856, %v5644
      %v5723 = vadd.f32 %v1861, %v5646
      %v5724 = vadd.f32 %v1864, %v5648
      %v5725 = vadd.f32 %v1869, %v5650
      %v5726 = vadd.f32 %v1872, %v5652
      %v5727 = vadd.f32 %v1877, %v5654
      %v5728 = vadd.f32 %v1880, %v5656
      %v5729 = vadd.f32 %v1885, %v5658
      %v5730 = vadd.f32 %v1888, %v5660
      %v5731 = vadd.f32 %v1893, %v5662
      %v5732 = vadd.f32 %v1896, %v5664
      %v5733 = vadd.f32 %v1901, %v5666
      %v5734 = vadd.f32 %v1904, %v5668
      %v5735 = vadd.f32 %v1909, %v5670
      %v5736 = vadd.f32 %v1912, %v5672
      %v5737 = vtanh.pop %v5705
      %v5738 = vtanh.pop %v5706
      %v5739 = vtanh.pop %v5707
      %v5740 = vtanh.pop %v5708
      %v5741 = vtanh.pop %v5709
      %v5742 = vtanh.pop %v5710
      %v5743 = vtanh.pop %v5711
      %v5744 = vtanh.pop %v5712
      %v5745 = vtanh.pop %v5713
      %v5746 = vtanh.pop %v5714
      %v5747 = vtanh.pop %v5715
      %v5748 = vtanh.pop %v5716
      %v5749 = vtanh.pop %v5717
      %v5750 = vtanh.pop %v5718
      %v5751 = vtanh.pop %v5719
      %v5752 = vtanh.pop %v5720
      %v5753 = vtanh.pop %v5721
      %v5754 = vtanh.pop %v5722
      %v5755 = vtanh.pop %v5723
      %v5756 = vtanh.pop %v5724
      %v5757 = vtanh.pop %v5725
      %v5758 = vtanh.pop %v5726
      %v5759 = vtanh.pop %v5727
      %v5760 = vtanh.pop %v5728
      %v5761 = vtanh.pop %v5729
      %v5762 = vtanh.pop %v5730
      %v5763 = vtanh.pop %v5731
      %v5764 = vtanh.pop %v5732
      %v5765 = vtanh.pop %v5733
      %v5766 = vtanh.pop %v5734
      %v5767 = vtanh.pop %v5735
      %v5768 = vtanh.pop %v5736
      %v5769 = vsub.f32 1.0, %v3670
      %v5770 = vsub.f32 1.0, %v3672
      %v5771 = vsub.f32 1.0, %v3674
      %v5772 = vsub.f32 1.0, %v3676
      %v5773 = vsub.f32 1.0, %v3678
      %v5774 = vsub.f32 1.0, %v3680
      %v5775 = vsub.f32 1.0, %v3682
      %v5776 = vsub.f32 1.0, %v3684
      %v5777 = vsub.f32 1.0, %v3686
      %v5778 = vsub.f32 1.0, %v3688
      %v5779 = vsub.f32 1.0, %v3690
      %v5780 = vsub.f32 1.0, %v3692
      %v5781 = vsub.f32 1.0, %v3694
      %v5782 = vsub.f32 1.0, %v3696
      %v5783 = vsub.f32 1.0, %v3698
      %v5784 = vsub.f32 1.0, %v3700
      %v5785 = vsub.f32 1.0, %v3702
      %v5786 = vsub.f32 1.0, %v3704
      %v5787 = vsub.f32 1.0, %v3706
      %v5788 = vsub.f32 1.0, %v3708
      %v5789 = vsub.f32 1.0, %v3710
      %v5790 = vsub.f32 1.0, %v3712
      %v5791 = vsub.f32 1.0, %v3714
      %v5792 = vsub.f32 1.0, %v3716
      %v5793 = vsub.f32 1.0, %v3718
      %v5794 = vsub.f32 1.0, %v3720
      %v5795 = vsub.f32 1.0, %v3722
      %v5796 = vsub.f32 1.0, %v3724
      %v5797 = vsub.f32 1.0, %v3726
      %v5798 = vsub.f32 1.0, %v3728
      %v5799 = vsub.f32 1.0, %v3730
      %v5800 = vsub.f32 1.0, %v3732
      %v5801 = vmul.f32 %v3733, %v5769
      %v5802 = vmul.f32 %v3734, %v5770
      %v5803 = vmul.f32 %v3735, %v5771
      %v5804 = vmul.f32 %v3736, %v5772
      %v5805 = vmul.f32 %v3737, %v5773
      %v5806 = vmul.f32 %v3738, %v5774
      %v5807 = vmul.f32 %v3739, %v5775
      %v5808 = vmul.f32 %v3740, %v5776
      %v5809 = vmul.f32 %v3741, %v5777
      %v5810 = vmul.f32 %v3742, %v5778
      %v5811 = vmul.f32 %v3743, %v5779
      %v5812 = vmul.f32 %v3744, %v5780
      %v5813 = vmul.f32 %v3745, %v5781
      %v5814 = vmul.f32 %v3746, %v5782
      %v5815 = vmul.f32 %v3747, %v5783
      %v5816 = vmul.f32 %v3748, %v5784
      %v5817 = vmul.f32 %v3749, %v5785
      %v5818 = vmul.f32 %v3750, %v5786
      %v5819 = vmul.f32 %v3751, %v5787
      %v5820 = vmul.f32 %v3752, %v5788
      %v5821 = vmul.f32 %v3753, %v5789
      %v5822 = vmul.f32 %v3754, %v5790
      %v5823 = vmul.f32 %v3755, %v5791
      %v5824 = vmul.f32 %v3756, %v5792
      %v5825 = vmul.f32 %v3757, %v5793
      %v5826 = vmul.f32 %v3758, %v5794
      %v5827 = vmul.f32 %v3759, %v5795
      %v5828 = vmul.f32 %v3760, %v5796
      %v5829 = vmul.f32 %v3761, %v5797
      %v5830 = vmul.f32 %v3762, %v5798
      %v5831 = vmul.f32 %v3763, %v5799
      %v5832 = vmul.f32 %v3764, %v5800
      %5833 = vrot.lane.b32.xlu0 %v3670, 16
      %v5834 = vpop.permute.xlu0 %5833
      %5835 = vrot.lane.b32.xlu0 %v3672, 16
      %v5836 = vpop.permute.xlu0 %5835
      %5837 = vrot.lane.b32.xlu0 %v3674, 16
      %v5838 = vpop.permute.xlu0 %5837
      %5839 = vrot.lane.b32.xlu0 %v3676, 16
      %v5840 = vpop.permute.xlu0 %5839
      %5841 = vrot.lane.b32.xlu0 %v3678, 16
      %v5842 = vpop.permute.xlu0 %5841
      %5843 = vrot.lane.b32.xlu0 %v3680, 16
      %v5844 = vpop.permute.xlu0 %5843
      %5845 = vrot.lane.b32.xlu0 %v3682, 16
      %v5846 = vpop.permute.xlu0 %5845
      %5847 = vrot.lane.b32.xlu0 %v3684, 16
      %v5848 = vpop.permute.xlu0 %5847
      %5849 = vrot.lane.b32.xlu0 %v3686, 16
      %v5850 = vpop.permute.xlu0 %5849
      %5851 = vrot.lane.b32.xlu0 %v3688, 16
      %v5852 = vpop.permute.xlu0 %5851
      %5853 = vrot.lane.b32.xlu0 %v3690, 16
      %v5854 = vpop.permute.xlu0 %5853
      %5855 = vrot.lane.b32.xlu0 %v3692, 16
      %v5856 = vpop.permute.xlu0 %5855
      %5857 = vrot.lane.b32.xlu0 %v3694, 16
      %v5858 = vpop.permute.xlu0 %5857
      %5859 = vrot.lane.b32.xlu0 %v3696, 16
      %v5860 = vpop.permute.xlu0 %5859
      %5861 = vrot.lane.b32.xlu0 %v3698, 16
      %v5862 = vpop.permute.xlu0 %5861
      %5863 = vrot.lane.b32.xlu0 %v3700, 16
      %v5864 = vpop.permute.xlu0 %5863
      %5865 = vrot.lane.b32.xlu0 %v3702, 16
      %v5866 = vpop.permute.xlu0 %5865
      %5867 = vrot.lane.b32.xlu0 %v3704, 16
      %v5868 = vpop.permute.xlu0 %5867
      %5869 = vrot.lane.b32.xlu0 %v3706, 16
      %v5870 = vpop.permute.xlu0 %5869
      %5871 = vrot.lane.b32.xlu0 %v3708, 16
      %v5872 = vpop.permute.xlu0 %5871
      %5873 = vrot.lane.b32.xlu0 %v3710, 16
      %v5874 = vpop.permute.xlu0 %5873
      %5875 = vrot.lane.b32.xlu0 %v3712, 16
      %v5876 = vpop.permute.xlu0 %5875
      %5877 = vrot.lane.b32.xlu0 %v3714, 16
      %v5878 = vpop.permute.xlu0 %5877
      %5879 = vrot.lane.b32.xlu0 %v3716, 16
      %v5880 = vpop.permute.xlu0 %5879
      %5881 = vrot.lane.b32.xlu0 %v3718, 16
      %v5882 = vpop.permute.xlu0 %5881
      %5883 = vrot.lane.b32.xlu0 %v3720, 16
      %v5884 = vpop.permute.xlu0 %5883
      %5885 = vrot.lane.b32.xlu0 %v3722, 16
      %v5886 = vpop.permute.xlu0 %5885
      %5887 = vrot.lane.b32.xlu0 %v3724, 16
      %v5888 = vpop.permute.xlu0 %5887
      %5889 = vrot.lane.b32.xlu0 %v3726, 16
      %v5890 = vpop.permute.xlu0 %5889
      %5891 = vrot.lane.b32.xlu0 %v3728, 16
      %v5892 = vpop.permute.xlu0 %5891
      %5893 = vrot.lane.b32.xlu0 %v3730, 16
      %v5894 = vpop.permute.xlu0 %5893
      %5895 = vrot.lane.b32.xlu0 %v3732, 16
      %v5896 = vpop.permute.xlu0 %5895
      %v5929 = vmul.f32 %v5737, %v5834
      %v5930 = vmul.f32 %v5738, %v5836
      %v5931 = vmul.f32 %v5739, %v5838
      %v5932 = vmul.f32 %v5740, %v5840
      %v5933 = vmul.f32 %v5741, %v5842
      %v5934 = vmul.f32 %v5742, %v5844
      %v5935 = vmul.f32 %v5743, %v5846
      %v5936 = vmul.f32 %v5744, %v5848
      %v5937 = vmul.f32 %v5745, %v5850
      %v5938 = vmul.f32 %v5746, %v5852
      %v5939 = vmul.f32 %v5747, %v5854
      %v5940 = vmul.f32 %v5748, %v5856
      %v5941 = vmul.f32 %v5749, %v5858
      %v5942 = vmul.f32 %v5750, %v5860
      %v5943 = vmul.f32 %v5751, %v5862
      %v5944 = vmul.f32 %v5752, %v5864
      %v5945 = vmul.f32 %v5753, %v5866
      %v5946 = vmul.f32 %v5754, %v5868
      %v5947 = vmul.f32 %v5755, %v5870
      %v5948 = vmul.f32 %v5756, %v5872
      %v5949 = vmul.f32 %v5757, %v5874
      %v5950 = vmul.f32 %v5758, %v5876
      %v5951 = vmul.f32 %v5759, %v5878
      %v5952 = vmul.f32 %v5760, %v5880
      %v5953 = vmul.f32 %v5761, %v5882
      %v5954 = vmul.f32 %v5762, %v5884
      %v5955 = vmul.f32 %v5763, %v5886
      %v5956 = vmul.f32 %v5764, %v5888
      %v5957 = vmul.f32 %v5765, %v5890
      %v5958 = vmul.f32 %v5766, %v5892
      %v5959 = vmul.f32 %v5767, %v5894
      %v5960 = vmul.f32 %v5768, %v5896
      %5993 = vrot.lane.b32.xlu0 %v5929, 112
      %v5994 = vpop.permute.xlu0 %5993
      %5995 = vrot.lane.b32.xlu0 %v5930, 112
      %v5996 = vpop.permute.xlu0 %5995
      %5997 = vrot.lane.b32.xlu0 %v5931, 112
      %v5998 = vpop.permute.xlu0 %5997
      %5999 = vrot.lane.b32.xlu0 %v5932, 112
      %v6000 = vpop.permute.xlu0 %5999
      %6001 = vrot.lane.b32.xlu0 %v5933, 112
      %v6002 = vpop.permute.xlu0 %6001
      %6003 = vrot.lane.b32.xlu0 %v5934, 112
      %v6004 = vpop.permute.xlu0 %6003
      %6005 = vrot.lane.b32.xlu0 %v5935, 112
      %v6006 = vpop.permute.xlu0 %6005
      %6007 = vrot.lane.b32.xlu0 %v5936, 112
      %v6008 = vpop.permute.xlu0 %6007
      %6009 = vrot.lane.b32.xlu0 %v5937, 112
      %v6010 = vpop.permute.xlu0 %6009
      %6011 = vrot.lane.b32.xlu0 %v5938, 112
      %v6012 = vpop.permute.xlu0 %6011
      %6013 = vrot.lane.b32.xlu0 %v5939, 112
      %v6014 = vpop.permute.xlu0 %6013
      %6015 = vrot.lane.b32.xlu0 %v5940, 112
      %v6016 = vpop.permute.xlu0 %6015
      %6017 = vrot.lane.b32.xlu0 %v5941, 112
      %v6018 = vpop.permute.xlu0 %6017
      %6019 = vrot.lane.b32.xlu0 %v5942, 112
      %v6020 = vpop.permute.xlu0 %6019
      %6021 = vrot.lane.b32.xlu0 %v5943, 112
      %v6022 = vpop.permute.xlu0 %6021
      %6023 = vrot.lane.b32.xlu0 %v5944, 112
      %v6024 = vpop.permute.xlu0 %6023
      %6025 = vrot.lane.b32.xlu0 %v5945, 112
      %v6026 = vpop.permute.xlu0 %6025
      %6027 = vrot.lane.b32.xlu0 %v5946, 112
      %v6028 = vpop.permute.xlu0 %6027
      %6029 = vrot.lane.b32.xlu0 %v5947, 112
      %v6030 = vpop.permute.xlu0 %6029
      %6031 = vrot.lane.b32.xlu0 %v5948, 112
      %v6032 = vpop.permute.xlu0 %6031
      %6033 = vrot.lane.b32.xlu0 %v5949, 112
      %v6034 = vpop.permute.xlu0 %6033
      %6035 = vrot.lane.b32.xlu0 %v5950, 112
      %v6036 = vpop.permute.xlu0 %6035
      %6037 = vrot.lane.b32.xlu0 %v5951, 112
      %v6038 = vpop.permute.xlu0 %6037
      %6039 = vrot.lane.b32.xlu0 %v5952, 112
      %v6040 = vpop.permute.xlu0 %6039
      %6041 = vrot.lane.b32.xlu0 %v5953, 112
      %v6042 = vpop.permute.xlu0 %6041
      %6043 = vrot.lane.b32.xlu0 %v5954, 112
      %v6044 = vpop.permute.xlu0 %6043
      %6045 = vrot.lane.b32.xlu0 %v5955, 112
      %v6046 = vpop.permute.xlu0 %6045
      %6047 = vrot.lane.b32.xlu0 %v5956, 112
      %v6048 = vpop.permute.xlu0 %6047
      %6049 = vrot.lane.b32.xlu0 %v5957, 112
      %v6050 = vpop.permute.xlu0 %6049
      %6051 = vrot.lane.b32.xlu0 %v5958, 112
      %v6052 = vpop.permute.xlu0 %6051
      %6053 = vrot.lane.b32.xlu0 %v5959, 112
      %v6054 = vpop.permute.xlu0 %6053
      %6055 = vrot.lane.b32.xlu0 %v5960, 112
      %v6056 = vpop.permute.xlu0 %6055
      %v6089 = vadd.f32 %v5801, %v5994
      %v6090 = vadd.f32 %v5802, %v5996
      %v6091 = vadd.f32 %v5803, %v5998
      %v6092 = vadd.f32 %v5804, %v6000
      %v6093 = vadd.f32 %v5805, %v6002
      %v6094 = vadd.f32 %v5806, %v6004
      %v6095 = vadd.f32 %v5807, %v6006
      %v6096 = vadd.f32 %v5808, %v6008
      %v6097 = vadd.f32 %v5809, %v6010
      %v6098 = vadd.f32 %v5810, %v6012
      %v6099 = vadd.f32 %v5811, %v6014
      %v6100 = vadd.f32 %v5812, %v6016
      %v6101 = vadd.f32 %v5813, %v6018
      %v6102 = vadd.f32 %v5814, %v6020
      %v6103 = vadd.f32 %v5815, %v6022
      %v6104 = vadd.f32 %v5816, %v6024
      %v6105 = vadd.f32 %v5817, %v6026
      %v6106 = vadd.f32 %v5818, %v6028
      %v6107 = vadd.f32 %v5819, %v6030
      %v6108 = vadd.f32 %v5820, %v6032
      %v6109 = vadd.f32 %v5821, %v6034
      %v6110 = vadd.f32 %v5822, %v6036
      %v6111 = vadd.f32 %v5823, %v6038
      %v6112 = vadd.f32 %v5824, %v6040
      %v6113 = vadd.f32 %v5825, %v6042
      %v6114 = vadd.f32 %v5826, %v6044
      %v6115 = vadd.f32 %v5827, %v6046
      %v6116 = vadd.f32 %v5828, %v6048
      %v6117 = vadd.f32 %v5829, %v6050
      %v6118 = vadd.f32 %v5830, %v6052
      %v6119 = vadd.f32 %v5831, %v6054
      %v6120 = vadd.f32 %v5832, %v6056
      %6121 = vst.msk [vmem:[%s318] sm:$0xff] %vm1459, %v6089
      %6122 = vst.msk [vmem:[%s318 + $0x8] sm:$0xff] %vm1459, %v6090
      %6123 = vst.msk [vmem:[%s318 + $0x10] sm:$0xff] %vm1459, %v6091
      %6124 = vst.msk [vmem:[%s318 + $0x18] sm:$0xff] %vm1459, %v6092
      %6125 = vst.msk [vmem:[%s318 + $0x20] sm:$0xff] %vm1459, %v6093
      %6126 = vst.msk [vmem:[%s318 + $0x28] sm:$0xff] %vm1459, %v6094
      %6127 = vst.msk [vmem:[%s318 + $0x30] sm:$0xff] %vm1459, %v6095
      %6128 = vst.msk [vmem:[%s318 + $0x38] sm:$0xff] %vm1459, %v6096
      %6129 = vst.msk [vmem:[%s318 + $0x40] sm:$0xff] %vm1459, %v6097
      %6130 = vst.msk [vmem:[%s318 + $0x48] sm:$0xff] %vm1459, %v6098
      %6131 = vst.msk [vmem:[%s318 + $0x50] sm:$0xff] %vm1459, %v6099
      %6132 = vst.msk [vmem:[%s318 + $0x58] sm:$0xff] %vm1459, %v6100
      %6133 = vst.msk [vmem:[%s318 + $0x60] sm:$0xff] %vm1459, %v6101
      %6134 = vst.msk [vmem:[%s318 + $0x68] sm:$0xff] %vm1459, %v6102
      %6135 = vst.msk [vmem:[%s318 + $0x70] sm:$0xff] %vm1459, %v6103
      %6136 = vst.msk [vmem:[%s318 + $0x78] sm:$0xff] %vm1459, %v6104
      %6137 = vst.msk [vmem:[%s318 + $0x80] sm:$0xff] %vm1459, %v6105
      %6138 = vst.msk [vmem:[%s318 + $0x88] sm:$0xff] %vm1459, %v6106
      %6139 = vst.msk [vmem:[%s318 + $0x90] sm:$0xff] %vm1459, %v6107
      %6140 = vst.msk [vmem:[%s318 + $0x98] sm:$0xff] %vm1459, %v6108
      %6141 = vst.msk [vmem:[%s318 + $0xa0] sm:$0xff] %vm1459, %v6109
      %6142 = vst.msk [vmem:[%s318 + $0xa8] sm:$0xff] %vm1459, %v6110
      %6143 = vst.msk [vmem:[%s318 + $0xb0] sm:$0xff] %vm1459, %v6111
      %6144 = vst.msk [vmem:[%s318 + $0xb8] sm:$0xff] %vm1459, %v6112
      %6145 = vst.msk [vmem:[%s318 + $0xc0] sm:$0xff] %vm1459, %v6113
      %6146 = vst.msk [vmem:[%s318 + $0xc8] sm:$0xff] %vm1459, %v6114
      %6147 = vst.msk [vmem:[%s318 + $0xd0] sm:$0xff] %vm1459, %v6115
      %6148 = vst.msk [vmem:[%s318 + $0xd8] sm:$0xff] %vm1459, %v6116
      %6149 = vst.msk [vmem:[%s318 + $0xe0] sm:$0xff] %vm1459, %v6117
      %6150 = vst.msk [vmem:[%s318 + $0xe8] sm:$0xff] %vm1459, %v6118
      %6151 = vst.msk [vmem:[%s318 + $0xf0] sm:$0xff] %vm1459, %v6119
      %6152 = vst.msk [vmem:[%s318 + $0xf8] sm:$0xff] %vm1459, %v6120
      %p6153 = scmp.lt.s32.totalorder %s18, 1
      %s6154 = scalar_select %p6153, %s18, 1
      %s6155 = smul.addr %s6154, 32
      %s6156 = smul.addr %s6155, 8
      %s6157 = scalar_lea.vmem %s7, %s6156
      // Predicated region
      $region49: #{tpu_custom_call.1} parent=47 // pred_check
        %p6158 = pneg %p198
      $region50: #{tpu_custom_call.1} parent=47 // pred_check_branch
        %6160 = sbr.rel (%p6158) target = $region52
      $region51: #{tpu_custom_call.1} parent=47 // pred_region
        _
      $region52: #{tpu_custom_call.1} parent=47 // pred_fallthru
        _
    $region48: #{tpu_custom_call.1} parent=5 // pred_fallthru
      _
    %p6161 = scmp.le.s32.totalorder 2, %s13
    // Predicated region
    $region53: #{tpu_custom_call.1} parent=5 // pred_check
      %p6162 = pneg %p6161
    $region54: #{tpu_custom_call.1} parent=5 // pred_check_branch
      %6164 = sbr.rel (%p6162) target = $region56
    $region55: #{tpu_custom_call.1} parent=5 // pred_region
      %s6165 = ssub.s32 %s13, 2
      // Predicated region
      $region57: #{tpu_custom_call.1} parent=55 // pred_check
        %p6166 = pneg %p204
      $region58: #{tpu_custom_call.1} parent=55 // pred_check_branch
        %6168 = sbr.rel (%p6166) target = $region60
      $region59: #{tpu_custom_call.1} parent=55 // pred_region
        %p6169 = scmp.lt.s32.totalorder %s19, 1
        %s6170 = scalar_select %p6169, %s19, 1
        %s6171 = smul.addr %s6170, 32
        %s6172 = smul.addr %s6171, 8
        %s6173 = scalar_lea.vmem %s7, %s6172
      $region60: #{tpu_custom_call.1} parent=55 // pred_fallthru
        _
    $region56: #{tpu_custom_call.1} parent=5 // pred_fallthru
      _
  $region6: #{tpu_custom_call.1} parent=0 // loop_footer
    %s17 = sadd.s32 1, %s13
  $region7: #{tpu_custom_call.1} parent=0 // loop_footer_branch
    %12 = sbr.rel target = $region3
  $region8: #{tpu_custom_call.1} parent=0 // loop_exit
    _

</llo_original>
